<compile_context>
chip_gen: v7x
topology: tpu7x:2x2x1
jax: 0.10.0
libtpu: 0.0.40
codegen_flags: <defaults>
</compile_context>

<pallas_src>
import functools

import jax
import jax.numpy as jnp
from jax.experimental import pallas as pl
from jax.experimental.pallas import tpu as pltpu

_BN_EPS = 1e-5


# ------------------------------ Pallas kernel ------------------------------ #

def _conv_bn_pool(xp_ref, w_ref, b_ref, g_ref, be_ref, pool_ref,
                  N, H, W, Cin, Cout):
    """conv3x3('same') + bias + train-mode BN + 2x2/2 max-pool, whole batch.

    xp_ref  : (N, H+2, W+2, Cin) f32 zero halo-padded activations (VMEM)
    w_ref   : (9*Cin, Cout) bf16 weights, rows ordered (ky, kx, ci)
    b/g/be  : (1, Cout) f32 conv bias, BN gamma, BN beta
    pool_ref: (N*(H//2)*W, Cout) f32 VMEM staging for the horizontal pool
    returns : (N*(H//2)*(W//2), Cout) f32, rows ordered (n, h2, w2)
    """
    H2, W2 = H // 2, W // 2

    # conv as ONE matmul: VMEM-only im2col (9 shifted views -> lane concat).
    patches = []
    for dy in range(3):
        for dx in range(3):
            patches.append(
                xp_ref[:, dy:dy + H, dx:dx + W, :].reshape(N * H * W, Cin))
    a = jnp.concatenate(patches, axis=-1).astype(jnp.bfloat16)   # (N*H*W, 9*Cin)
    y = jnp.dot(a, w_ref[...], preferred_element_type=jnp.float32)
    y = y + b_ref[...]                                           # (N*H*W, Cout) f32

    # Train-mode BatchNorm with centered (cancellation-safe) batch statistics.
    mean = jnp.mean(y, axis=0, keepdims=True)                    # (1, Cout)
    var = jnp.mean(jnp.square(y - mean), axis=0, keepdims=True)  # biased, like torch
    scale = g_ref[...] * jax.lax.rsqrt(var + _BN_EPS)
    shift = be_ref[...] - mean * scale
    z = y * scale + shift                                        # (N*H*W, Cout)

    # 2x2 stride-2 max pool.
    # Vertical (row-pair) max via a free major-dim split reshape.
    z = z.reshape(N, H2, 2, W, Cout)
    v = jnp.maximum(z[:, :, 0], z[:, :, 1])                      # (N, H2, W, Cout)
    # Horizontal (column-pair) max via stride-2 sublane reads from VMEM
    # staging; rows are (n, h2, w) with W even, so even rows <=> even w.
    pool_ref[...] = v.reshape(N * H2 * W, Cout)
    npool = N * H2 * W2
    even = pool_ref[pl.ds(0, npool, stride=2), :]
    odd = pool_ref[pl.ds(1, npool, stride=2), :]
    return jnp.maximum(even, odd)                                # (N*H2*W2, Cout)


def _shallow_cnn_kernel(x_ref, w1_ref, b1_ref, g1_ref, be1_ref,
                        w2_ref, b2_ref, g2_ref, be2_ref,
                        o_ref,
                        xp1_ref, xp2_ref, pool1_ref, pool2_ref,
                        *, N, H, W, Cin, C1, C2):
    H2, W2 = H // 2, W // 2

    # ---- layer 1: zero-halo pad in VMEM, conv + BN + pool -------------------
    xp1_ref[...] = jnp.zeros_like(xp1_ref)
    xp1_ref[:, 1:H + 1, 1:W + 1, :] = x_ref[...].astype(jnp.float32)
    p1 = _conv_bn_pool(xp1_ref, w1_ref, b1_ref, g1_ref, be1_ref, pool1_ref,
                       N, H, W, Cin, C1)                         # (N*H2*W2, C1)

    # ---- layer 2: pooled activation stays in VMEM, halo-padded in place -----
    xp2_ref[...] = jnp.zeros_like(xp2_ref)
    xp2_ref[:, 1:H2 + 1, 1:W2 + 1, :] = p1.reshape(N, H2, W2, C1)
    p2 = _conv_bn_pool(xp2_ref, w2_ref, b2_ref, g2_ref, be2_ref, pool2_ref,
                       N, H2, W2, C1, C2)                        # (N*H4*W4, C2)

    # Single tiny output store (only HBM writeback of the whole network).
    o_ref[...] = p2


# -------------------------------- wrappers --------------------------------- #

def _prep_conv_weight(w_oihw):
    # PyTorch OIHW -> (ky, kx, ci, co) -> (9*Cin, Cout); row = (ky*3+kx)*Cin+ci.
    cout = w_oihw.shape[0]
    return jnp.transpose(w_oihw, (2, 3, 1, 0)).reshape(-1, cout).astype(jnp.bfloat16)


def _prep_channel_vec(v):
    return v.astype(jnp.float32).reshape(1, -1)


def _shallow_cnn_pallas(x_nhwc, params):
    N, H, W, Cin = x_nhwc.shape
    C1 = params["w1"].shape[0]
    C2 = params["w2"].shape[0]
    assert H % 4 == 0 and W % 4 == 0, "two 2x2/2 pools expect spatial dims % 4 == 0"
    H2, W2, H4, W4 = H // 2, W // 2, H // 4, W // 4

    vmem_specs = [pl.BlockSpec(memory_space=pltpu.MemorySpace.VMEM)
                  for _ in range(9)]
    out_spec = pl.BlockSpec(memory_space=pltpu.MemorySpace.VMEM)

    flops = 2 * N * H * W * 9 * Cin * C1 + 2 * N * H2 * W2 * 9 * C1 * C2
    bytes_accessed = (N * H * W * Cin * 2            # bf16 input image
                      + 9 * Cin * C1 * 2 + 9 * C1 * C2 * 2   # bf16 weights
                      + 3 * (C1 + C2) * 4            # bias / gamma / beta
                      + N * H4 * W4 * C2 * 4)        # f32 output

    out = pl.pallas_call(
        functools.partial(_shallow_cnn_kernel,
                          N=N, H=H, W=W, Cin=Cin, C1=C1, C2=C2),
        out_shape=jax.ShapeDtypeStruct((N * H4 * W4, C2), jnp.float32),
        in_specs=vmem_specs,
        out_specs=out_spec,
        scratch_shapes=[
            pltpu.VMEM((N, H + 2, W + 2, Cin), jnp.float32),    # padded layer-1 input
            pltpu.VMEM((N, H2 + 2, W2 + 2, C1), jnp.float32),   # padded layer-2 input
            pltpu.VMEM((N * H2 * W, C1), jnp.float32),          # pool staging, layer 1
            pltpu.VMEM((N * H4 * W2, C2), jnp.float32),         # pool staging, layer 2
        ],
        cost_estimate=pl.CostEstimate(flops=flops, transcendentals=0,
                                      bytes_accessed=bytes_accessed),
    )(
        x_nhwc.astype(jnp.bfloat16),
        _prep_conv_weight(params["w1"]), _prep_channel_vec(params["b1"]),
        _prep_channel_vec(params["g1"]), _prep_channel_vec(params["be1"]),
        _prep_conv_weight(params["w2"]), _prep_channel_vec(params["b2"]),
        _prep_channel_vec(params["g2"]), _prep_channel_vec(params["be2"]),
    )
    # (N*H4*W4, C2) and (N, H4, W4, C2) share the same row-major layout.
    return out.reshape(N, H4, W4, C2)


@jax.jit
def shallow_cnn_forward(x_nchw, params):
    x = jnp.transpose(x_nchw, (0, 2, 3, 1))        # NCHW -> NHWC
    y = _shallow_cnn_pallas(x, params)             # (N, H/4, W/4, C2)
    return jnp.transpose(y, (0, 3, 1, 2))          # NHWC -> NCHW


# ------------------------- pure-JAX reference check ------------------------ #

def _reference_forward(x, params):
    def layer(x, w, b, g, be):
        y = jax.lax.conv_general_dilated(x, w, (1, 1), ((1, 1), (1, 1)),
                                         dimension_numbers=("NCHW", "OIHW", "NCHW"))
        y = y + b[None, :, None, None]
        m = jnp.mean(y, axis=(0, 2, 3), keepdims=True)
        v = jnp.mean(jnp.square(y - m), axis=(0, 2, 3), keepdims=True)
        y = (y - m) * jax.lax.rsqrt(v + _BN_EPS) * g[None, :, None, None] \
            + be[None, :, None, None]
        return jax.lax.reduce_window(y, -jnp.inf, jax.lax.max,
                                     (1, 1, 2, 2), (1, 1, 2, 2), "VALID")
    y = layer(x, params["w1"], params["b1"], params["g1"], params["be1"])
    y = layer(y, params["w2"], params["b2"], params["g2"], params["be2"])
    return y


if __name__ == "__main__":
    in_channels, hidden_dim = 4, 32
    N, H, W = 2, 16, 16

    key = jax.random.PRNGKey(0)
    kx, k1, k2, k3, k4 = jax.random.split(key, 5)
    params = {
        # conv weights (PyTorch OIHW), deterministic synthetic init
        "w1": 0.1 * jax.random.normal(k1, (hidden_dim // 2, in_channels, 3, 3), jnp.float32),
        "b1": 0.1 * jax.random.normal(k2, (hidden_dim // 2,), jnp.float32),
        "g1": jnp.ones((hidden_dim // 2,), jnp.float32),    # BN gamma (torch default init)
        "be1": jnp.zeros((hidden_dim // 2,), jnp.float32),  # BN beta
        "w2": 0.1 * jax.random.normal(k3, (hidden_dim, hidden_dim // 2, 3, 3), jnp.float32),
        "b2": 0.1 * jax.random.normal(k4, (hidden_dim,), jnp.float32),
        "g2": jnp.ones((hidden_dim,), jnp.float32),
        "be2": jnp.zeros((hidden_dim,), jnp.float32),
    }
    x = jax.random.normal(kx, (N, in_channels, H, W), jnp.float32)   # NCHW like PyTorch

    out = jax.block_until_ready(shallow_cnn_forward(x, params))
    assert out.shape == (N, hidden_dim, H // 4, W // 4), out.shape

    ref = jax.block_until_ready(_reference_forward(x, params))
    # bf16 weights/activations on the MXU (f32 accumulation) vs. an all-f32
    # reference -> bf16-level tolerance on O(1) BN-normalized outputs.
    assert jnp.allclose(out, ref, atol=3e-2, rtol=3e-2), float(jnp.max(jnp.abs(out - ref)))

    print("KERNEL_OK")
</pallas_src>

<mosaic_0001>
module attributes {stable_mosaic.version = 11 : i64} {
  func.func @_shallow_cnn_kernel(%arg0: memref<2x16x16x4xbf16, #tpu.memory_space<vmem>>, %arg1: memref<36x16xbf16, #tpu.memory_space<vmem>>, %arg2: memref<1x16xf32, #tpu.memory_space<vmem>>, %arg3: memref<1x16xf32, #tpu.memory_space<vmem>>, %arg4: memref<1x16xf32, #tpu.memory_space<vmem>>, %arg5: memref<144x32xbf16, #tpu.memory_space<vmem>>, %arg6: memref<1x32xf32, #tpu.memory_space<vmem>>, %arg7: memref<1x32xf32, #tpu.memory_space<vmem>>, %arg8: memref<1x32xf32, #tpu.memory_space<vmem>>, %arg9: memref<32x32xf32, #tpu.memory_space<vmem>>, %arg10: memref<2x18x18x4xf32, #tpu.memory_space<vmem>>, %arg11: memref<2x10x10x16xf32, #tpu.memory_space<vmem>>, %arg12: memref<256x16xf32, #tpu.memory_space<vmem>>, %arg13: memref<64x32xf32, #tpu.memory_space<vmem>>) attributes {dimension_semantics = [], scalar_prefetch = 0 : i64, scratch_operands = 4 : i64, tpu.core_type = #tpu.core_type<tc>} {
    %cst = arith.constant 0.000000e+00 : f32
    %0 = vector.broadcast %cst : f32 to vector<2x18x18x4xf32>
    %c0 = arith.constant 0 : index
    %c0_0 = arith.constant 0 : index
    %c0_1 = arith.constant 0 : index
    %c0_2 = arith.constant 0 : index
    %1 = vector.load %arg10[%c0, %c0_0, %c0_1, %c0_2] : memref<2x18x18x4xf32, #tpu.memory_space<vmem>>, vector<2x18x18x4xf32>
    tpu.vector_store %arg10[%c0, %c0_0, %c0_1, %c0_2], %0 {strides = array<i32>} : memref<2x18x18x4xf32, #tpu.memory_space<vmem>>, vector<2x18x18x4xf32>,
    %c0_3 = arith.constant 0 : index
    %c0_4 = arith.constant 0 : index
    %c0_5 = arith.constant 0 : index
    %c0_6 = arith.constant 0 : index
    %2 = vector.load %arg0[%c0_3, %c0_4, %c0_5, %c0_6] : memref<2x16x16x4xbf16, #tpu.memory_space<vmem>>, vector<2x16x16x4xbf16>
    %3 = arith.extf %2 : vector<2x16x16x4xbf16> to vector<2x16x16x4xf32>
    %c0_7 = arith.constant 0 : index
    %c1 = arith.constant 1 : index
    %c1_8 = arith.constant 1 : index
    %c0_9 = arith.constant 0 : index
    %4 = vector.load %arg10[%c0_7, %c1, %c1_8, %c0_9] : memref<2x18x18x4xf32, #tpu.memory_space<vmem>>, vector<2x16x16x4xf32>
    tpu.vector_store %arg10[%c0_7, %c1, %c1_8, %c0_9], %3 {strides = array<i32>} : memref<2x18x18x4xf32, #tpu.memory_space<vmem>>, vector<2x16x16x4xf32>,
    %c0_10 = arith.constant 0 : index
    %c0_11 = arith.constant 0 : index
    %c0_12 = arith.constant 0 : index
    %c0_13 = arith.constant 0 : index
    %5 = vector.load %arg10[%c0_10, %c0_11, %c0_12, %c0_13] : memref<2x18x18x4xf32, #tpu.memory_space<vmem>>, vector<2x16x16x4xf32>
    %6 = vector.shape_cast %5 : vector<2x16x16x4xf32> to vector<512x4xf32>
    %c0_14 = arith.constant 0 : index
    %c0_15 = arith.constant 0 : index
    %c1_16 = arith.constant 1 : index
    %c0_17 = arith.constant 0 : index
    %7 = vector.load %arg10[%c0_14, %c0_15, %c1_16, %c0_17] : memref<2x18x18x4xf32, #tpu.memory_space<vmem>>, vector<2x16x16x4xf32>
    %8 = vector.shape_cast %7 : vector<2x16x16x4xf32> to vector<512x4xf32>
    %c0_18 = arith.constant 0 : index
    %c0_19 = arith.constant 0 : index
    %c2 = arith.constant 2 : index
    %c0_20 = arith.constant 0 : index
    %9 = vector.load %arg10[%c0_18, %c0_19, %c2, %c0_20] : memref<2x18x18x4xf32, #tpu.memory_space<vmem>>, vector<2x16x16x4xf32>
    %10 = vector.shape_cast %9 : vector<2x16x16x4xf32> to vector<512x4xf32>
    %c0_21 = arith.constant 0 : index
    %c1_22 = arith.constant 1 : index
    %c0_23 = arith.constant 0 : index
    %c0_24 = arith.constant 0 : index
    %11 = vector.load %arg10[%c0_21, %c1_22, %c0_23, %c0_24] : memref<2x18x18x4xf32, #tpu.memory_space<vmem>>, vector<2x16x16x4xf32>
    %12 = vector.shape_cast %11 : vector<2x16x16x4xf32> to vector<512x4xf32>
    %c0_25 = arith.constant 0 : index
    %c1_26 = arith.constant 1 : index
    %c1_27 = arith.constant 1 : index
    %c0_28 = arith.constant 0 : index
    %13 = vector.load %arg10[%c0_25, %c1_26, %c1_27, %c0_28] : memref<2x18x18x4xf32, #tpu.memory_space<vmem>>, vector<2x16x16x4xf32>
    %14 = vector.shape_cast %13 : vector<2x16x16x4xf32> to vector<512x4xf32>
    %c0_29 = arith.constant 0 : index
    %c1_30 = arith.constant 1 : index
    %c2_31 = arith.constant 2 : index
    %c0_32 = arith.constant 0 : index
    %15 = vector.load %arg10[%c0_29, %c1_30, %c2_31, %c0_32] : memref<2x18x18x4xf32, #tpu.memory_space<vmem>>, vector<2x16x16x4xf32>
    %16 = vector.shape_cast %15 : vector<2x16x16x4xf32> to vector<512x4xf32>
    %c0_33 = arith.constant 0 : index
    %c2_34 = arith.constant 2 : index
    %c0_35 = arith.constant 0 : index
    %c0_36 = arith.constant 0 : index
    %17 = vector.load %arg10[%c0_33, %c2_34, %c0_35, %c0_36] : memref<2x18x18x4xf32, #tpu.memory_space<vmem>>, vector<2x16x16x4xf32>
    %18 = vector.shape_cast %17 : vector<2x16x16x4xf32> to vector<512x4xf32>
    %c0_37 = arith.constant 0 : index
    %c2_38 = arith.constant 2 : index
    %c1_39 = arith.constant 1 : index
    %c0_40 = arith.constant 0 : index
    %19 = vector.load %arg10[%c0_37, %c2_38, %c1_39, %c0_40] : memref<2x18x18x4xf32, #tpu.memory_space<vmem>>, vector<2x16x16x4xf32>
    %20 = vector.shape_cast %19 : vector<2x16x16x4xf32> to vector<512x4xf32>
    %c0_41 = arith.constant 0 : index
    %c2_42 = arith.constant 2 : index
    %c2_43 = arith.constant 2 : index
    %c0_44 = arith.constant 0 : index
    %21 = vector.load %arg10[%c0_41, %c2_42, %c2_43, %c0_44] : memref<2x18x18x4xf32, #tpu.memory_space<vmem>>, vector<2x16x16x4xf32>
    %22 = vector.shape_cast %21 : vector<2x16x16x4xf32> to vector<512x4xf32>
    %23 = tpu.concatenate %6, %8, %10, %12, %14, %16, %18, %20, %22 in 1 : vector<512x4xf32>, vector<512x4xf32>, vector<512x4xf32>, vector<512x4xf32>, vector<512x4xf32>, vector<512x4xf32>, vector<512x4xf32>, vector<512x4xf32>, vector<512x4xf32> -> vector<512x36xf32>
    %24 = arith.truncf %23 : vector<512x36xf32> to vector<512x36xbf16>
    %c0_45 = arith.constant 0 : index
    %c0_46 = arith.constant 0 : index
    %25 = vector.load %arg1[%c0_45, %c0_46] : memref<36x16xbf16, #tpu.memory_space<vmem>>, vector<36x16xbf16>
    %cst_47 = arith.constant dense<0.000000e+00> : vector<512x16xf32>
    %26 = tpu.matmul %24, %25, %cst_47 {dimension_numbers = #tpu.dot_dimension_numbers<[1], [0], [0], [1], [0, 0, 1, 1], [], []>} : vector<512x36xbf16>, vector<36x16xbf16>, vector<512x16xf32> -> vector<512x16xf32>
    %c0_48 = arith.constant 0 : index
    %c0_49 = arith.constant 0 : index
    %27 = vector.load %arg2[%c0_48, %c0_49] : memref<1x16xf32, #tpu.memory_space<vmem>>, vector<1x16xf32>
    %28 = vector.broadcast %27 : vector<1x16xf32> to vector<512x16xf32>
    %29 = arith.addf %26, %28 : vector<512x16xf32>
    %cst_50 = arith.constant dense<0.000000e+00> : vector<16xf32>
    %30 = vector.multi_reduction <add>, %29, %cst_50 [0] : vector<512x16xf32> to vector<16xf32>
    %31 = vector.shape_cast %30 : vector<16xf32> to vector<1x16xf32>
    %cst_51 = arith.constant 5.120000e+02 : f32
    %32 = vector.broadcast %cst_51 : f32 to vector<1x16xf32>
    %33 = arith.divf %31, %32 : vector<1x16xf32>
    %34 = vector.broadcast %33 : vector<1x16xf32> to vector<512x16xf32>
    %35 = arith.subf %29, %34 : vector<512x16xf32>
    %36 = arith.mulf %35, %35 : vector<512x16xf32>
    %cst_52 = arith.constant dense<0.000000e+00> : vector<16xf32>
    %37 = vector.multi_reduction <add>, %36, %cst_52 [0] : vector<512x16xf32> to vector<16xf32>
    %38 = vector.shape_cast %37 : vector<16xf32> to vector<1x16xf32>
    %cst_53 = arith.constant 5.120000e+02 : f32
    %39 = vector.broadcast %cst_53 : f32 to vector<1x16xf32>
    %40 = arith.divf %38, %39 : vector<1x16xf32>
    %c0_54 = arith.constant 0 : index
    %c0_55 = arith.constant 0 : index
    %41 = vector.load %arg3[%c0_54, %c0_55] : memref<1x16xf32, #tpu.memory_space<vmem>>, vector<1x16xf32>
    %cst_56 = arith.constant 9.99999974E-6 : f32
    %42 = vector.broadcast %cst_56 : f32 to vector<1x16xf32>
    %43 = arith.addf %40, %42 : vector<1x16xf32>
    %44 = math.rsqrt %43 : vector<1x16xf32>
    %45 = arith.mulf %41, %44 : vector<1x16xf32>
    %c0_57 = arith.constant 0 : index
    %c0_58 = arith.constant 0 : index
    %46 = vector.load %arg4[%c0_57, %c0_58] : memref<1x16xf32, #tpu.memory_space<vmem>>, vector<1x16xf32>
    %47 = arith.mulf %33, %45 : vector<1x16xf32>
    %48 = arith.subf %46, %47 : vector<1x16xf32>
    %49 = vector.broadcast %45 : vector<1x16xf32> to vector<512x16xf32>
    %50 = arith.mulf %29, %49 : vector<512x16xf32>
    %51 = vector.broadcast %48 : vector<1x16xf32> to vector<512x16xf32>
    %52 = arith.addf %50, %51 : vector<512x16xf32>
    %53 = vector.shape_cast %52 : vector<512x16xf32> to vector<2x8x2x16x16xf32>
    %54 = vector.extract_strided_slice %53 {offsets = [0, 0, 0, 0, 0], sizes = [2, 8, 1, 16, 16], strides = [1, 1, 1, 1, 1]} : vector<2x8x2x16x16xf32> to vector<2x8x1x16x16xf32>
    %55 = vector.shape_cast %54 : vector<2x8x1x16x16xf32> to vector<2x8x16x16xf32>
    %56 = vector.extract_strided_slice %53 {offsets = [0, 0, 1, 0, 0], sizes = [2, 8, 1, 16, 16], strides = [1, 1, 1, 1, 1]} : vector<2x8x2x16x16xf32> to vector<2x8x1x16x16xf32>
    %57 = vector.shape_cast %56 : vector<2x8x1x16x16xf32> to vector<2x8x16x16xf32>
    %58 = arith.maximumf %55, %57 : vector<2x8x16x16xf32>
    %59 = vector.shape_cast %58 : vector<2x8x16x16xf32> to vector<256x16xf32>
    %c0_59 = arith.constant 0 : index
    %c0_60 = arith.constant 0 : index
    %60 = vector.load %arg12[%c0_59, %c0_60] : memref<256x16xf32, #tpu.memory_space<vmem>>, vector<256x16xf32>
    tpu.vector_store %arg12[%c0_59, %c0_60], %59 {strides = array<i32>} : memref<256x16xf32, #tpu.memory_space<vmem>>, vector<256x16xf32>,
    %c0_61 = arith.constant 0 : index
    %c0_62 = arith.constant 0 : index
    %61 = tpu.strided_load %arg12[%c0_61, %c0_62] {strides = array<i32: 2, 1>} : memref<256x16xf32, #tpu.memory_space<vmem>>, vector<128x16xf32>
    %c1_63 = arith.constant 1 : index
    %c0_64 = arith.constant 0 : index
    %62 = tpu.strided_load %arg12[%c1_63, %c0_64] {strides = array<i32: 2, 1>} : memref<256x16xf32, #tpu.memory_space<vmem>>, vector<128x16xf32>
    %63 = arith.maximumf %61, %62 : vector<128x16xf32>
    %cst_65 = arith.constant 0.000000e+00 : f32
    %64 = vector.broadcast %cst_65 : f32 to vector<2x10x10x16xf32>
    %c0_66 = arith.constant 0 : index
    %c0_67 = arith.constant 0 : index
    %c0_68 = arith.constant 0 : index
    %c0_69 = arith.constant 0 : index
    %65 = vector.load %arg11[%c0_66, %c0_67, %c0_68, %c0_69] : memref<2x10x10x16xf32, #tpu.memory_space<vmem>>, vector<2x10x10x16xf32>
    tpu.vector_store %arg11[%c0_66, %c0_67, %c0_68, %c0_69], %64 {strides = array<i32>} : memref<2x10x10x16xf32, #tpu.memory_space<vmem>>, vector<2x10x10x16xf32>,
    %66 = vector.shape_cast %63 : vector<128x16xf32> to vector<2x8x8x16xf32>
    %c0_70 = arith.constant 0 : index
    %c1_71 = arith.constant 1 : index
    %c1_72 = arith.constant 1 : index
    %c0_73 = arith.constant 0 : index
    %67 = vector.load %arg11[%c0_70, %c1_71, %c1_72, %c0_73] : memref<2x10x10x16xf32, #tpu.memory_space<vmem>>, vector<2x8x8x16xf32>
    tpu.vector_store %arg11[%c0_70, %c1_71, %c1_72, %c0_73], %66 {strides = array<i32>} : memref<2x10x10x16xf32, #tpu.memory_space<vmem>>, vector<2x8x8x16xf32>,
    %c0_74 = arith.constant 0 : index
    %c0_75 = arith.constant 0 : index
    %c0_76 = arith.constant 0 : index
    %c0_77 = arith.constant 0 : index
    %68 = vector.load %arg11[%c0_74, %c0_75, %c0_76, %c0_77] : memref<2x10x10x16xf32, #tpu.memory_space<vmem>>, vector<2x8x8x16xf32>
    %69 = vector.shape_cast %68 : vector<2x8x8x16xf32> to vector<128x16xf32>
    %c0_78 = arith.constant 0 : index
    %c0_79 = arith.constant 0 : index
    %c1_80 = arith.constant 1 : index
    %c0_81 = arith.constant 0 : index
    %70 = vector.load %arg11[%c0_78, %c0_79, %c1_80, %c0_81] : memref<2x10x10x16xf32, #tpu.memory_space<vmem>>, vector<2x8x8x16xf32>
    %71 = vector.shape_cast %70 : vector<2x8x8x16xf32> to vector<128x16xf32>
    %c0_82 = arith.constant 0 : index
    %c0_83 = arith.constant 0 : index
    %c2_84 = arith.constant 2 : index
    %c0_85 = arith.constant 0 : index
    %72 = vector.load %arg11[%c0_82, %c0_83, %c2_84, %c0_85] : memref<2x10x10x16xf32, #tpu.memory_space<vmem>>, vector<2x8x8x16xf32>
    %73 = vector.shape_cast %72 : vector<2x8x8x16xf32> to vector<128x16xf32>
    %c0_86 = arith.constant 0 : index
    %c1_87 = arith.constant 1 : index
    %c0_88 = arith.constant 0 : index
    %c0_89 = arith.constant 0 : index
    %74 = vector.load %arg11[%c0_86, %c1_87, %c0_88, %c0_89] : memref<2x10x10x16xf32, #tpu.memory_space<vmem>>, vector<2x8x8x16xf32>
    %75 = vector.shape_cast %74 : vector<2x8x8x16xf32> to vector<128x16xf32>
    %c0_90 = arith.constant 0 : index
    %c1_91 = arith.constant 1 : index
    %c1_92 = arith.constant 1 : index
    %c0_93 = arith.constant 0 : index
    %76 = vector.load %arg11[%c0_90, %c1_91, %c1_92, %c0_93] : memref<2x10x10x16xf32, #tpu.memory_space<vmem>>, vector<2x8x8x16xf32>
    %77 = vector.shape_cast %76 : vector<2x8x8x16xf32> to vector<128x16xf32>
    %c0_94 = arith.constant 0 : index
    %c1_95 = arith.constant 1 : index
    %c2_96 = arith.constant 2 : index
    %c0_97 = arith.constant 0 : index
    %78 = vector.load %arg11[%c0_94, %c1_95, %c2_96, %c0_97] : memref<2x10x10x16xf32, #tpu.memory_space<vmem>>, vector<2x8x8x16xf32>
    %79 = vector.shape_cast %78 : vector<2x8x8x16xf32> to vector<128x16xf32>
    %c0_98 = arith.constant 0 : index
    %c2_99 = arith.constant 2 : index
    %c0_100 = arith.constant 0 : index
    %c0_101 = arith.constant 0 : index
    %80 = vector.load %arg11[%c0_98, %c2_99, %c0_100, %c0_101] : memref<2x10x10x16xf32, #tpu.memory_space<vmem>>, vector<2x8x8x16xf32>
    %81 = vector.shape_cast %80 : vector<2x8x8x16xf32> to vector<128x16xf32>
    %c0_102 = arith.constant 0 : index
    %c2_103 = arith.constant 2 : index
    %c1_104 = arith.constant 1 : index
    %c0_105 = arith.constant 0 : index
    %82 = vector.load %arg11[%c0_102, %c2_103, %c1_104, %c0_105] : memref<2x10x10x16xf32, #tpu.memory_space<vmem>>, vector<2x8x8x16xf32>
    %83 = vector.shape_cast %82 : vector<2x8x8x16xf32> to vector<128x16xf32>
    %c0_106 = arith.constant 0 : index
    %c2_107 = arith.constant 2 : index
    %c2_108 = arith.constant 2 : index
    %c0_109 = arith.constant 0 : index
    %84 = vector.load %arg11[%c0_106, %c2_107, %c2_108, %c0_109] : memref<2x10x10x16xf32, #tpu.memory_space<vmem>>, vector<2x8x8x16xf32>
    %85 = vector.shape_cast %84 : vector<2x8x8x16xf32> to vector<128x16xf32>
    %86 = tpu.concatenate %69, %71, %73, %75, %77, %79, %81, %83, %85 in 1 : vector<128x16xf32>, vector<128x16xf32>, vector<128x16xf32>, vector<128x16xf32>, vector<128x16xf32>, vector<128x16xf32>, vector<128x16xf32>, vector<128x16xf32>, vector<128x16xf32> -> vector<128x144xf32>
    %87 = arith.truncf %86 : vector<128x144xf32> to vector<128x144xbf16>
    %c0_110 = arith.constant 0 : index
    %c0_111 = arith.constant 0 : index
    %88 = vector.load %arg5[%c0_110, %c0_111] : memref<144x32xbf16, #tpu.memory_space<vmem>>, vector<144x32xbf16>
    %cst_112 = arith.constant dense<0.000000e+00> : vector<128x32xf32>
    %89 = tpu.matmul %87, %88, %cst_112 {dimension_numbers = #tpu.dot_dimension_numbers<[1], [0], [0], [1], [0, 0, 1, 1], [], []>} : vector<128x144xbf16>, vector<144x32xbf16>, vector<128x32xf32> -> vector<128x32xf32>
    %c0_113 = arith.constant 0 : index
    %c0_114 = arith.constant 0 : index
    %90 = vector.load %arg6[%c0_113, %c0_114] : memref<1x32xf32, #tpu.memory_space<vmem>>, vector<1x32xf32>
    %91 = vector.broadcast %90 : vector<1x32xf32> to vector<128x32xf32>
    %92 = arith.addf %89, %91 : vector<128x32xf32>
    %cst_115 = arith.constant dense<0.000000e+00> : vector<32xf32>
    %93 = vector.multi_reduction <add>, %92, %cst_115 [0] : vector<128x32xf32> to vector<32xf32>
    %94 = vector.shape_cast %93 : vector<32xf32> to vector<1x32xf32>
    %cst_116 = arith.constant 1.280000e+02 : f32
    %95 = vector.broadcast %cst_116 : f32 to vector<1x32xf32>
    %96 = arith.divf %94, %95 : vector<1x32xf32>
    %97 = vector.broadcast %96 : vector<1x32xf32> to vector<128x32xf32>
    %98 = arith.subf %92, %97 : vector<128x32xf32>
    %99 = arith.mulf %98, %98 : vector<128x32xf32>
    %cst_117 = arith.constant dense<0.000000e+00> : vector<32xf32>
    %100 = vector.multi_reduction <add>, %99, %cst_117 [0] : vector<128x32xf32> to vector<32xf32>
    %101 = vector.shape_cast %100 : vector<32xf32> to vector<1x32xf32>
    %cst_118 = arith.constant 1.280000e+02 : f32
    %102 = vector.broadcast %cst_118 : f32 to vector<1x32xf32>
    %103 = arith.divf %101, %102 : vector<1x32xf32>
    %c0_119 = arith.constant 0 : index
    %c0_120 = arith.constant 0 : index
    %104 = vector.load %arg7[%c0_119, %c0_120] : memref<1x32xf32, #tpu.memory_space<vmem>>, vector<1x32xf32>
    %cst_121 = arith.constant 9.99999974E-6 : f32
    %105 = vector.broadcast %cst_121 : f32 to vector<1x32xf32>
    %106 = arith.addf %103, %105 : vector<1x32xf32>
    %107 = math.rsqrt %106 : vector<1x32xf32>
    %108 = arith.mulf %104, %107 : vector<1x32xf32>
    %c0_122 = arith.constant 0 : index
    %c0_123 = arith.constant 0 : index
    %109 = vector.load %arg8[%c0_122, %c0_123] : memref<1x32xf32, #tpu.memory_space<vmem>>, vector<1x32xf32>
    %110 = arith.mulf %96, %108 : vector<1x32xf32>
    %111 = arith.subf %109, %110 : vector<1x32xf32>
    %112 = vector.broadcast %108 : vector<1x32xf32> to vector<128x32xf32>
    %113 = arith.mulf %92, %112 : vector<128x32xf32>
    %114 = vector.broadcast %111 : vector<1x32xf32> to vector<128x32xf32>
    %115 = arith.addf %113, %114 : vector<128x32xf32>
    %116 = vector.shape_cast %115 : vector<128x32xf32> to vector<2x4x2x8x32xf32>
    %117 = vector.extract_strided_slice %116 {offsets = [0, 0, 0, 0, 0], sizes = [2, 4, 1, 8, 32], strides = [1, 1, 1, 1, 1]} : vector<2x4x2x8x32xf32> to vector<2x4x1x8x32xf32>
    %118 = vector.shape_cast %117 : vector<2x4x1x8x32xf32> to vector<2x4x8x32xf32>
    %119 = vector.extract_strided_slice %116 {offsets = [0, 0, 1, 0, 0], sizes = [2, 4, 1, 8, 32], strides = [1, 1, 1, 1, 1]} : vector<2x4x2x8x32xf32> to vector<2x4x1x8x32xf32>
    %120 = vector.shape_cast %119 : vector<2x4x1x8x32xf32> to vector<2x4x8x32xf32>
    %121 = arith.maximumf %118, %120 : vector<2x4x8x32xf32>
    %122 = vector.shape_cast %121 : vector<2x4x8x32xf32> to vector<64x32xf32>
    %c0_124 = arith.constant 0 : index
    %c0_125 = arith.constant 0 : index
    %123 = vector.load %arg13[%c0_124, %c0_125] : memref<64x32xf32, #tpu.memory_space<vmem>>, vector<64x32xf32>
    tpu.vector_store %arg13[%c0_124, %c0_125], %122 {strides = array<i32>} : memref<64x32xf32, #tpu.memory_space<vmem>>, vector<64x32xf32>,
    %c0_126 = arith.constant 0 : index
    %c0_127 = arith.constant 0 : index
    %124 = tpu.strided_load %arg13[%c0_126, %c0_127] {strides = array<i32: 2, 1>} : memref<64x32xf32, #tpu.memory_space<vmem>>, vector<32x32xf32>
    %c1_128 = arith.constant 1 : index
    %c0_129 = arith.constant 0 : index
    %125 = tpu.strided_load %arg13[%c1_128, %c0_129] {strides = array<i32: 2, 1>} : memref<64x32xf32, #tpu.memory_space<vmem>>, vector<32x32xf32>
    %126 = arith.maximumf %124, %125 : vector<32x32xf32>
    %c0_130 = arith.constant 0 : index
    %c0_131 = arith.constant 0 : index
    %127 = vector.load %arg9[%c0_130, %c0_131] : memref<32x32xf32, #tpu.memory_space<vmem>>, vector<32x32xf32>
    tpu.vector_store %arg9[%c0_130, %c0_131], %126 {strides = array<i32>} : memref<32x32xf32, #tpu.memory_space<vmem>>, vector<32x32xf32>,
    return
  }
}

</mosaic_0001>

<llo_original>
// kernel: shallow_cnn_forward.1
$region0: #{shallow_cnn_forward.1}
  #allocation0 [shape = 'u32[]', space=smem, size = 0x4, offset = 0x4, fixed_abs, tag = 'smem constant byte address 0x4 - core index']
  #allocation1 [shape = 'u32[144,128]{1,0:T(1,128)}', space=vmem, size = 0x12000, scoped, tag = 'internal scratch']
  #allocation2 [shape = 'f32[2,18,18,4]{3,2,1,0:T(8,128)}', space=vmem, size = 0x6c000, scoped, tag = 'scratch operand']
  #allocation3 [shape = 'f32[2,10,10,16]{3,2,1,0:T(8,128)}', space=vmem, size = 0x28000, scoped, tag = 'scratch operand']
  #allocation4 [shape = 'f32[256,16]{1,0:T(8,128)}', space=vmem, size = 0x20000, scoped, tag = 'scratch operand']
  #allocation5 [shape = 'f32[64,32]{1,0:T(8,128)}', space=vmem, size = 0x8000, scoped, tag = 'scratch operand']
  %s0 = inlined_call_operand.vmem [shape: bf16[2,16,16,4], index: 0, kind: input, shape index: {}]
  %s1 = inlined_call_operand.vmem [shape: bf16[36,16], index: 1, kind: input, shape index: {}]
  %s2 = inlined_call_operand.vmem [shape: f32[1,16], index: 2, kind: input, shape index: {}]
  %s3 = inlined_call_operand.vmem [shape: f32[1,16], index: 3, kind: input, shape index: {}]
  %s4 = inlined_call_operand.vmem [shape: f32[1,16], index: 4, kind: input, shape index: {}]
  %s5 = inlined_call_operand.vmem [shape: bf16[144,32], index: 5, kind: input, shape index: {}]
  %s6 = inlined_call_operand.vmem [shape: f32[1,32], index: 6, kind: input, shape index: {}]
  %s7 = inlined_call_operand.vmem [shape: f32[1,32], index: 7, kind: input, shape index: {}]
  %s8 = inlined_call_operand.vmem [shape: f32[1,32], index: 8, kind: input, shape index: {}]
  %s9 = inlined_call_operand.hbm [shape: f32[32,32], index: 9, kind: output, shape index: {}]
  %s10 = sld [smem:[#allocation0]]
  $region46: #{shallow_cnn_forward.1} parent=0
    _
  %s12 = ssub.s32 1, %s10
  %s13 = scalar_select 0, %s12, %s10
  $region1: #{shallow_cnn_forward.1} parent=0
    #allocation6 [shape = 'u8[16384]{0}', space=vmem, size = 0x4000, scoped, tag = 'output window, operand 0, single buffered']
    #allocation7 [shape = 's32[1]{0}', space=sflag, size = 0x4, scoped, tag = 'scoped memory for shallow_cnn_forward.1']
    %14 = vsyncpa [#allocation7], 0
    // Predicated region
    $region2: #{shallow_cnn_forward.1} parent=1 // pred_check
      _
    $region3: #{shallow_cnn_forward.1} parent=1 // pred_check_branch
      %16 = sbr.rel (0) target = $region5
    $region4: #{shallow_cnn_forward.1} parent=1 // pred_region
      _
    $region5: #{shallow_cnn_forward.1} parent=1 // pred_fallthru
      _
    // Predicated region
    $region6: #{shallow_cnn_forward.1} parent=1 // pred_check
      _
    $region7: #{shallow_cnn_forward.1} parent=1 // pred_check_branch
      %18 = sbr.rel (0) target = $region9
    $region8: #{shallow_cnn_forward.1} parent=1 // pred_region
      _
    $region9: #{shallow_cnn_forward.1} parent=1 // pred_fallthru
      _
    // Predicated region
    $region10: #{shallow_cnn_forward.1} parent=1 // pred_check
      _
    $region11: #{shallow_cnn_forward.1} parent=1 // pred_check_branch
      %20 = sbr.rel (0) target = $region13
    $region12: #{shallow_cnn_forward.1} parent=1 // pred_region
      _
    $region13: #{shallow_cnn_forward.1} parent=1 // pred_fallthru
      _
    // Predicated region
    $region14: #{shallow_cnn_forward.1} parent=1 // pred_check
      _
    $region15: #{shallow_cnn_forward.1} parent=1 // pred_check_branch
      %22 = sbr.rel (0) target = $region17
    $region16: #{shallow_cnn_forward.1} parent=1 // pred_region
      _
    $region17: #{shallow_cnn_forward.1} parent=1 // pred_fallthru
      _
    // Predicated region
    $region18: #{shallow_cnn_forward.1} parent=1 // pred_check
      _
    $region19: #{shallow_cnn_forward.1} parent=1 // pred_check_branch
      %24 = sbr.rel (0) target = $region21
    $region20: #{shallow_cnn_forward.1} parent=1 // pred_region
      _
    $region21: #{shallow_cnn_forward.1} parent=1 // pred_fallthru
      _
    // Predicated region
    $region22: #{shallow_cnn_forward.1} parent=1 // pred_check
      _
    $region23: #{shallow_cnn_forward.1} parent=1 // pred_check_branch
      %26 = sbr.rel (0) target = $region25
    $region24: #{shallow_cnn_forward.1} parent=1 // pred_region
      _
    $region25: #{shallow_cnn_forward.1} parent=1 // pred_fallthru
      _
    // Predicated region
    $region26: #{shallow_cnn_forward.1} parent=1 // pred_check
      _
    $region27: #{shallow_cnn_forward.1} parent=1 // pred_check_branch
      %28 = sbr.rel (0) target = $region29
    $region28: #{shallow_cnn_forward.1} parent=1 // pred_region
      _
    $region29: #{shallow_cnn_forward.1} parent=1 // pred_fallthru
      _
    // Predicated region
    $region30: #{shallow_cnn_forward.1} parent=1 // pred_check
      _
    $region31: #{shallow_cnn_forward.1} parent=1 // pred_check_branch
      %30 = sbr.rel (0) target = $region33
    $region32: #{shallow_cnn_forward.1} parent=1 // pred_region
      _
    $region33: #{shallow_cnn_forward.1} parent=1 // pred_fallthru
      _
    // Predicated region
    $region34: #{shallow_cnn_forward.1} parent=1 // pred_check
      _
    $region35: #{shallow_cnn_forward.1} parent=1 // pred_check_branch
      %32 = sbr.rel (0) target = $region37
    $region36: #{shallow_cnn_forward.1} parent=1 // pred_region
      _
    $region37: #{shallow_cnn_forward.1} parent=1 // pred_fallthru
      _
    %vm34 = vcmask 31744
    %35 = vst.msk [vmem:[#allocation2] sm:$0xff] %vm34, 0.0
    %36 = vst.msk [vmem:[#allocation2 + $0x8] sm:$0xff] %vm34, 0.0
    %vm37 = vcmask 25600
    %38 = vst.msk [vmem:[#allocation2 + $0x10] sm:$0x3] %vm37, 0.0
    %39 = vst.msk [vmem:[#allocation2 + $0x18] sm:$0xff] %vm34, 0.0
    %40 = vst.msk [vmem:[#allocation2 + $0x20] sm:$0xff] %vm34, 0.0
    %41 = vst.msk [vmem:[#allocation2 + $0x28] sm:$0x3] %vm37, 0.0
    %42 = vst.msk [vmem:[#allocation2 + $0x30] sm:$0xff] %vm34, 0.0
    %43 = vst.msk [vmem:[#allocation2 + $0x38] sm:$0xff] %vm34, 0.0
    %44 = vst.msk [vmem:[#allocation2 + $0x40] sm:$0x3] %vm37, 0.0
    %45 = vst.msk [vmem:[#allocation2 + $0x48] sm:$0xff] %vm34, 0.0
    %46 = vst.msk [vmem:[#allocation2 + $0x50] sm:$0xff] %vm34, 0.0
    %47 = vst.msk [vmem:[#allocation2 + $0x58] sm:$0x3] %vm37, 0.0
    %48 = vst.msk [vmem:[#allocation2 + $0x60] sm:$0xff] %vm34, 0.0
    %49 = vst.msk [vmem:[#allocation2 + $0x68] sm:$0xff] %vm34, 0.0
    %50 = vst.msk [vmem:[#allocation2 + $0x70] sm:$0x3] %vm37, 0.0
    %51 = vst.msk [vmem:[#allocation2 + $0x78] sm:$0xff] %vm34, 0.0
    %52 = vst.msk [vmem:[#allocation2 + $0x80] sm:$0xff] %vm34, 0.0
    %53 = vst.msk [vmem:[#allocation2 + $0x88] sm:$0x3] %vm37, 0.0
    %54 = vst.msk [vmem:[#allocation2 + $0x90] sm:$0xff] %vm34, 0.0
    %55 = vst.msk [vmem:[#allocation2 + $0x98] sm:$0xff] %vm34, 0.0
    %56 = vst.msk [vmem:[#allocation2 + $0xa0] sm:$0x3] %vm37, 0.0
    %57 = vst.msk [vmem:[#allocation2 + $0xa8] sm:$0xff] %vm34, 0.0
    %58 = vst.msk [vmem:[#allocation2 + $0xb0] sm:$0xff] %vm34, 0.0
    %59 = vst.msk [vmem:[#allocation2 + $0xb8] sm:$0x3] %vm37, 0.0
    %60 = vst.msk [vmem:[#allocation2 + $0xc0] sm:$0xff] %vm34, 0.0
    %61 = vst.msk [vmem:[#allocation2 + $0xc8] sm:$0xff] %vm34, 0.0
    %62 = vst.msk [vmem:[#allocation2 + $0xd0] sm:$0x3] %vm37, 0.0
    %63 = vst.msk [vmem:[#allocation2 + $0xd8] sm:$0xff] %vm34, 0.0
    %64 = vst.msk [vmem:[#allocation2 + $0xe0] sm:$0xff] %vm34, 0.0
    %65 = vst.msk [vmem:[#allocation2 + $0xe8] sm:$0x3] %vm37, 0.0
    %66 = vst.msk [vmem:[#allocation2 + $0xf0] sm:$0xff] %vm34, 0.0
    %67 = vst.msk [vmem:[#allocation2 + $0xf8] sm:$0xff] %vm34, 0.0
    %68 = vst.msk [vmem:[#allocation2 + $0x100] sm:$0x3] %vm37, 0.0
    %69 = vst.msk [vmem:[#allocation2 + $0x108] sm:$0xff] %vm34, 0.0
    %70 = vst.msk [vmem:[#allocation2 + $0x110] sm:$0xff] %vm34, 0.0
    %71 = vst.msk [vmem:[#allocation2 + $0x118] sm:$0x3] %vm37, 0.0
    %72 = vst.msk [vmem:[#allocation2 + $0x120] sm:$0xff] %vm34, 0.0
    %73 = vst.msk [vmem:[#allocation2 + $0x128] sm:$0xff] %vm34, 0.0
    %74 = vst.msk [vmem:[#allocation2 + $0x130] sm:$0x3] %vm37, 0.0
    %75 = vst.msk [vmem:[#allocation2 + $0x138] sm:$0xff] %vm34, 0.0
    %76 = vst.msk [vmem:[#allocation2 + $0x140] sm:$0xff] %vm34, 0.0
    %77 = vst.msk [vmem:[#allocation2 + $0x148] sm:$0x3] %vm37, 0.0
    %78 = vst.msk [vmem:[#allocation2 + $0x150] sm:$0xff] %vm34, 0.0
    %79 = vst.msk [vmem:[#allocation2 + $0x158] sm:$0xff] %vm34, 0.0
    %80 = vst.msk [vmem:[#allocation2 + $0x160] sm:$0x3] %vm37, 0.0
    %81 = vst.msk [vmem:[#allocation2 + $0x168] sm:$0xff] %vm34, 0.0
    %82 = vst.msk [vmem:[#allocation2 + $0x170] sm:$0xff] %vm34, 0.0
    %83 = vst.msk [vmem:[#allocation2 + $0x178] sm:$0x3] %vm37, 0.0
    %84 = vst.msk [vmem:[#allocation2 + $0x180] sm:$0xff] %vm34, 0.0
    %85 = vst.msk [vmem:[#allocation2 + $0x188] sm:$0xff] %vm34, 0.0
    %86 = vst.msk [vmem:[#allocation2 + $0x190] sm:$0x3] %vm37, 0.0
    %87 = vst.msk [vmem:[#allocation2 + $0x198] sm:$0xff] %vm34, 0.0
    %88 = vst.msk [vmem:[#allocation2 + $0x1a0] sm:$0xff] %vm34, 0.0
    %89 = vst.msk [vmem:[#allocation2 + $0x1a8] sm:$0x3] %vm37, 0.0
    %90 = vst.msk [vmem:[#allocation2 + $0x1b0] sm:$0xff] %vm34, 0.0
    %91 = vst.msk [vmem:[#allocation2 + $0x1b8] sm:$0xff] %vm34, 0.0
    %92 = vst.msk [vmem:[#allocation2 + $0x1c0] sm:$0x3] %vm37, 0.0
    %93 = vst.msk [vmem:[#allocation2 + $0x1c8] sm:$0xff] %vm34, 0.0
    %94 = vst.msk [vmem:[#allocation2 + $0x1d0] sm:$0xff] %vm34, 0.0
    %95 = vst.msk [vmem:[#allocation2 + $0x1d8] sm:$0x3] %vm37, 0.0
    %96 = vst.msk [vmem:[#allocation2 + $0x1e0] sm:$0xff] %vm34, 0.0
    %97 = vst.msk [vmem:[#allocation2 + $0x1e8] sm:$0xff] %vm34, 0.0
    %98 = vst.msk [vmem:[#allocation2 + $0x1f0] sm:$0x3] %vm37, 0.0
    %99 = vst.msk [vmem:[#allocation2 + $0x1f8] sm:$0xff] %vm34, 0.0
    %100 = vst.msk [vmem:[#allocation2 + $0x200] sm:$0xff] %vm34, 0.0
    %101 = vst.msk [vmem:[#allocation2 + $0x208] sm:$0x3] %vm37, 0.0
    %102 = vst.msk [vmem:[#allocation2 + $0x210] sm:$0xff] %vm34, 0.0
    %103 = vst.msk [vmem:[#allocation2 + $0x218] sm:$0xff] %vm34, 0.0
    %104 = vst.msk [vmem:[#allocation2 + $0x220] sm:$0x3] %vm37, 0.0
    %105 = vst.msk [vmem:[#allocation2 + $0x228] sm:$0xff] %vm34, 0.0
    %106 = vst.msk [vmem:[#allocation2 + $0x230] sm:$0xff] %vm34, 0.0
    %107 = vst.msk [vmem:[#allocation2 + $0x238] sm:$0x3] %vm37, 0.0
    %108 = vst.msk [vmem:[#allocation2 + $0x240] sm:$0xff] %vm34, 0.0
    %109 = vst.msk [vmem:[#allocation2 + $0x248] sm:$0xff] %vm34, 0.0
    %110 = vst.msk [vmem:[#allocation2 + $0x250] sm:$0x3] %vm37, 0.0
    %111 = vst.msk [vmem:[#allocation2 + $0x258] sm:$0xff] %vm34, 0.0
    %112 = vst.msk [vmem:[#allocation2 + $0x260] sm:$0xff] %vm34, 0.0
    %113 = vst.msk [vmem:[#allocation2 + $0x268] sm:$0x3] %vm37, 0.0
    %114 = vst.msk [vmem:[#allocation2 + $0x270] sm:$0xff] %vm34, 0.0
    %115 = vst.msk [vmem:[#allocation2 + $0x278] sm:$0xff] %vm34, 0.0
    %116 = vst.msk [vmem:[#allocation2 + $0x280] sm:$0x3] %vm37, 0.0
    %117 = vst.msk [vmem:[#allocation2 + $0x288] sm:$0xff] %vm34, 0.0
    %118 = vst.msk [vmem:[#allocation2 + $0x290] sm:$0xff] %vm34, 0.0
    %119 = vst.msk [vmem:[#allocation2 + $0x298] sm:$0x3] %vm37, 0.0
    %120 = vst.msk [vmem:[#allocation2 + $0x2a0] sm:$0xff] %vm34, 0.0
    %121 = vst.msk [vmem:[#allocation2 + $0x2a8] sm:$0xff] %vm34, 0.0
    %122 = vst.msk [vmem:[#allocation2 + $0x2b0] sm:$0x3] %vm37, 0.0
    %123 = vst.msk [vmem:[#allocation2 + $0x2b8] sm:$0xff] %vm34, 0.0
    %124 = vst.msk [vmem:[#allocation2 + $0x2c0] sm:$0xff] %vm34, 0.0
    %125 = vst.msk [vmem:[#allocation2 + $0x2c8] sm:$0x3] %vm37, 0.0
    %126 = vst.msk [vmem:[#allocation2 + $0x2d0] sm:$0xff] %vm34, 0.0
    %127 = vst.msk [vmem:[#allocation2 + $0x2d8] sm:$0xff] %vm34, 0.0
    %128 = vst.msk [vmem:[#allocation2 + $0x2e0] sm:$0x3] %vm37, 0.0
    %129 = vst.msk [vmem:[#allocation2 + $0x2e8] sm:$0xff] %vm34, 0.0
    %130 = vst.msk [vmem:[#allocation2 + $0x2f0] sm:$0xff] %vm34, 0.0
    %131 = vst.msk [vmem:[#allocation2 + $0x2f8] sm:$0x3] %vm37, 0.0
    %132 = vst.msk [vmem:[#allocation2 + $0x300] sm:$0xff] %vm34, 0.0
    %133 = vst.msk [vmem:[#allocation2 + $0x308] sm:$0xff] %vm34, 0.0
    %134 = vst.msk [vmem:[#allocation2 + $0x310] sm:$0x3] %vm37, 0.0
    %135 = vst.msk [vmem:[#allocation2 + $0x318] sm:$0xff] %vm34, 0.0
    %136 = vst.msk [vmem:[#allocation2 + $0x320] sm:$0xff] %vm34, 0.0
    %137 = vst.msk [vmem:[#allocation2 + $0x328] sm:$0x3] %vm37, 0.0
    %138 = vst.msk [vmem:[#allocation2 + $0x330] sm:$0xff] %vm34, 0.0
    %139 = vst.msk [vmem:[#allocation2 + $0x338] sm:$0xff] %vm34, 0.0
    %140 = vst.msk [vmem:[#allocation2 + $0x340] sm:$0x3] %vm37, 0.0
    %141 = vst.msk [vmem:[#allocation2 + $0x348] sm:$0xff] %vm34, 0.0
    %142 = vst.msk [vmem:[#allocation2 + $0x350] sm:$0xff] %vm34, 0.0
    %143 = vst.msk [vmem:[#allocation2 + $0x358] sm:$0x3] %vm37, 0.0
    %v144 = vld [vmem:[%s0] sm:$0xf]
    %v145 = vld [vmem:[%s0 + $0x4] sm:$0xf]
    %v146 = vld [vmem:[%s0 + $0x8] sm:$0xf]
    %v147 = vld [vmem:[%s0 + $0xc] sm:$0xf]
    %v148 = vld [vmem:[%s0 + $0x10] sm:$0xf]
    %v149 = vld [vmem:[%s0 + $0x14] sm:$0xf]
    %v150 = vld [vmem:[%s0 + $0x18] sm:$0xf]
    %v151 = vld [vmem:[%s0 + $0x1c] sm:$0xf]
    %v152 = vld [vmem:[%s0 + $0x20] sm:$0xf]
    %v153 = vld [vmem:[%s0 + $0x24] sm:$0xf]
    %v154 = vld [vmem:[%s0 + $0x28] sm:$0xf]
    %v155 = vld [vmem:[%s0 + $0x2c] sm:$0xf]
    %v156 = vld [vmem:[%s0 + $0x30] sm:$0xf]
    %v157 = vld [vmem:[%s0 + $0x34] sm:$0xf]
    %v158 = vld [vmem:[%s0 + $0x38] sm:$0xf]
    %v159 = vld [vmem:[%s0 + $0x3c] sm:$0xf]
    %v160 = vld [vmem:[%s0 + $0x40] sm:$0xf]
    %v161 = vld [vmem:[%s0 + $0x44] sm:$0xf]
    %v162 = vld [vmem:[%s0 + $0x48] sm:$0xf]
    %v163 = vld [vmem:[%s0 + $0x4c] sm:$0xf]
    %v164 = vld [vmem:[%s0 + $0x50] sm:$0xf]
    %v165 = vld [vmem:[%s0 + $0x54] sm:$0xf]
    %v166 = vld [vmem:[%s0 + $0x58] sm:$0xf]
    %v167 = vld [vmem:[%s0 + $0x5c] sm:$0xf]
    %v168 = vld [vmem:[%s0 + $0x60] sm:$0xf]
    %v169 = vld [vmem:[%s0 + $0x64] sm:$0xf]
    %v170 = vld [vmem:[%s0 + $0x68] sm:$0xf]
    %v171 = vld [vmem:[%s0 + $0x6c] sm:$0xf]
    %v172 = vld [vmem:[%s0 + $0x70] sm:$0xf]
    %v173 = vld [vmem:[%s0 + $0x74] sm:$0xf]
    %v174 = vld [vmem:[%s0 + $0x78] sm:$0xf]
    %v175 = vld [vmem:[%s0 + $0x7c] sm:$0xf]
    %v176 = vld [vmem:[%s0 + $0x80] sm:$0xf]
    %v177 = vld [vmem:[%s0 + $0x84] sm:$0xf]
    %v178 = vld [vmem:[%s0 + $0x88] sm:$0xf]
    %v179 = vld [vmem:[%s0 + $0x8c] sm:$0xf]
    %v180 = vld [vmem:[%s0 + $0x90] sm:$0xf]
    %v181 = vld [vmem:[%s0 + $0x94] sm:$0xf]
    %v182 = vld [vmem:[%s0 + $0x98] sm:$0xf]
    %v183 = vld [vmem:[%s0 + $0x9c] sm:$0xf]
    %v184 = vld [vmem:[%s0 + $0xa0] sm:$0xf]
    %v185 = vld [vmem:[%s0 + $0xa4] sm:$0xf]
    %v186 = vld [vmem:[%s0 + $0xa8] sm:$0xf]
    %v187 = vld [vmem:[%s0 + $0xac] sm:$0xf]
    %v188 = vld [vmem:[%s0 + $0xb0] sm:$0xf]
    %v189 = vld [vmem:[%s0 + $0xb4] sm:$0xf]
    %v190 = vld [vmem:[%s0 + $0xb8] sm:$0xf]
    %v191 = vld [vmem:[%s0 + $0xbc] sm:$0xf]
    %v192 = vld [vmem:[%s0 + $0xc0] sm:$0xf]
    %v193 = vld [vmem:[%s0 + $0xc4] sm:$0xf]
    %v194 = vld [vmem:[%s0 + $0xc8] sm:$0xf]
    %v195 = vld [vmem:[%s0 + $0xcc] sm:$0xf]
    %v196 = vld [vmem:[%s0 + $0xd0] sm:$0xf]
    %v197 = vld [vmem:[%s0 + $0xd4] sm:$0xf]
    %v198 = vld [vmem:[%s0 + $0xd8] sm:$0xf]
    %v199 = vld [vmem:[%s0 + $0xdc] sm:$0xf]
    %v200 = vld [vmem:[%s0 + $0xe0] sm:$0xf]
    %v201 = vld [vmem:[%s0 + $0xe4] sm:$0xf]
    %v202 = vld [vmem:[%s0 + $0xe8] sm:$0xf]
    %v203 = vld [vmem:[%s0 + $0xec] sm:$0xf]
    %v204 = vld [vmem:[%s0 + $0xf0] sm:$0xf]
    %v205 = vld [vmem:[%s0 + $0xf4] sm:$0xf]
    %v206 = vld [vmem:[%s0 + $0xf8] sm:$0xf]
    %v207 = vld [vmem:[%s0 + $0xfc] sm:$0xf]
    %v208 = vunpack.c.l.bf16 %v144
    %v209 = vunpack.c.l.bf16 %v145
    %v210 = vunpack.c.l.bf16 %v146
    %v211 = vunpack.c.l.bf16 %v147
    %v212 = vunpack.c.l.bf16 %v148
    %v213 = vunpack.c.l.bf16 %v149
    %v214 = vunpack.c.l.bf16 %v150
    %v215 = vunpack.c.l.bf16 %v151
    %v216 = vunpack.c.l.bf16 %v152
    %v217 = vunpack.c.l.bf16 %v153
    %v218 = vunpack.c.l.bf16 %v154
    %v219 = vunpack.c.l.bf16 %v155
    %v220 = vunpack.c.l.bf16 %v156
    %v221 = vunpack.c.l.bf16 %v157
    %v222 = vunpack.c.l.bf16 %v158
    %v223 = vunpack.c.l.bf16 %v159
    %v224 = vunpack.c.l.bf16 %v160
    %v225 = vunpack.c.l.bf16 %v161
    %v226 = vunpack.c.l.bf16 %v162
    %v227 = vunpack.c.l.bf16 %v163
    %v228 = vunpack.c.l.bf16 %v164
    %v229 = vunpack.c.l.bf16 %v165
    %v230 = vunpack.c.l.bf16 %v166
    %v231 = vunpack.c.l.bf16 %v167
    %v232 = vunpack.c.l.bf16 %v168
    %v233 = vunpack.c.l.bf16 %v169
    %v234 = vunpack.c.l.bf16 %v170
    %v235 = vunpack.c.l.bf16 %v171
    %v236 = vunpack.c.l.bf16 %v172
    %v237 = vunpack.c.l.bf16 %v173
    %v238 = vunpack.c.l.bf16 %v174
    %v239 = vunpack.c.l.bf16 %v175
    %v240 = vunpack.c.l.bf16 %v176
    %v241 = vunpack.c.l.bf16 %v177
    %v242 = vunpack.c.l.bf16 %v178
    %v243 = vunpack.c.l.bf16 %v179
    %v244 = vunpack.c.l.bf16 %v180
    %v245 = vunpack.c.l.bf16 %v181
    %v246 = vunpack.c.l.bf16 %v182
    %v247 = vunpack.c.l.bf16 %v183
    %v248 = vunpack.c.l.bf16 %v184
    %v249 = vunpack.c.l.bf16 %v185
    %v250 = vunpack.c.l.bf16 %v186
    %v251 = vunpack.c.l.bf16 %v187
    %v252 = vunpack.c.l.bf16 %v188
    %v253 = vunpack.c.l.bf16 %v189
    %v254 = vunpack.c.l.bf16 %v190
    %v255 = vunpack.c.l.bf16 %v191
    %v256 = vunpack.c.l.bf16 %v192
    %v257 = vunpack.c.l.bf16 %v193
    %v258 = vunpack.c.l.bf16 %v194
    %v259 = vunpack.c.l.bf16 %v195
    %v260 = vunpack.c.l.bf16 %v196
    %v261 = vunpack.c.l.bf16 %v197
    %v262 = vunpack.c.l.bf16 %v198
    %v263 = vunpack.c.l.bf16 %v199
    %v264 = vunpack.c.l.bf16 %v200
    %v265 = vunpack.c.l.bf16 %v201
    %v266 = vunpack.c.l.bf16 %v202
    %v267 = vunpack.c.l.bf16 %v203
    %v268 = vunpack.c.l.bf16 %v204
    %v269 = vunpack.c.l.bf16 %v205
    %v270 = vunpack.c.l.bf16 %v206
    %v271 = vunpack.c.l.bf16 %v207
    %s272 = scalar_lea.vmem [#allocation2], 24
    %273 = vst.msk [vmem:[%s272 + $0x1] sm:$0xff] %vm34, %v208
    %274 = vst.msk [vmem:[%s272 + $0x9] sm:$0xff] %vm34, %v209
    %275 = vst.msk [vmem:[%s272 + $0x19] sm:$0xff] %vm34, %v210
    %276 = vst.msk [vmem:[%s272 + $0x21] sm:$0xff] %vm34, %v211
    %277 = vst.msk [vmem:[%s272 + $0x31] sm:$0xff] %vm34, %v212
    %278 = vst.msk [vmem:[%s272 + $0x39] sm:$0xff] %vm34, %v213
    %279 = vst.msk [vmem:[%s272 + $0x49] sm:$0xff] %vm34, %v214
    %280 = vst.msk [vmem:[%s272 + $0x51] sm:$0xff] %vm34, %v215
    %281 = vst.msk [vmem:[%s272 + $0x61] sm:$0xff] %vm34, %v216
    %282 = vst.msk [vmem:[%s272 + $0x69] sm:$0xff] %vm34, %v217
    %283 = vst.msk [vmem:[%s272 + $0x79] sm:$0xff] %vm34, %v218
    %284 = vst.msk [vmem:[%s272 + $0x81] sm:$0xff] %vm34, %v219
    %285 = vst.msk [vmem:[%s272 + $0x91] sm:$0xff] %vm34, %v220
    %286 = vst.msk [vmem:[%s272 + $0x99] sm:$0xff] %vm34, %v221
    %287 = vst.msk [vmem:[%s272 + $0xa9] sm:$0xff] %vm34, %v222
    %288 = vst.msk [vmem:[%s272 + $0xb1] sm:$0xff] %vm34, %v223
    %289 = vst.msk [vmem:[%s272 + $0xc1] sm:$0xff] %vm34, %v224
    %290 = vst.msk [vmem:[%s272 + $0xc9] sm:$0xff] %vm34, %v225
    %291 = vst.msk [vmem:[%s272 + $0xd9] sm:$0xff] %vm34, %v226
    %292 = vst.msk [vmem:[%s272 + $0xe1] sm:$0xff] %vm34, %v227
    %293 = vst.msk [vmem:[%s272 + $0xf1] sm:$0xff] %vm34, %v228
    %294 = vst.msk [vmem:[%s272 + $0xf9] sm:$0xff] %vm34, %v229
    %295 = vst.msk [vmem:[%s272 + $0x109] sm:$0xff] %vm34, %v230
    %296 = vst.msk [vmem:[%s272 + $0x111] sm:$0xff] %vm34, %v231
    %297 = vst.msk [vmem:[%s272 + $0x121] sm:$0xff] %vm34, %v232
    %298 = vst.msk [vmem:[%s272 + $0x129] sm:$0xff] %vm34, %v233
    %299 = vst.msk [vmem:[%s272 + $0x139] sm:$0xff] %vm34, %v234
    %300 = vst.msk [vmem:[%s272 + $0x141] sm:$0xff] %vm34, %v235
    %301 = vst.msk [vmem:[%s272 + $0x151] sm:$0xff] %vm34, %v236
    %302 = vst.msk [vmem:[%s272 + $0x159] sm:$0xff] %vm34, %v237
    %303 = vst.msk [vmem:[%s272 + $0x169] sm:$0xff] %vm34, %v238
    %304 = vst.msk [vmem:[%s272 + $0x171] sm:$0xff] %vm34, %v239
    %305 = vst.msk [vmem:[%s272 + $0x1b1] sm:$0xff] %vm34, %v240
    %306 = vst.msk [vmem:[%s272 + $0x1b9] sm:$0xff] %vm34, %v241
    %307 = vst.msk [vmem:[%s272 + $0x1c9] sm:$0xff] %vm34, %v242
    %308 = vst.msk [vmem:[%s272 + $0x1d1] sm:$0xff] %vm34, %v243
    %309 = vst.msk [vmem:[%s272 + $0x1e1] sm:$0xff] %vm34, %v244
    %310 = vst.msk [vmem:[%s272 + $0x1e9] sm:$0xff] %vm34, %v245
    %311 = vst.msk [vmem:[%s272 + $0x1f9] sm:$0xff] %vm34, %v246
    %312 = vst.msk [vmem:[%s272 + $0x201] sm:$0xff] %vm34, %v247
    %313 = vst.msk [vmem:[%s272 + $0x211] sm:$0xff] %vm34, %v248
    %314 = vst.msk [vmem:[%s272 + $0x219] sm:$0xff] %vm34, %v249
    %315 = vst.msk [vmem:[%s272 + $0x229] sm:$0xff] %vm34, %v250
    %316 = vst.msk [vmem:[%s272 + $0x231] sm:$0xff] %vm34, %v251
    %317 = vst.msk [vmem:[%s272 + $0x241] sm:$0xff] %vm34, %v252
    %318 = vst.msk [vmem:[%s272 + $0x249] sm:$0xff] %vm34, %v253
    %319 = vst.msk [vmem:[%s272 + $0x259] sm:$0xff] %vm34, %v254
    %320 = vst.msk [vmem:[%s272 + $0x261] sm:$0xff] %vm34, %v255
    %321 = vst.msk [vmem:[%s272 + $0x271] sm:$0xff] %vm34, %v256
    %322 = vst.msk [vmem:[%s272 + $0x279] sm:$0xff] %vm34, %v257
    %323 = vst.msk [vmem:[%s272 + $0x289] sm:$0xff] %vm34, %v258
    %324 = vst.msk [vmem:[%s272 + $0x291] sm:$0xff] %vm34, %v259
    %325 = vst.msk [vmem:[%s272 + $0x2a1] sm:$0xff] %vm34, %v260
    %326 = vst.msk [vmem:[%s272 + $0x2a9] sm:$0xff] %vm34, %v261
    %327 = vst.msk [vmem:[%s272 + $0x2b9] sm:$0xff] %vm34, %v262
    %328 = vst.msk [vmem:[%s272 + $0x2c1] sm:$0xff] %vm34, %v263
    %329 = vst.msk [vmem:[%s272 + $0x2d1] sm:$0xff] %vm34, %v264
    %330 = vst.msk [vmem:[%s272 + $0x2d9] sm:$0xff] %vm34, %v265
    %331 = vst.msk [vmem:[%s272 + $0x2e9] sm:$0xff] %vm34, %v266
    %332 = vst.msk [vmem:[%s272 + $0x2f1] sm:$0xff] %vm34, %v267
    %333 = vst.msk [vmem:[%s272 + $0x301] sm:$0xff] %vm34, %v268
    %334 = vst.msk [vmem:[%s272 + $0x309] sm:$0xff] %vm34, %v269
    %335 = vst.msk [vmem:[%s272 + $0x319] sm:$0xff] %vm34, %v270
    %336 = vst.msk [vmem:[%s272 + $0x321] sm:$0xff] %vm34, %v271
    %v337 = vld [vmem:[#allocation2] sm:$0xff]
    %v338 = vld [vmem:[#allocation2 + $0x8] sm:$0xff]
    %v339 = vld [vmem:[#allocation2 + $0x18] sm:$0xff]
    %v340 = vld [vmem:[#allocation2 + $0x20] sm:$0xff]
    %v341 = vld [vmem:[#allocation2 + $0x30] sm:$0xff]
    %v342 = vld [vmem:[#allocation2 + $0x38] sm:$0xff]
    %v343 = vld [vmem:[#allocation2 + $0x48] sm:$0xff]
    %v344 = vld [vmem:[#allocation2 + $0x50] sm:$0xff]
    %v345 = vld [vmem:[#allocation2 + $0x60] sm:$0xff]
    %v346 = vld [vmem:[#allocation2 + $0x68] sm:$0xff]
    %v347 = vld [vmem:[#allocation2 + $0x78] sm:$0xff]
    %v348 = vld [vmem:[#allocation2 + $0x80] sm:$0xff]
    %v349 = vld [vmem:[#allocation2 + $0x90] sm:$0xff]
    %v350 = vld [vmem:[#allocation2 + $0x98] sm:$0xff]
    %v351 = vld [vmem:[#allocation2 + $0xa8] sm:$0xff]
    %v352 = vld [vmem:[#allocation2 + $0xb0] sm:$0xff]
    %v353 = vld [vmem:[#allocation2 + $0xc0] sm:$0xff]
    %v354 = vld [vmem:[#allocation2 + $0xc8] sm:$0xff]
    %v355 = vld [vmem:[#allocation2 + $0xd8] sm:$0xff]
    %v356 = vld [vmem:[#allocation2 + $0xe0] sm:$0xff]
    %v357 = vld [vmem:[#allocation2 + $0xf0] sm:$0xff]
    %v358 = vld [vmem:[#allocation2 + $0xf8] sm:$0xff]
    %v359 = vld [vmem:[#allocation2 + $0x108] sm:$0xff]
    %v360 = vld [vmem:[#allocation2 + $0x110] sm:$0xff]
    %v361 = vld [vmem:[#allocation2 + $0x120] sm:$0xff]
    %v362 = vld [vmem:[#allocation2 + $0x128] sm:$0xff]
    %v363 = vld [vmem:[#allocation2 + $0x138] sm:$0xff]
    %v364 = vld [vmem:[#allocation2 + $0x140] sm:$0xff]
    %v365 = vld [vmem:[#allocation2 + $0x150] sm:$0xff]
    %v366 = vld [vmem:[#allocation2 + $0x158] sm:$0xff]
    %v367 = vld [vmem:[#allocation2 + $0x168] sm:$0xff]
    %v368 = vld [vmem:[#allocation2 + $0x170] sm:$0xff]
    %v369 = vld [vmem:[#allocation2 + $0x1b0] sm:$0xff]
    %v370 = vld [vmem:[#allocation2 + $0x1b8] sm:$0xff]
    %v371 = vld [vmem:[#allocation2 + $0x1c8] sm:$0xff]
    %v372 = vld [vmem:[#allocation2 + $0x1d0] sm:$0xff]
    %v373 = vld [vmem:[#allocation2 + $0x1e0] sm:$0xff]
    %v374 = vld [vmem:[#allocation2 + $0x1e8] sm:$0xff]
    %v375 = vld [vmem:[#allocation2 + $0x1f8] sm:$0xff]
    %v376 = vld [vmem:[#allocation2 + $0x200] sm:$0xff]
    %v377 = vld [vmem:[#allocation2 + $0x210] sm:$0xff]
    %v378 = vld [vmem:[#allocation2 + $0x218] sm:$0xff]
    %v379 = vld [vmem:[#allocation2 + $0x228] sm:$0xff]
    %v380 = vld [vmem:[#allocation2 + $0x230] sm:$0xff]
    %v381 = vld [vmem:[#allocation2 + $0x240] sm:$0xff]
    %v382 = vld [vmem:[#allocation2 + $0x248] sm:$0xff]
    %v383 = vld [vmem:[#allocation2 + $0x258] sm:$0xff]
    %v384 = vld [vmem:[#allocation2 + $0x260] sm:$0xff]
    %v385 = vld [vmem:[#allocation2 + $0x270] sm:$0xff]
    %v386 = vld [vmem:[#allocation2 + $0x278] sm:$0xff]
    %v387 = vld [vmem:[#allocation2 + $0x288] sm:$0xff]
    %v388 = vld [vmem:[#allocation2 + $0x290] sm:$0xff]
    %v389 = vld [vmem:[#allocation2 + $0x2a0] sm:$0xff]
    %v390 = vld [vmem:[#allocation2 + $0x2a8] sm:$0xff]
    %v391 = vld [vmem:[#allocation2 + $0x2b8] sm:$0xff]
    %v392 = vld [vmem:[#allocation2 + $0x2c0] sm:$0xff]
    %v393 = vld [vmem:[#allocation2 + $0x2d0] sm:$0xff]
    %v394 = vld [vmem:[#allocation2 + $0x2d8] sm:$0xff]
    %v395 = vld [vmem:[#allocation2 + $0x2e8] sm:$0xff]
    %v396 = vld [vmem:[#allocation2 + $0x2f0] sm:$0xff]
    %v397 = vld [vmem:[#allocation2 + $0x300] sm:$0xff]
    %v398 = vld [vmem:[#allocation2 + $0x308] sm:$0xff]
    %v399 = vld [vmem:[#allocation2 + $0x318] sm:$0xff]
    %v400 = vld [vmem:[#allocation2 + $0x320] sm:$0xff]
    %v401 = vld [vmem:[#allocation2 + $0x1] sm:$0xff]
    %v402 = vld [vmem:[#allocation2 + $0x9] sm:$0xff]
    %v403 = vld [vmem:[#allocation2 + $0x19] sm:$0xff]
    %v404 = vld [vmem:[#allocation2 + $0x21] sm:$0xff]
    %v405 = vld [vmem:[#allocation2 + $0x31] sm:$0xff]
    %v406 = vld [vmem:[#allocation2 + $0x39] sm:$0xff]
    %v407 = vld [vmem:[#allocation2 + $0x49] sm:$0xff]
    %v408 = vld [vmem:[#allocation2 + $0x51] sm:$0xff]
    %v409 = vld [vmem:[#allocation2 + $0x61] sm:$0xff]
    %v410 = vld [vmem:[#allocation2 + $0x69] sm:$0xff]
    %v411 = vld [vmem:[#allocation2 + $0x79] sm:$0xff]
    %v412 = vld [vmem:[#allocation2 + $0x81] sm:$0xff]
    %v413 = vld [vmem:[#allocation2 + $0x91] sm:$0xff]
    %v414 = vld [vmem:[#allocation2 + $0x99] sm:$0xff]
    %v415 = vld [vmem:[#allocation2 + $0xa9] sm:$0xff]
    %v416 = vld [vmem:[#allocation2 + $0xb1] sm:$0xff]
    %v417 = vld [vmem:[#allocation2 + $0xc1] sm:$0xff]
    %v418 = vld [vmem:[#allocation2 + $0xc9] sm:$0xff]
    %v419 = vld [vmem:[#allocation2 + $0xd9] sm:$0xff]
    %v420 = vld [vmem:[#allocation2 + $0xe1] sm:$0xff]
    %v421 = vld [vmem:[#allocation2 + $0xf1] sm:$0xff]
    %v422 = vld [vmem:[#allocation2 + $0xf9] sm:$0xff]
    %v423 = vld [vmem:[#allocation2 + $0x109] sm:$0xff]
    %v424 = vld [vmem:[#allocation2 + $0x111] sm:$0xff]
    %v425 = vld [vmem:[#allocation2 + $0x121] sm:$0xff]
    %v426 = vld [vmem:[#allocation2 + $0x129] sm:$0xff]
    %v427 = vld [vmem:[#allocation2 + $0x139] sm:$0xff]
    %v428 = vld [vmem:[#allocation2 + $0x141] sm:$0xff]
    %v429 = vld [vmem:[#allocation2 + $0x151] sm:$0xff]
    %v430 = vld [vmem:[#allocation2 + $0x159] sm:$0xff]
    %v431 = vld [vmem:[#allocation2 + $0x169] sm:$0xff]
    %v432 = vld [vmem:[#allocation2 + $0x171] sm:$0xff]
    %v433 = vld [vmem:[#allocation2 + $0x1b1] sm:$0xff]
    %v434 = vld [vmem:[#allocation2 + $0x1b9] sm:$0xff]
    %v435 = vld [vmem:[#allocation2 + $0x1c9] sm:$0xff]
    %v436 = vld [vmem:[#allocation2 + $0x1d1] sm:$0xff]
    %v437 = vld [vmem:[#allocation2 + $0x1e1] sm:$0xff]
    %v438 = vld [vmem:[#allocation2 + $0x1e9] sm:$0xff]
    %v439 = vld [vmem:[#allocation2 + $0x1f9] sm:$0xff]
    %v440 = vld [vmem:[#allocation2 + $0x201] sm:$0xff]
    %v441 = vld [vmem:[#allocation2 + $0x211] sm:$0xff]
    %v442 = vld [vmem:[#allocation2 + $0x219] sm:$0xff]
    %v443 = vld [vmem:[#allocation2 + $0x229] sm:$0xff]
    %v444 = vld [vmem:[#allocation2 + $0x231] sm:$0xff]
    %v445 = vld [vmem:[#allocation2 + $0x241] sm:$0xff]
    %v446 = vld [vmem:[#allocation2 + $0x249] sm:$0xff]
    %v447 = vld [vmem:[#allocation2 + $0x259] sm:$0xff]
    %v448 = vld [vmem:[#allocation2 + $0x261] sm:$0xff]
    %v449 = vld [vmem:[#allocation2 + $0x271] sm:$0xff]
    %v450 = vld [vmem:[#allocation2 + $0x279] sm:$0xff]
    %v451 = vld [vmem:[#allocation2 + $0x289] sm:$0xff]
    %v452 = vld [vmem:[#allocation2 + $0x291] sm:$0xff]
    %v453 = vld [vmem:[#allocation2 + $0x2a1] sm:$0xff]
    %v454 = vld [vmem:[#allocation2 + $0x2a9] sm:$0xff]
    %v455 = vld [vmem:[#allocation2 + $0x2b9] sm:$0xff]
    %v456 = vld [vmem:[#allocation2 + $0x2c1] sm:$0xff]
    %v457 = vld [vmem:[#allocation2 + $0x2d1] sm:$0xff]
    %v458 = vld [vmem:[#allocation2 + $0x2d9] sm:$0xff]
    %v459 = vld [vmem:[#allocation2 + $0x2e9] sm:$0xff]
    %v460 = vld [vmem:[#allocation2 + $0x2f1] sm:$0xff]
    %v461 = vld [vmem:[#allocation2 + $0x301] sm:$0xff]
    %v462 = vld [vmem:[#allocation2 + $0x309] sm:$0xff]
    %v463 = vld [vmem:[#allocation2 + $0x319] sm:$0xff]
    %v464 = vld [vmem:[#allocation2 + $0x321] sm:$0xff]
    %v465 = vld [vmem:[#allocation2 + $0x2] sm:$0xff]
    %v466 = vld [vmem:[#allocation2 + $0xa] sm:$0xff]
    %v467 = vld [vmem:[#allocation2 + $0x1a] sm:$0xff]
    %v468 = vld [vmem:[#allocation2 + $0x22] sm:$0xff]
    %v469 = vld [vmem:[#allocation2 + $0x32] sm:$0xff]
    %v470 = vld [vmem:[#allocation2 + $0x3a] sm:$0xff]
    %v471 = vld [vmem:[#allocation2 + $0x4a] sm:$0xff]
    %v472 = vld [vmem:[#allocation2 + $0x52] sm:$0xff]
    %v473 = vld [vmem:[#allocation2 + $0x62] sm:$0xff]
    %v474 = vld [vmem:[#allocation2 + $0x6a] sm:$0xff]
    %v475 = vld [vmem:[#allocation2 + $0x7a] sm:$0xff]
    %v476 = vld [vmem:[#allocation2 + $0x82] sm:$0xff]
    %v477 = vld [vmem:[#allocation2 + $0x92] sm:$0xff]
    %v478 = vld [vmem:[#allocation2 + $0x9a] sm:$0xff]
    %v479 = vld [vmem:[#allocation2 + $0xaa] sm:$0xff]
    %v480 = vld [vmem:[#allocation2 + $0xb2] sm:$0xff]
    %v481 = vld [vmem:[#allocation2 + $0xc2] sm:$0xff]
    %v482 = vld [vmem:[#allocation2 + $0xca] sm:$0xff]
    %v483 = vld [vmem:[#allocation2 + $0xda] sm:$0xff]
    %v484 = vld [vmem:[#allocation2 + $0xe2] sm:$0xff]
    %v485 = vld [vmem:[#allocation2 + $0xf2] sm:$0xff]
    %v486 = vld [vmem:[#allocation2 + $0xfa] sm:$0xff]
    %v487 = vld [vmem:[#allocation2 + $0x10a] sm:$0xff]
    %v488 = vld [vmem:[#allocation2 + $0x112] sm:$0xff]
    %v489 = vld [vmem:[#allocation2 + $0x122] sm:$0xff]
    %v490 = vld [vmem:[#allocation2 + $0x12a] sm:$0xff]
    %v491 = vld [vmem:[#allocation2 + $0x13a] sm:$0xff]
    %v492 = vld [vmem:[#allocation2 + $0x142] sm:$0xff]
    %v493 = vld [vmem:[#allocation2 + $0x152] sm:$0xff]
    %v494 = vld [vmem:[#allocation2 + $0x15a] sm:$0xff]
    %v495 = vld [vmem:[#allocation2 + $0x16a] sm:$0xff]
    %v496 = vld [vmem:[#allocation2 + $0x172] sm:$0xff]
    %v497 = vld [vmem:[#allocation2 + $0x1b2] sm:$0xff]
    %v498 = vld [vmem:[#allocation2 + $0x1ba] sm:$0xff]
    %v499 = vld [vmem:[#allocation2 + $0x1ca] sm:$0xff]
    %v500 = vld [vmem:[#allocation2 + $0x1d2] sm:$0xff]
    %v501 = vld [vmem:[#allocation2 + $0x1e2] sm:$0xff]
    %v502 = vld [vmem:[#allocation2 + $0x1ea] sm:$0xff]
    %v503 = vld [vmem:[#allocation2 + $0x1fa] sm:$0xff]
    %v504 = vld [vmem:[#allocation2 + $0x202] sm:$0xff]
    %v505 = vld [vmem:[#allocation2 + $0x212] sm:$0xff]
    %v506 = vld [vmem:[#allocation2 + $0x21a] sm:$0xff]
    %v507 = vld [vmem:[#allocation2 + $0x22a] sm:$0xff]
    %v508 = vld [vmem:[#allocation2 + $0x232] sm:$0xff]
    %v509 = vld [vmem:[#allocation2 + $0x242] sm:$0xff]
    %v510 = vld [vmem:[#allocation2 + $0x24a] sm:$0xff]
    %v511 = vld [vmem:[#allocation2 + $0x25a] sm:$0xff]
    %v512 = vld [vmem:[#allocation2 + $0x262] sm:$0xff]
    %v513 = vld [vmem:[#allocation2 + $0x272] sm:$0xff]
    %v514 = vld [vmem:[#allocation2 + $0x27a] sm:$0xff]
    %v515 = vld [vmem:[#allocation2 + $0x28a] sm:$0xff]
    %v516 = vld [vmem:[#allocation2 + $0x292] sm:$0xff]
    %v517 = vld [vmem:[#allocation2 + $0x2a2] sm:$0xff]
    %v518 = vld [vmem:[#allocation2 + $0x2aa] sm:$0xff]
    %v519 = vld [vmem:[#allocation2 + $0x2ba] sm:$0xff]
    %v520 = vld [vmem:[#allocation2 + $0x2c2] sm:$0xff]
    %v521 = vld [vmem:[#allocation2 + $0x2d2] sm:$0xff]
    %v522 = vld [vmem:[#allocation2 + $0x2da] sm:$0xff]
    %v523 = vld [vmem:[#allocation2 + $0x2ea] sm:$0xff]
    %v524 = vld [vmem:[#allocation2 + $0x2f2] sm:$0xff]
    %v525 = vld [vmem:[#allocation2 + $0x302] sm:$0xff]
    %v526 = vld [vmem:[#allocation2 + $0x30a] sm:$0xff]
    %v527 = vld [vmem:[#allocation2 + $0x31a] sm:$0xff]
    %v528 = vld [vmem:[#allocation2 + $0x322] sm:$0xff]
    %v529 = vld [vmem:[%s272] sm:$0xff]
    %v530 = vld [vmem:[%s272 + $0x8] sm:$0xff]
    %v531 = vld [vmem:[%s272 + $0x18] sm:$0xff]
    %v532 = vld [vmem:[%s272 + $0x20] sm:$0xff]
    %v533 = vld [vmem:[%s272 + $0x30] sm:$0xff]
    %v534 = vld [vmem:[%s272 + $0x38] sm:$0xff]
    %v535 = vld [vmem:[%s272 + $0x48] sm:$0xff]
    %v536 = vld [vmem:[%s272 + $0x50] sm:$0xff]
    %v537 = vld [vmem:[%s272 + $0x60] sm:$0xff]
    %v538 = vld [vmem:[%s272 + $0x68] sm:$0xff]
    %v539 = vld [vmem:[%s272 + $0x78] sm:$0xff]
    %v540 = vld [vmem:[%s272 + $0x80] sm:$0xff]
    %v541 = vld [vmem:[%s272 + $0x90] sm:$0xff]
    %v542 = vld [vmem:[%s272 + $0x98] sm:$0xff]
    %v543 = vld [vmem:[%s272 + $0xa8] sm:$0xff]
    %v544 = vld [vmem:[%s272 + $0xb0] sm:$0xff]
    %v545 = vld [vmem:[%s272 + $0xc0] sm:$0xff]
    %v546 = vld [vmem:[%s272 + $0xc8] sm:$0xff]
    %v547 = vld [vmem:[%s272 + $0xd8] sm:$0xff]
    %v548 = vld [vmem:[%s272 + $0xe0] sm:$0xff]
    %v549 = vld [vmem:[%s272 + $0xf0] sm:$0xff]
    %v550 = vld [vmem:[%s272 + $0xf8] sm:$0xff]
    %v551 = vld [vmem:[%s272 + $0x108] sm:$0xff]
    %v552 = vld [vmem:[%s272 + $0x110] sm:$0xff]
    %v553 = vld [vmem:[%s272 + $0x120] sm:$0xff]
    %v554 = vld [vmem:[%s272 + $0x128] sm:$0xff]
    %v555 = vld [vmem:[%s272 + $0x138] sm:$0xff]
    %v556 = vld [vmem:[%s272 + $0x140] sm:$0xff]
    %v557 = vld [vmem:[%s272 + $0x150] sm:$0xff]
    %v558 = vld [vmem:[%s272 + $0x158] sm:$0xff]
    %v559 = vld [vmem:[%s272 + $0x168] sm:$0xff]
    %v560 = vld [vmem:[%s272 + $0x170] sm:$0xff]
    %v561 = vld [vmem:[%s272 + $0x1b0] sm:$0xff]
    %v562 = vld [vmem:[%s272 + $0x1b8] sm:$0xff]
    %v563 = vld [vmem:[%s272 + $0x1c8] sm:$0xff]
    %v564 = vld [vmem:[%s272 + $0x1d0] sm:$0xff]
    %v565 = vld [vmem:[%s272 + $0x1e0] sm:$0xff]
    %v566 = vld [vmem:[%s272 + $0x1e8] sm:$0xff]
    %v567 = vld [vmem:[%s272 + $0x1f8] sm:$0xff]
    %v568 = vld [vmem:[%s272 + $0x200] sm:$0xff]
    %v569 = vld [vmem:[%s272 + $0x210] sm:$0xff]
    %v570 = vld [vmem:[%s272 + $0x218] sm:$0xff]
    %v571 = vld [vmem:[%s272 + $0x228] sm:$0xff]
    %v572 = vld [vmem:[%s272 + $0x230] sm:$0xff]
    %v573 = vld [vmem:[%s272 + $0x240] sm:$0xff]
    %v574 = vld [vmem:[%s272 + $0x248] sm:$0xff]
    %v575 = vld [vmem:[%s272 + $0x258] sm:$0xff]
    %v576 = vld [vmem:[%s272 + $0x260] sm:$0xff]
    %v577 = vld [vmem:[%s272 + $0x270] sm:$0xff]
    %v578 = vld [vmem:[%s272 + $0x278] sm:$0xff]
    %v579 = vld [vmem:[%s272 + $0x288] sm:$0xff]
    %v580 = vld [vmem:[%s272 + $0x290] sm:$0xff]
    %v581 = vld [vmem:[%s272 + $0x2a0] sm:$0xff]
    %v582 = vld [vmem:[%s272 + $0x2a8] sm:$0xff]
    %v583 = vld [vmem:[%s272 + $0x2b8] sm:$0xff]
    %v584 = vld [vmem:[%s272 + $0x2c0] sm:$0xff]
    %v585 = vld [vmem:[%s272 + $0x2d0] sm:$0xff]
    %v586 = vld [vmem:[%s272 + $0x2d8] sm:$0xff]
    %v587 = vld [vmem:[%s272 + $0x2e8] sm:$0xff]
    %v588 = vld [vmem:[%s272 + $0x2f0] sm:$0xff]
    %v589 = vld [vmem:[%s272 + $0x300] sm:$0xff]
    %v590 = vld [vmem:[%s272 + $0x308] sm:$0xff]
    %v591 = vld [vmem:[%s272 + $0x318] sm:$0xff]
    %v592 = vld [vmem:[%s272 + $0x320] sm:$0xff]
    %v593 = vld [vmem:[%s272 + $0x1] sm:$0xff]
    %v594 = vld [vmem:[%s272 + $0x9] sm:$0xff]
    %v595 = vld [vmem:[%s272 + $0x19] sm:$0xff]
    %v596 = vld [vmem:[%s272 + $0x21] sm:$0xff]
    %v597 = vld [vmem:[%s272 + $0x31] sm:$0xff]
    %v598 = vld [vmem:[%s272 + $0x39] sm:$0xff]
    %v599 = vld [vmem:[%s272 + $0x49] sm:$0xff]
    %v600 = vld [vmem:[%s272 + $0x51] sm:$0xff]
    %v601 = vld [vmem:[%s272 + $0x61] sm:$0xff]
    %v602 = vld [vmem:[%s272 + $0x69] sm:$0xff]
    %v603 = vld [vmem:[%s272 + $0x79] sm:$0xff]
    %v604 = vld [vmem:[%s272 + $0x81] sm:$0xff]
    %v605 = vld [vmem:[%s272 + $0x91] sm:$0xff]
    %v606 = vld [vmem:[%s272 + $0x99] sm:$0xff]
    %v607 = vld [vmem:[%s272 + $0xa9] sm:$0xff]
    %v608 = vld [vmem:[%s272 + $0xb1] sm:$0xff]
    %v609 = vld [vmem:[%s272 + $0xc1] sm:$0xff]
    %v610 = vld [vmem:[%s272 + $0xc9] sm:$0xff]
    %v611 = vld [vmem:[%s272 + $0xd9] sm:$0xff]
    %v612 = vld [vmem:[%s272 + $0xe1] sm:$0xff]
    %v613 = vld [vmem:[%s272 + $0xf1] sm:$0xff]
    %v614 = vld [vmem:[%s272 + $0xf9] sm:$0xff]
    %v615 = vld [vmem:[%s272 + $0x109] sm:$0xff]
    %v616 = vld [vmem:[%s272 + $0x111] sm:$0xff]
    %v617 = vld [vmem:[%s272 + $0x121] sm:$0xff]
    %v618 = vld [vmem:[%s272 + $0x129] sm:$0xff]
    %v619 = vld [vmem:[%s272 + $0x139] sm:$0xff]
    %v620 = vld [vmem:[%s272 + $0x141] sm:$0xff]
    %v621 = vld [vmem:[%s272 + $0x151] sm:$0xff]
    %v622 = vld [vmem:[%s272 + $0x159] sm:$0xff]
    %v623 = vld [vmem:[%s272 + $0x169] sm:$0xff]
    %v624 = vld [vmem:[%s272 + $0x171] sm:$0xff]
    %v625 = vld [vmem:[%s272 + $0x1b1] sm:$0xff]
    %v626 = vld [vmem:[%s272 + $0x1b9] sm:$0xff]
    %v627 = vld [vmem:[%s272 + $0x1c9] sm:$0xff]
    %v628 = vld [vmem:[%s272 + $0x1d1] sm:$0xff]
    %v629 = vld [vmem:[%s272 + $0x1e1] sm:$0xff]
    %v630 = vld [vmem:[%s272 + $0x1e9] sm:$0xff]
    %v631 = vld [vmem:[%s272 + $0x1f9] sm:$0xff]
    %v632 = vld [vmem:[%s272 + $0x201] sm:$0xff]
    %v633 = vld [vmem:[%s272 + $0x211] sm:$0xff]
    %v634 = vld [vmem:[%s272 + $0x219] sm:$0xff]
    %v635 = vld [vmem:[%s272 + $0x229] sm:$0xff]
    %v636 = vld [vmem:[%s272 + $0x231] sm:$0xff]
    %v637 = vld [vmem:[%s272 + $0x241] sm:$0xff]
    %v638 = vld [vmem:[%s272 + $0x249] sm:$0xff]
    %v639 = vld [vmem:[%s272 + $0x259] sm:$0xff]
    %v640 = vld [vmem:[%s272 + $0x261] sm:$0xff]
    %v641 = vld [vmem:[%s272 + $0x271] sm:$0xff]
    %v642 = vld [vmem:[%s272 + $0x279] sm:$0xff]
    %v643 = vld [vmem:[%s272 + $0x289] sm:$0xff]
    %v644 = vld [vmem:[%s272 + $0x291] sm:$0xff]
    %v645 = vld [vmem:[%s272 + $0x2a1] sm:$0xff]
    %v646 = vld [vmem:[%s272 + $0x2a9] sm:$0xff]
    %v647 = vld [vmem:[%s272 + $0x2b9] sm:$0xff]
    %v648 = vld [vmem:[%s272 + $0x2c1] sm:$0xff]
    %v649 = vld [vmem:[%s272 + $0x2d1] sm:$0xff]
    %v650 = vld [vmem:[%s272 + $0x2d9] sm:$0xff]
    %v651 = vld [vmem:[%s272 + $0x2e9] sm:$0xff]
    %v652 = vld [vmem:[%s272 + $0x2f1] sm:$0xff]
    %v653 = vld [vmem:[%s272 + $0x301] sm:$0xff]
    %v654 = vld [vmem:[%s272 + $0x309] sm:$0xff]
    %v655 = vld [vmem:[%s272 + $0x319] sm:$0xff]
    %v656 = vld [vmem:[%s272 + $0x321] sm:$0xff]
    %v657 = vld [vmem:[%s272 + $0x2] sm:$0xff]
    %v658 = vld [vmem:[%s272 + $0xa] sm:$0xff]
    %v659 = vld [vmem:[%s272 + $0x1a] sm:$0xff]
    %v660 = vld [vmem:[%s272 + $0x22] sm:$0xff]
    %v661 = vld [vmem:[%s272 + $0x32] sm:$0xff]
    %v662 = vld [vmem:[%s272 + $0x3a] sm:$0xff]
    %v663 = vld [vmem:[%s272 + $0x4a] sm:$0xff]
    %v664 = vld [vmem:[%s272 + $0x52] sm:$0xff]
    %v665 = vld [vmem:[%s272 + $0x62] sm:$0xff]
    %v666 = vld [vmem:[%s272 + $0x6a] sm:$0xff]
    %v667 = vld [vmem:[%s272 + $0x7a] sm:$0xff]
    %v668 = vld [vmem:[%s272 + $0x82] sm:$0xff]
    %v669 = vld [vmem:[%s272 + $0x92] sm:$0xff]
    %v670 = vld [vmem:[%s272 + $0x9a] sm:$0xff]
    %v671 = vld [vmem:[%s272 + $0xaa] sm:$0xff]
    %v672 = vld [vmem:[%s272 + $0xb2] sm:$0xff]
    %v673 = vld [vmem:[%s272 + $0xc2] sm:$0xff]
    %v674 = vld [vmem:[%s272 + $0xca] sm:$0xff]
    %v675 = vld [vmem:[%s272 + $0xda] sm:$0xff]
    %v676 = vld [vmem:[%s272 + $0xe2] sm:$0xff]
    %v677 = vld [vmem:[%s272 + $0xf2] sm:$0xff]
    %v678 = vld [vmem:[%s272 + $0xfa] sm:$0xff]
    %v679 = vld [vmem:[%s272 + $0x10a] sm:$0xff]
    %v680 = vld [vmem:[%s272 + $0x112] sm:$0xff]
    %v681 = vld [vmem:[%s272 + $0x122] sm:$0xff]
    %v682 = vld [vmem:[%s272 + $0x12a] sm:$0xff]
    %v683 = vld [vmem:[%s272 + $0x13a] sm:$0xff]
    %v684 = vld [vmem:[%s272 + $0x142] sm:$0xff]
    %v685 = vld [vmem:[%s272 + $0x152] sm:$0xff]
    %v686 = vld [vmem:[%s272 + $0x15a] sm:$0xff]
    %v687 = vld [vmem:[%s272 + $0x16a] sm:$0xff]
    %v688 = vld [vmem:[%s272 + $0x172] sm:$0xff]
    %v689 = vld [vmem:[%s272 + $0x1b2] sm:$0xff]
    %v690 = vld [vmem:[%s272 + $0x1ba] sm:$0xff]
    %v691 = vld [vmem:[%s272 + $0x1ca] sm:$0xff]
    %v692 = vld [vmem:[%s272 + $0x1d2] sm:$0xff]
    %v693 = vld [vmem:[%s272 + $0x1e2] sm:$0xff]
    %v694 = vld [vmem:[%s272 + $0x1ea] sm:$0xff]
    %v695 = vld [vmem:[%s272 + $0x1fa] sm:$0xff]
    %v696 = vld [vmem:[%s272 + $0x202] sm:$0xff]
    %v697 = vld [vmem:[%s272 + $0x212] sm:$0xff]
    %v698 = vld [vmem:[%s272 + $0x21a] sm:$0xff]
    %v699 = vld [vmem:[%s272 + $0x22a] sm:$0xff]
    %v700 = vld [vmem:[%s272 + $0x232] sm:$0xff]
    %v701 = vld [vmem:[%s272 + $0x242] sm:$0xff]
    %v702 = vld [vmem:[%s272 + $0x24a] sm:$0xff]
    %v703 = vld [vmem:[%s272 + $0x25a] sm:$0xff]
    %v704 = vld [vmem:[%s272 + $0x262] sm:$0xff]
    %v705 = vld [vmem:[%s272 + $0x272] sm:$0xff]
    %v706 = vld [vmem:[%s272 + $0x27a] sm:$0xff]
    %v707 = vld [vmem:[%s272 + $0x28a] sm:$0xff]
    %v708 = vld [vmem:[%s272 + $0x292] sm:$0xff]
    %v709 = vld [vmem:[%s272 + $0x2a2] sm:$0xff]
    %v710 = vld [vmem:[%s272 + $0x2aa] sm:$0xff]
    %v711 = vld [vmem:[%s272 + $0x2ba] sm:$0xff]
    %v712 = vld [vmem:[%s272 + $0x2c2] sm:$0xff]
    %v713 = vld [vmem:[%s272 + $0x2d2] sm:$0xff]
    %v714 = vld [vmem:[%s272 + $0x2da] sm:$0xff]
    %v715 = vld [vmem:[%s272 + $0x2ea] sm:$0xff]
    %v716 = vld [vmem:[%s272 + $0x2f2] sm:$0xff]
    %v717 = vld [vmem:[%s272 + $0x302] sm:$0xff]
    %v718 = vld [vmem:[%s272 + $0x30a] sm:$0xff]
    %v719 = vld [vmem:[%s272 + $0x31a] sm:$0xff]
    %v720 = vld [vmem:[%s272 + $0x322] sm:$0xff]
    %s721 = scalar_lea.vmem [#allocation2], 48
    %v722 = vld [vmem:[%s721] sm:$0xff]
    %v723 = vld [vmem:[%s721 + $0x8] sm:$0xff]
    %v724 = vld [vmem:[%s721 + $0x18] sm:$0xff]
    %v725 = vld [vmem:[%s721 + $0x20] sm:$0xff]
    %v726 = vld [vmem:[%s721 + $0x30] sm:$0xff]
    %v727 = vld [vmem:[%s721 + $0x38] sm:$0xff]
    %v728 = vld [vmem:[%s721 + $0x48] sm:$0xff]
    %v729 = vld [vmem:[%s721 + $0x50] sm:$0xff]
    %v730 = vld [vmem:[%s721 + $0x60] sm:$0xff]
    %v731 = vld [vmem:[%s721 + $0x68] sm:$0xff]
    %v732 = vld [vmem:[%s721 + $0x78] sm:$0xff]
    %v733 = vld [vmem:[%s721 + $0x80] sm:$0xff]
    %v734 = vld [vmem:[%s721 + $0x90] sm:$0xff]
    %v735 = vld [vmem:[%s721 + $0x98] sm:$0xff]
    %v736 = vld [vmem:[%s721 + $0xa8] sm:$0xff]
    %v737 = vld [vmem:[%s721 + $0xb0] sm:$0xff]
    %v738 = vld [vmem:[%s721 + $0xc0] sm:$0xff]
    %v739 = vld [vmem:[%s721 + $0xc8] sm:$0xff]
    %v740 = vld [vmem:[%s721 + $0xd8] sm:$0xff]
    %v741 = vld [vmem:[%s721 + $0xe0] sm:$0xff]
    %v742 = vld [vmem:[%s721 + $0xf0] sm:$0xff]
    %v743 = vld [vmem:[%s721 + $0xf8] sm:$0xff]
    %v744 = vld [vmem:[%s721 + $0x108] sm:$0xff]
    %v745 = vld [vmem:[%s721 + $0x110] sm:$0xff]
    %v746 = vld [vmem:[%s721 + $0x120] sm:$0xff]
    %v747 = vld [vmem:[%s721 + $0x128] sm:$0xff]
    %v748 = vld [vmem:[%s721 + $0x138] sm:$0xff]
    %v749 = vld [vmem:[%s721 + $0x140] sm:$0xff]
    %v750 = vld [vmem:[%s721 + $0x150] sm:$0xff]
    %v751 = vld [vmem:[%s721 + $0x158] sm:$0xff]
    %v752 = vld [vmem:[%s721 + $0x168] sm:$0xff]
    %v753 = vld [vmem:[%s721 + $0x170] sm:$0xff]
    %v754 = vld [vmem:[%s721 + $0x1b0] sm:$0xff]
    %v755 = vld [vmem:[%s721 + $0x1b8] sm:$0xff]
    %v756 = vld [vmem:[%s721 + $0x1c8] sm:$0xff]
    %v757 = vld [vmem:[%s721 + $0x1d0] sm:$0xff]
    %v758 = vld [vmem:[%s721 + $0x1e0] sm:$0xff]
    %v759 = vld [vmem:[%s721 + $0x1e8] sm:$0xff]
    %v760 = vld [vmem:[%s721 + $0x1f8] sm:$0xff]
    %v761 = vld [vmem:[%s721 + $0x200] sm:$0xff]
    %v762 = vld [vmem:[%s721 + $0x210] sm:$0xff]
    %v763 = vld [vmem:[%s721 + $0x218] sm:$0xff]
    %v764 = vld [vmem:[%s721 + $0x228] sm:$0xff]
    %v765 = vld [vmem:[%s721 + $0x230] sm:$0xff]
    %v766 = vld [vmem:[%s721 + $0x240] sm:$0xff]
    %v767 = vld [vmem:[%s721 + $0x248] sm:$0xff]
    %v768 = vld [vmem:[%s721 + $0x258] sm:$0xff]
    %v769 = vld [vmem:[%s721 + $0x260] sm:$0xff]
    %v770 = vld [vmem:[%s721 + $0x270] sm:$0xff]
    %v771 = vld [vmem:[%s721 + $0x278] sm:$0xff]
    %v772 = vld [vmem:[%s721 + $0x288] sm:$0xff]
    %v773 = vld [vmem:[%s721 + $0x290] sm:$0xff]
    %v774 = vld [vmem:[%s721 + $0x2a0] sm:$0xff]
    %v775 = vld [vmem:[%s721 + $0x2a8] sm:$0xff]
    %v776 = vld [vmem:[%s721 + $0x2b8] sm:$0xff]
    %v777 = vld [vmem:[%s721 + $0x2c0] sm:$0xff]
    %v778 = vld [vmem:[%s721 + $0x2d0] sm:$0xff]
    %v779 = vld [vmem:[%s721 + $0x2d8] sm:$0xff]
    %v780 = vld [vmem:[%s721 + $0x2e8] sm:$0xff]
    %v781 = vld [vmem:[%s721 + $0x2f0] sm:$0xff]
    %v782 = vld [vmem:[%s721 + $0x300] sm:$0xff]
    %v783 = vld [vmem:[%s721 + $0x308] sm:$0xff]
    %v784 = vld [vmem:[%s721 + $0x318] sm:$0xff]
    %v785 = vld [vmem:[%s721 + $0x320] sm:$0xff]
    %v786 = vld [vmem:[%s721 + $0x1] sm:$0xff]
    %v787 = vld [vmem:[%s721 + $0x9] sm:$0xff]
    %v788 = vld [vmem:[%s721 + $0x19] sm:$0xff]
    %v789 = vld [vmem:[%s721 + $0x21] sm:$0xff]
    %v790 = vld [vmem:[%s721 + $0x31] sm:$0xff]
    %v791 = vld [vmem:[%s721 + $0x39] sm:$0xff]
    %v792 = vld [vmem:[%s721 + $0x49] sm:$0xff]
    %v793 = vld [vmem:[%s721 + $0x51] sm:$0xff]
    %v794 = vld [vmem:[%s721 + $0x61] sm:$0xff]
    %v795 = vld [vmem:[%s721 + $0x69] sm:$0xff]
    %v796 = vld [vmem:[%s721 + $0x79] sm:$0xff]
    %v797 = vld [vmem:[%s721 + $0x81] sm:$0xff]
    %v798 = vld [vmem:[%s721 + $0x91] sm:$0xff]
    %v799 = vld [vmem:[%s721 + $0x99] sm:$0xff]
    %v800 = vld [vmem:[%s721 + $0xa9] sm:$0xff]
    %v801 = vld [vmem:[%s721 + $0xb1] sm:$0xff]
    %v802 = vld [vmem:[%s721 + $0xc1] sm:$0xff]
    %v803 = vld [vmem:[%s721 + $0xc9] sm:$0xff]
    %v804 = vld [vmem:[%s721 + $0xd9] sm:$0xff]
    %v805 = vld [vmem:[%s721 + $0xe1] sm:$0xff]
    %v806 = vld [vmem:[%s721 + $0xf1] sm:$0xff]
    %v807 = vld [vmem:[%s721 + $0xf9] sm:$0xff]
    %v808 = vld [vmem:[%s721 + $0x109] sm:$0xff]
    %v809 = vld [vmem:[%s721 + $0x111] sm:$0xff]
    %v810 = vld [vmem:[%s721 + $0x121] sm:$0xff]
    %v811 = vld [vmem:[%s721 + $0x129] sm:$0xff]
    %v812 = vld [vmem:[%s721 + $0x139] sm:$0xff]
    %v813 = vld [vmem:[%s721 + $0x141] sm:$0xff]
    %v814 = vld [vmem:[%s721 + $0x151] sm:$0xff]
    %v815 = vld [vmem:[%s721 + $0x159] sm:$0xff]
    %v816 = vld [vmem:[%s721 + $0x169] sm:$0xff]
    %v817 = vld [vmem:[%s721 + $0x171] sm:$0xff]
    %v818 = vld [vmem:[%s721 + $0x1b1] sm:$0xff]
    %v819 = vld [vmem:[%s721 + $0x1b9] sm:$0xff]
    %v820 = vld [vmem:[%s721 + $0x1c9] sm:$0xff]
    %v821 = vld [vmem:[%s721 + $0x1d1] sm:$0xff]
    %v822 = vld [vmem:[%s721 + $0x1e1] sm:$0xff]
    %v823 = vld [vmem:[%s721 + $0x1e9] sm:$0xff]
    %v824 = vld [vmem:[%s721 + $0x1f9] sm:$0xff]
    %v825 = vld [vmem:[%s721 + $0x201] sm:$0xff]
    %v826 = vld [vmem:[%s721 + $0x211] sm:$0xff]
    %v827 = vld [vmem:[%s721 + $0x219] sm:$0xff]
    %v828 = vld [vmem:[%s721 + $0x229] sm:$0xff]
    %v829 = vld [vmem:[%s721 + $0x231] sm:$0xff]
    %v830 = vld [vmem:[%s721 + $0x241] sm:$0xff]
    %v831 = vld [vmem:[%s721 + $0x249] sm:$0xff]
    %v832 = vld [vmem:[%s721 + $0x259] sm:$0xff]
    %v833 = vld [vmem:[%s721 + $0x261] sm:$0xff]
    %v834 = vld [vmem:[%s721 + $0x271] sm:$0xff]
    %v835 = vld [vmem:[%s721 + $0x279] sm:$0xff]
    %v836 = vld [vmem:[%s721 + $0x289] sm:$0xff]
    %v837 = vld [vmem:[%s721 + $0x291] sm:$0xff]
    %v838 = vld [vmem:[%s721 + $0x2a1] sm:$0xff]
    %v839 = vld [vmem:[%s721 + $0x2a9] sm:$0xff]
    %v840 = vld [vmem:[%s721 + $0x2b9] sm:$0xff]
    %v841 = vld [vmem:[%s721 + $0x2c1] sm:$0xff]
    %v842 = vld [vmem:[%s721 + $0x2d1] sm:$0xff]
    %v843 = vld [vmem:[%s721 + $0x2d9] sm:$0xff]
    %v844 = vld [vmem:[%s721 + $0x2e9] sm:$0xff]
    %v845 = vld [vmem:[%s721 + $0x2f1] sm:$0xff]
    %v846 = vld [vmem:[%s721 + $0x301] sm:$0xff]
    %v847 = vld [vmem:[%s721 + $0x309] sm:$0xff]
    %v848 = vld [vmem:[%s721 + $0x319] sm:$0xff]
    %v849 = vld [vmem:[%s721 + $0x321] sm:$0xff]
    %v850 = vld [vmem:[%s721 + $0x2] sm:$0xff]
    %v851 = vld [vmem:[%s721 + $0xa] sm:$0xff]
    %v852 = vld [vmem:[%s721 + $0x1a] sm:$0xff]
    %v853 = vld [vmem:[%s721 + $0x22] sm:$0xff]
    %v854 = vld [vmem:[%s721 + $0x32] sm:$0xff]
    %v855 = vld [vmem:[%s721 + $0x3a] sm:$0xff]
    %v856 = vld [vmem:[%s721 + $0x4a] sm:$0xff]
    %v857 = vld [vmem:[%s721 + $0x52] sm:$0xff]
    %v858 = vld [vmem:[%s721 + $0x62] sm:$0xff]
    %v859 = vld [vmem:[%s721 + $0x6a] sm:$0xff]
    %v860 = vld [vmem:[%s721 + $0x7a] sm:$0xff]
    %v861 = vld [vmem:[%s721 + $0x82] sm:$0xff]
    %v862 = vld [vmem:[%s721 + $0x92] sm:$0xff]
    %v863 = vld [vmem:[%s721 + $0x9a] sm:$0xff]
    %v864 = vld [vmem:[%s721 + $0xaa] sm:$0xff]
    %v865 = vld [vmem:[%s721 + $0xb2] sm:$0xff]
    %v866 = vld [vmem:[%s721 + $0xc2] sm:$0xff]
    %v867 = vld [vmem:[%s721 + $0xca] sm:$0xff]
    %v868 = vld [vmem:[%s721 + $0xda] sm:$0xff]
    %v869 = vld [vmem:[%s721 + $0xe2] sm:$0xff]
    %v870 = vld [vmem:[%s721 + $0xf2] sm:$0xff]
    %v871 = vld [vmem:[%s721 + $0xfa] sm:$0xff]
    %v872 = vld [vmem:[%s721 + $0x10a] sm:$0xff]
    %v873 = vld [vmem:[%s721 + $0x112] sm:$0xff]
    %v874 = vld [vmem:[%s721 + $0x122] sm:$0xff]
    %v875 = vld [vmem:[%s721 + $0x12a] sm:$0xff]
    %v876 = vld [vmem:[%s721 + $0x13a] sm:$0xff]
    %v877 = vld [vmem:[%s721 + $0x142] sm:$0xff]
    %v878 = vld [vmem:[%s721 + $0x152] sm:$0xff]
    %v879 = vld [vmem:[%s721 + $0x15a] sm:$0xff]
    %v880 = vld [vmem:[%s721 + $0x16a] sm:$0xff]
    %v881 = vld [vmem:[%s721 + $0x172] sm:$0xff]
    %v882 = vld [vmem:[%s721 + $0x1b2] sm:$0xff]
    %v883 = vld [vmem:[%s721 + $0x1ba] sm:$0xff]
    %v884 = vld [vmem:[%s721 + $0x1ca] sm:$0xff]
    %v885 = vld [vmem:[%s721 + $0x1d2] sm:$0xff]
    %v886 = vld [vmem:[%s721 + $0x1e2] sm:$0xff]
    %v887 = vld [vmem:[%s721 + $0x1ea] sm:$0xff]
    %v888 = vld [vmem:[%s721 + $0x1fa] sm:$0xff]
    %v889 = vld [vmem:[%s721 + $0x202] sm:$0xff]
    %v890 = vld [vmem:[%s721 + $0x212] sm:$0xff]
    %v891 = vld [vmem:[%s721 + $0x21a] sm:$0xff]
    %v892 = vld [vmem:[%s721 + $0x22a] sm:$0xff]
    %v893 = vld [vmem:[%s721 + $0x232] sm:$0xff]
    %v894 = vld [vmem:[%s721 + $0x242] sm:$0xff]
    %v895 = vld [vmem:[%s721 + $0x24a] sm:$0xff]
    %v896 = vld [vmem:[%s721 + $0x25a] sm:$0xff]
    %v897 = vld [vmem:[%s721 + $0x262] sm:$0xff]
    %v898 = vld [vmem:[%s721 + $0x272] sm:$0xff]
    %v899 = vld [vmem:[%s721 + $0x27a] sm:$0xff]
    %v900 = vld [vmem:[%s721 + $0x28a] sm:$0xff]
    %v901 = vld [vmem:[%s721 + $0x292] sm:$0xff]
    %v902 = vld [vmem:[%s721 + $0x2a2] sm:$0xff]
    %v903 = vld [vmem:[%s721 + $0x2aa] sm:$0xff]
    %v904 = vld [vmem:[%s721 + $0x2ba] sm:$0xff]
    %v905 = vld [vmem:[%s721 + $0x2c2] sm:$0xff]
    %v906 = vld [vmem:[%s721 + $0x2d2] sm:$0xff]
    %v907 = vld [vmem:[%s721 + $0x2da] sm:$0xff]
    %v908 = vld [vmem:[%s721 + $0x2ea] sm:$0xff]
    %v909 = vld [vmem:[%s721 + $0x2f2] sm:$0xff]
    %v910 = vld [vmem:[%s721 + $0x302] sm:$0xff]
    %v911 = vld [vmem:[%s721 + $0x30a] sm:$0xff]
    %v912 = vld [vmem:[%s721 + $0x31a] sm:$0xff]
    %v913 = vld [vmem:[%s721 + $0x322] sm:$0xff]
    %978 = vrot.lane.b32.xlu0 %v401, 4
    %v979 = vpop.permute.xlu0 %978
    %980 = vrot.lane.b32.xlu0 %v402, 4
    %v981 = vpop.permute.xlu0 %980
    %982 = vrot.lane.b32.xlu0 %v403, 4
    %v983 = vpop.permute.xlu0 %982
    %984 = vrot.lane.b32.xlu0 %v404, 4
    %v985 = vpop.permute.xlu0 %984
    %986 = vrot.lane.b32.xlu0 %v405, 4
    %v987 = vpop.permute.xlu0 %986
    %988 = vrot.lane.b32.xlu0 %v406, 4
    %v989 = vpop.permute.xlu0 %988
    %990 = vrot.lane.b32.xlu0 %v407, 4
    %v991 = vpop.permute.xlu0 %990
    %992 = vrot.lane.b32.xlu0 %v408, 4
    %v993 = vpop.permute.xlu0 %992
    %994 = vrot.lane.b32.xlu0 %v409, 4
    %v995 = vpop.permute.xlu0 %994
    %996 = vrot.lane.b32.xlu0 %v410, 4
    %v997 = vpop.permute.xlu0 %996
    %998 = vrot.lane.b32.xlu0 %v411, 4
    %v999 = vpop.permute.xlu0 %998
    %1000 = vrot.lane.b32.xlu0 %v412, 4
    %v1001 = vpop.permute.xlu0 %1000
    %1002 = vrot.lane.b32.xlu0 %v413, 4
    %v1003 = vpop.permute.xlu0 %1002
    %1004 = vrot.lane.b32.xlu0 %v414, 4
    %v1005 = vpop.permute.xlu0 %1004
    %1006 = vrot.lane.b32.xlu0 %v415, 4
    %v1007 = vpop.permute.xlu0 %1006
    %1008 = vrot.lane.b32.xlu0 %v416, 4
    %v1009 = vpop.permute.xlu0 %1008
    %1010 = vrot.lane.b32.xlu0 %v417, 4
    %v1011 = vpop.permute.xlu0 %1010
    %1012 = vrot.lane.b32.xlu0 %v418, 4
    %v1013 = vpop.permute.xlu0 %1012
    %1014 = vrot.lane.b32.xlu0 %v419, 4
    %v1015 = vpop.permute.xlu0 %1014
    %1016 = vrot.lane.b32.xlu0 %v420, 4
    %v1017 = vpop.permute.xlu0 %1016
    %1018 = vrot.lane.b32.xlu0 %v421, 4
    %v1019 = vpop.permute.xlu0 %1018
    %1020 = vrot.lane.b32.xlu0 %v422, 4
    %v1021 = vpop.permute.xlu0 %1020
    %1022 = vrot.lane.b32.xlu0 %v423, 4
    %v1023 = vpop.permute.xlu0 %1022
    %1024 = vrot.lane.b32.xlu0 %v424, 4
    %v1025 = vpop.permute.xlu0 %1024
    %1026 = vrot.lane.b32.xlu0 %v425, 4
    %v1027 = vpop.permute.xlu0 %1026
    %1028 = vrot.lane.b32.xlu0 %v426, 4
    %v1029 = vpop.permute.xlu0 %1028
    %1030 = vrot.lane.b32.xlu0 %v427, 4
    %v1031 = vpop.permute.xlu0 %1030
    %1032 = vrot.lane.b32.xlu0 %v428, 4
    %v1033 = vpop.permute.xlu0 %1032
    %1034 = vrot.lane.b32.xlu0 %v429, 4
    %v1035 = vpop.permute.xlu0 %1034
    %1036 = vrot.lane.b32.xlu0 %v430, 4
    %v1037 = vpop.permute.xlu0 %1036
    %1038 = vrot.lane.b32.xlu0 %v431, 4
    %v1039 = vpop.permute.xlu0 %1038
    %1040 = vrot.lane.b32.xlu0 %v432, 4
    %v1041 = vpop.permute.xlu0 %1040
    %1042 = vrot.lane.b32.xlu0 %v433, 4
    %v1043 = vpop.permute.xlu0 %1042
    %1044 = vrot.lane.b32.xlu0 %v434, 4
    %v1045 = vpop.permute.xlu0 %1044
    %1046 = vrot.lane.b32.xlu0 %v435, 4
    %v1047 = vpop.permute.xlu0 %1046
    %1048 = vrot.lane.b32.xlu0 %v436, 4
    %v1049 = vpop.permute.xlu0 %1048
    %1050 = vrot.lane.b32.xlu0 %v437, 4
    %v1051 = vpop.permute.xlu0 %1050
    %1052 = vrot.lane.b32.xlu0 %v438, 4
    %v1053 = vpop.permute.xlu0 %1052
    %1054 = vrot.lane.b32.xlu0 %v439, 4
    %v1055 = vpop.permute.xlu0 %1054
    %1056 = vrot.lane.b32.xlu0 %v440, 4
    %v1057 = vpop.permute.xlu0 %1056
    %1058 = vrot.lane.b32.xlu0 %v441, 4
    %v1059 = vpop.permute.xlu0 %1058
    %1060 = vrot.lane.b32.xlu0 %v442, 4
    %v1061 = vpop.permute.xlu0 %1060
    %1062 = vrot.lane.b32.xlu0 %v443, 4
    %v1063 = vpop.permute.xlu0 %1062
    %1064 = vrot.lane.b32.xlu0 %v444, 4
    %v1065 = vpop.permute.xlu0 %1064
    %1066 = vrot.lane.b32.xlu0 %v445, 4
    %v1067 = vpop.permute.xlu0 %1066
    %1068 = vrot.lane.b32.xlu0 %v446, 4
    %v1069 = vpop.permute.xlu0 %1068
    %1070 = vrot.lane.b32.xlu0 %v447, 4
    %v1071 = vpop.permute.xlu0 %1070
    %1072 = vrot.lane.b32.xlu0 %v448, 4
    %v1073 = vpop.permute.xlu0 %1072
    %1074 = vrot.lane.b32.xlu0 %v449, 4
    %v1075 = vpop.permute.xlu0 %1074
    %1076 = vrot.lane.b32.xlu0 %v450, 4
    %v1077 = vpop.permute.xlu0 %1076
    %1078 = vrot.lane.b32.xlu0 %v451, 4
    %v1079 = vpop.permute.xlu0 %1078
    %1080 = vrot.lane.b32.xlu0 %v452, 4
    %v1081 = vpop.permute.xlu0 %1080
    %1082 = vrot.lane.b32.xlu0 %v453, 4
    %v1083 = vpop.permute.xlu0 %1082
    %1084 = vrot.lane.b32.xlu0 %v454, 4
    %v1085 = vpop.permute.xlu0 %1084
    %1086 = vrot.lane.b32.xlu0 %v455, 4
    %v1087 = vpop.permute.xlu0 %1086
    %1088 = vrot.lane.b32.xlu0 %v456, 4
    %v1089 = vpop.permute.xlu0 %1088
    %1090 = vrot.lane.b32.xlu0 %v457, 4
    %v1091 = vpop.permute.xlu0 %1090
    %1092 = vrot.lane.b32.xlu0 %v458, 4
    %v1093 = vpop.permute.xlu0 %1092
    %1094 = vrot.lane.b32.xlu0 %v459, 4
    %v1095 = vpop.permute.xlu0 %1094
    %1096 = vrot.lane.b32.xlu0 %v460, 4
    %v1097 = vpop.permute.xlu0 %1096
    %1098 = vrot.lane.b32.xlu0 %v461, 4
    %v1099 = vpop.permute.xlu0 %1098
    %1100 = vrot.lane.b32.xlu0 %v462, 4
    %v1101 = vpop.permute.xlu0 %1100
    %1102 = vrot.lane.b32.xlu0 %v463, 4
    %v1103 = vpop.permute.xlu0 %1102
    %1104 = vrot.lane.b32.xlu0 %v464, 4
    %v1105 = vpop.permute.xlu0 %1104
    %1234 = vrot.lane.b32.xlu0 %v465, 8
    %v1235 = vpop.permute.xlu0 %1234
    %1236 = vrot.lane.b32.xlu0 %v466, 8
    %v1237 = vpop.permute.xlu0 %1236
    %1238 = vrot.lane.b32.xlu0 %v467, 8
    %v1239 = vpop.permute.xlu0 %1238
    %1240 = vrot.lane.b32.xlu0 %v468, 8
    %v1241 = vpop.permute.xlu0 %1240
    %1242 = vrot.lane.b32.xlu0 %v469, 8
    %v1243 = vpop.permute.xlu0 %1242
    %1244 = vrot.lane.b32.xlu0 %v470, 8
    %v1245 = vpop.permute.xlu0 %1244
    %1246 = vrot.lane.b32.xlu0 %v471, 8
    %v1247 = vpop.permute.xlu0 %1246
    %1248 = vrot.lane.b32.xlu0 %v472, 8
    %v1249 = vpop.permute.xlu0 %1248
    %1250 = vrot.lane.b32.xlu0 %v473, 8
    %v1251 = vpop.permute.xlu0 %1250
    %1252 = vrot.lane.b32.xlu0 %v474, 8
    %v1253 = vpop.permute.xlu0 %1252
    %1254 = vrot.lane.b32.xlu0 %v475, 8
    %v1255 = vpop.permute.xlu0 %1254
    %1256 = vrot.lane.b32.xlu0 %v476, 8
    %v1257 = vpop.permute.xlu0 %1256
    %1258 = vrot.lane.b32.xlu0 %v477, 8
    %v1259 = vpop.permute.xlu0 %1258
    %1260 = vrot.lane.b32.xlu0 %v478, 8
    %v1261 = vpop.permute.xlu0 %1260
    %1262 = vrot.lane.b32.xlu0 %v479, 8
    %v1263 = vpop.permute.xlu0 %1262
    %1264 = vrot.lane.b32.xlu0 %v480, 8
    %v1265 = vpop.permute.xlu0 %1264
    %1266 = vrot.lane.b32.xlu0 %v481, 8
    %v1267 = vpop.permute.xlu0 %1266
    %1268 = vrot.lane.b32.xlu0 %v482, 8
    %v1269 = vpop.permute.xlu0 %1268
    %1270 = vrot.lane.b32.xlu0 %v483, 8
    %v1271 = vpop.permute.xlu0 %1270
    %1272 = vrot.lane.b32.xlu0 %v484, 8
    %v1273 = vpop.permute.xlu0 %1272
    %1274 = vrot.lane.b32.xlu0 %v485, 8
    %v1275 = vpop.permute.xlu0 %1274
    %1276 = vrot.lane.b32.xlu0 %v486, 8
    %v1277 = vpop.permute.xlu0 %1276
    %1278 = vrot.lane.b32.xlu0 %v487, 8
    %v1279 = vpop.permute.xlu0 %1278
    %1280 = vrot.lane.b32.xlu0 %v488, 8
    %v1281 = vpop.permute.xlu0 %1280
    %1282 = vrot.lane.b32.xlu0 %v489, 8
    %v1283 = vpop.permute.xlu0 %1282
    %1284 = vrot.lane.b32.xlu0 %v490, 8
    %v1285 = vpop.permute.xlu0 %1284
    %1286 = vrot.lane.b32.xlu0 %v491, 8
    %v1287 = vpop.permute.xlu0 %1286
    %1288 = vrot.lane.b32.xlu0 %v492, 8
    %v1289 = vpop.permute.xlu0 %1288
    %1290 = vrot.lane.b32.xlu0 %v493, 8
    %v1291 = vpop.permute.xlu0 %1290
    %1292 = vrot.lane.b32.xlu0 %v494, 8
    %v1293 = vpop.permute.xlu0 %1292
    %1294 = vrot.lane.b32.xlu0 %v495, 8
    %v1295 = vpop.permute.xlu0 %1294
    %1296 = vrot.lane.b32.xlu0 %v496, 8
    %v1297 = vpop.permute.xlu0 %1296
    %1298 = vrot.lane.b32.xlu0 %v497, 8
    %v1299 = vpop.permute.xlu0 %1298
    %1300 = vrot.lane.b32.xlu0 %v498, 8
    %v1301 = vpop.permute.xlu0 %1300
    %1302 = vrot.lane.b32.xlu0 %v499, 8
    %v1303 = vpop.permute.xlu0 %1302
    %1304 = vrot.lane.b32.xlu0 %v500, 8
    %v1305 = vpop.permute.xlu0 %1304
    %1306 = vrot.lane.b32.xlu0 %v501, 8
    %v1307 = vpop.permute.xlu0 %1306
    %1308 = vrot.lane.b32.xlu0 %v502, 8
    %v1309 = vpop.permute.xlu0 %1308
    %1310 = vrot.lane.b32.xlu0 %v503, 8
    %v1311 = vpop.permute.xlu0 %1310
    %1312 = vrot.lane.b32.xlu0 %v504, 8
    %v1313 = vpop.permute.xlu0 %1312
    %1314 = vrot.lane.b32.xlu0 %v505, 8
    %v1315 = vpop.permute.xlu0 %1314
    %1316 = vrot.lane.b32.xlu0 %v506, 8
    %v1317 = vpop.permute.xlu0 %1316
    %1318 = vrot.lane.b32.xlu0 %v507, 8
    %v1319 = vpop.permute.xlu0 %1318
    %1320 = vrot.lane.b32.xlu0 %v508, 8
    %v1321 = vpop.permute.xlu0 %1320
    %1322 = vrot.lane.b32.xlu0 %v509, 8
    %v1323 = vpop.permute.xlu0 %1322
    %1324 = vrot.lane.b32.xlu0 %v510, 8
    %v1325 = vpop.permute.xlu0 %1324
    %1326 = vrot.lane.b32.xlu0 %v511, 8
    %v1327 = vpop.permute.xlu0 %1326
    %1328 = vrot.lane.b32.xlu0 %v512, 8
    %v1329 = vpop.permute.xlu0 %1328
    %1330 = vrot.lane.b32.xlu0 %v513, 8
    %v1331 = vpop.permute.xlu0 %1330
    %1332 = vrot.lane.b32.xlu0 %v514, 8
    %v1333 = vpop.permute.xlu0 %1332
    %1334 = vrot.lane.b32.xlu0 %v515, 8
    %v1335 = vpop.permute.xlu0 %1334
    %1336 = vrot.lane.b32.xlu0 %v516, 8
    %v1337 = vpop.permute.xlu0 %1336
    %1338 = vrot.lane.b32.xlu0 %v517, 8
    %v1339 = vpop.permute.xlu0 %1338
    %1340 = vrot.lane.b32.xlu0 %v518, 8
    %v1341 = vpop.permute.xlu0 %1340
    %1342 = vrot.lane.b32.xlu0 %v519, 8
    %v1343 = vpop.permute.xlu0 %1342
    %1344 = vrot.lane.b32.xlu0 %v520, 8
    %v1345 = vpop.permute.xlu0 %1344
    %1346 = vrot.lane.b32.xlu0 %v521, 8
    %v1347 = vpop.permute.xlu0 %1346
    %1348 = vrot.lane.b32.xlu0 %v522, 8
    %v1349 = vpop.permute.xlu0 %1348
    %1350 = vrot.lane.b32.xlu0 %v523, 8
    %v1351 = vpop.permute.xlu0 %1350
    %1352 = vrot.lane.b32.xlu0 %v524, 8
    %v1353 = vpop.permute.xlu0 %1352
    %1354 = vrot.lane.b32.xlu0 %v525, 8
    %v1355 = vpop.permute.xlu0 %1354
    %1356 = vrot.lane.b32.xlu0 %v526, 8
    %v1357 = vpop.permute.xlu0 %1356
    %1358 = vrot.lane.b32.xlu0 %v527, 8
    %v1359 = vpop.permute.xlu0 %1358
    %1360 = vrot.lane.b32.xlu0 %v528, 8
    %v1361 = vpop.permute.xlu0 %1360
    %1490 = vrot.lane.b32.xlu0 %v529, 12
    %v1491 = vpop.permute.xlu0 %1490
    %1492 = vrot.lane.b32.xlu0 %v530, 12
    %v1493 = vpop.permute.xlu0 %1492
    %1494 = vrot.lane.b32.xlu0 %v531, 12
    %v1495 = vpop.permute.xlu0 %1494
    %1496 = vrot.lane.b32.xlu0 %v532, 12
    %v1497 = vpop.permute.xlu0 %1496
    %1498 = vrot.lane.b32.xlu0 %v533, 12
    %v1499 = vpop.permute.xlu0 %1498
    %1500 = vrot.lane.b32.xlu0 %v534, 12
    %v1501 = vpop.permute.xlu0 %1500
    %1502 = vrot.lane.b32.xlu0 %v535, 12
    %v1503 = vpop.permute.xlu0 %1502
    %1504 = vrot.lane.b32.xlu0 %v536, 12
    %v1505 = vpop.permute.xlu0 %1504
    %1506 = vrot.lane.b32.xlu0 %v537, 12
    %v1507 = vpop.permute.xlu0 %1506
    %1508 = vrot.lane.b32.xlu0 %v538, 12
    %v1509 = vpop.permute.xlu0 %1508
    %1510 = vrot.lane.b32.xlu0 %v539, 12
    %v1511 = vpop.permute.xlu0 %1510
    %1512 = vrot.lane.b32.xlu0 %v540, 12
    %v1513 = vpop.permute.xlu0 %1512
    %1514 = vrot.lane.b32.xlu0 %v541, 12
    %v1515 = vpop.permute.xlu0 %1514
    %1516 = vrot.lane.b32.xlu0 %v542, 12
    %v1517 = vpop.permute.xlu0 %1516
    %1518 = vrot.lane.b32.xlu0 %v543, 12
    %v1519 = vpop.permute.xlu0 %1518
    %1520 = vrot.lane.b32.xlu0 %v544, 12
    %v1521 = vpop.permute.xlu0 %1520
    %1522 = vrot.lane.b32.xlu0 %v545, 12
    %v1523 = vpop.permute.xlu0 %1522
    %1524 = vrot.lane.b32.xlu0 %v546, 12
    %v1525 = vpop.permute.xlu0 %1524
    %1526 = vrot.lane.b32.xlu0 %v547, 12
    %v1527 = vpop.permute.xlu0 %1526
    %1528 = vrot.lane.b32.xlu0 %v548, 12
    %v1529 = vpop.permute.xlu0 %1528
    %1530 = vrot.lane.b32.xlu0 %v549, 12
    %v1531 = vpop.permute.xlu0 %1530
    %1532 = vrot.lane.b32.xlu0 %v550, 12
    %v1533 = vpop.permute.xlu0 %1532
    %1534 = vrot.lane.b32.xlu0 %v551, 12
    %v1535 = vpop.permute.xlu0 %1534
    %1536 = vrot.lane.b32.xlu0 %v552, 12
    %v1537 = vpop.permute.xlu0 %1536
    %1538 = vrot.lane.b32.xlu0 %v553, 12
    %v1539 = vpop.permute.xlu0 %1538
    %1540 = vrot.lane.b32.xlu0 %v554, 12
    %v1541 = vpop.permute.xlu0 %1540
    %1542 = vrot.lane.b32.xlu0 %v555, 12
    %v1543 = vpop.permute.xlu0 %1542
    %1544 = vrot.lane.b32.xlu0 %v556, 12
    %v1545 = vpop.permute.xlu0 %1544
    %1546 = vrot.lane.b32.xlu0 %v557, 12
    %v1547 = vpop.permute.xlu0 %1546
    %1548 = vrot.lane.b32.xlu0 %v558, 12
    %v1549 = vpop.permute.xlu0 %1548
    %1550 = vrot.lane.b32.xlu0 %v559, 12
    %v1551 = vpop.permute.xlu0 %1550
    %1552 = vrot.lane.b32.xlu0 %v560, 12
    %v1553 = vpop.permute.xlu0 %1552
    %1554 = vrot.lane.b32.xlu0 %v561, 12
    %v1555 = vpop.permute.xlu0 %1554
    %1556 = vrot.lane.b32.xlu0 %v562, 12
    %v1557 = vpop.permute.xlu0 %1556
    %1558 = vrot.lane.b32.xlu0 %v563, 12
    %v1559 = vpop.permute.xlu0 %1558
    %1560 = vrot.lane.b32.xlu0 %v564, 12
    %v1561 = vpop.permute.xlu0 %1560
    %1562 = vrot.lane.b32.xlu0 %v565, 12
    %v1563 = vpop.permute.xlu0 %1562
    %1564 = vrot.lane.b32.xlu0 %v566, 12
    %v1565 = vpop.permute.xlu0 %1564
    %1566 = vrot.lane.b32.xlu0 %v567, 12
    %v1567 = vpop.permute.xlu0 %1566
    %1568 = vrot.lane.b32.xlu0 %v568, 12
    %v1569 = vpop.permute.xlu0 %1568
    %1570 = vrot.lane.b32.xlu0 %v569, 12
    %v1571 = vpop.permute.xlu0 %1570
    %1572 = vrot.lane.b32.xlu0 %v570, 12
    %v1573 = vpop.permute.xlu0 %1572
    %1574 = vrot.lane.b32.xlu0 %v571, 12
    %v1575 = vpop.permute.xlu0 %1574
    %1576 = vrot.lane.b32.xlu0 %v572, 12
    %v1577 = vpop.permute.xlu0 %1576
    %1578 = vrot.lane.b32.xlu0 %v573, 12
    %v1579 = vpop.permute.xlu0 %1578
    %1580 = vrot.lane.b32.xlu0 %v574, 12
    %v1581 = vpop.permute.xlu0 %1580
    %1582 = vrot.lane.b32.xlu0 %v575, 12
    %v1583 = vpop.permute.xlu0 %1582
    %1584 = vrot.lane.b32.xlu0 %v576, 12
    %v1585 = vpop.permute.xlu0 %1584
    %1586 = vrot.lane.b32.xlu0 %v577, 12
    %v1587 = vpop.permute.xlu0 %1586
    %1588 = vrot.lane.b32.xlu0 %v578, 12
    %v1589 = vpop.permute.xlu0 %1588
    %1590 = vrot.lane.b32.xlu0 %v579, 12
    %v1591 = vpop.permute.xlu0 %1590
    %1592 = vrot.lane.b32.xlu0 %v580, 12
    %v1593 = vpop.permute.xlu0 %1592
    %1594 = vrot.lane.b32.xlu0 %v581, 12
    %v1595 = vpop.permute.xlu0 %1594
    %1596 = vrot.lane.b32.xlu0 %v582, 12
    %v1597 = vpop.permute.xlu0 %1596
    %1598 = vrot.lane.b32.xlu0 %v583, 12
    %v1599 = vpop.permute.xlu0 %1598
    %1600 = vrot.lane.b32.xlu0 %v584, 12
    %v1601 = vpop.permute.xlu0 %1600
    %1602 = vrot.lane.b32.xlu0 %v585, 12
    %v1603 = vpop.permute.xlu0 %1602
    %1604 = vrot.lane.b32.xlu0 %v586, 12
    %v1605 = vpop.permute.xlu0 %1604
    %1606 = vrot.lane.b32.xlu0 %v587, 12
    %v1607 = vpop.permute.xlu0 %1606
    %1608 = vrot.lane.b32.xlu0 %v588, 12
    %v1609 = vpop.permute.xlu0 %1608
    %1610 = vrot.lane.b32.xlu0 %v589, 12
    %v1611 = vpop.permute.xlu0 %1610
    %1612 = vrot.lane.b32.xlu0 %v590, 12
    %v1613 = vpop.permute.xlu0 %1612
    %1614 = vrot.lane.b32.xlu0 %v591, 12
    %v1615 = vpop.permute.xlu0 %1614
    %1616 = vrot.lane.b32.xlu0 %v592, 12
    %v1617 = vpop.permute.xlu0 %1616
    %1746 = vrot.lane.b32.xlu0 %v593, 16
    %v1747 = vpop.permute.xlu0 %1746
    %1748 = vrot.lane.b32.xlu0 %v594, 16
    %v1749 = vpop.permute.xlu0 %1748
    %1750 = vrot.lane.b32.xlu0 %v595, 16
    %v1751 = vpop.permute.xlu0 %1750
    %1752 = vrot.lane.b32.xlu0 %v596, 16
    %v1753 = vpop.permute.xlu0 %1752
    %1754 = vrot.lane.b32.xlu0 %v597, 16
    %v1755 = vpop.permute.xlu0 %1754
    %1756 = vrot.lane.b32.xlu0 %v598, 16
    %v1757 = vpop.permute.xlu0 %1756
    %1758 = vrot.lane.b32.xlu0 %v599, 16
    %v1759 = vpop.permute.xlu0 %1758
    %1760 = vrot.lane.b32.xlu0 %v600, 16
    %v1761 = vpop.permute.xlu0 %1760
    %1762 = vrot.lane.b32.xlu0 %v601, 16
    %v1763 = vpop.permute.xlu0 %1762
    %1764 = vrot.lane.b32.xlu0 %v602, 16
    %v1765 = vpop.permute.xlu0 %1764
    %1766 = vrot.lane.b32.xlu0 %v603, 16
    %v1767 = vpop.permute.xlu0 %1766
    %1768 = vrot.lane.b32.xlu0 %v604, 16
    %v1769 = vpop.permute.xlu0 %1768
    %1770 = vrot.lane.b32.xlu0 %v605, 16
    %v1771 = vpop.permute.xlu0 %1770
    %1772 = vrot.lane.b32.xlu0 %v606, 16
    %v1773 = vpop.permute.xlu0 %1772
    %1774 = vrot.lane.b32.xlu0 %v607, 16
    %v1775 = vpop.permute.xlu0 %1774
    %1776 = vrot.lane.b32.xlu0 %v608, 16
    %v1777 = vpop.permute.xlu0 %1776
    %1778 = vrot.lane.b32.xlu0 %v609, 16
    %v1779 = vpop.permute.xlu0 %1778
    %1780 = vrot.lane.b32.xlu0 %v610, 16
    %v1781 = vpop.permute.xlu0 %1780
    %1782 = vrot.lane.b32.xlu0 %v611, 16
    %v1783 = vpop.permute.xlu0 %1782
    %1784 = vrot.lane.b32.xlu0 %v612, 16
    %v1785 = vpop.permute.xlu0 %1784
    %1786 = vrot.lane.b32.xlu0 %v613, 16
    %v1787 = vpop.permute.xlu0 %1786
    %1788 = vrot.lane.b32.xlu0 %v614, 16
    %v1789 = vpop.permute.xlu0 %1788
    %1790 = vrot.lane.b32.xlu0 %v615, 16
    %v1791 = vpop.permute.xlu0 %1790
    %1792 = vrot.lane.b32.xlu0 %v616, 16
    %v1793 = vpop.permute.xlu0 %1792
    %1794 = vrot.lane.b32.xlu0 %v617, 16
    %v1795 = vpop.permute.xlu0 %1794
    %1796 = vrot.lane.b32.xlu0 %v618, 16
    %v1797 = vpop.permute.xlu0 %1796
    %1798 = vrot.lane.b32.xlu0 %v619, 16
    %v1799 = vpop.permute.xlu0 %1798
    %1800 = vrot.lane.b32.xlu0 %v620, 16
    %v1801 = vpop.permute.xlu0 %1800
    %1802 = vrot.lane.b32.xlu0 %v621, 16
    %v1803 = vpop.permute.xlu0 %1802
    %1804 = vrot.lane.b32.xlu0 %v622, 16
    %v1805 = vpop.permute.xlu0 %1804
    %1806 = vrot.lane.b32.xlu0 %v623, 16
    %v1807 = vpop.permute.xlu0 %1806
    %1808 = vrot.lane.b32.xlu0 %v624, 16
    %v1809 = vpop.permute.xlu0 %1808
    %1810 = vrot.lane.b32.xlu0 %v625, 16
    %v1811 = vpop.permute.xlu0 %1810
    %1812 = vrot.lane.b32.xlu0 %v626, 16
    %v1813 = vpop.permute.xlu0 %1812
    %1814 = vrot.lane.b32.xlu0 %v627, 16
    %v1815 = vpop.permute.xlu0 %1814
    %1816 = vrot.lane.b32.xlu0 %v628, 16
    %v1817 = vpop.permute.xlu0 %1816
    %1818 = vrot.lane.b32.xlu0 %v629, 16
    %v1819 = vpop.permute.xlu0 %1818
    %1820 = vrot.lane.b32.xlu0 %v630, 16
    %v1821 = vpop.permute.xlu0 %1820
    %1822 = vrot.lane.b32.xlu0 %v631, 16
    %v1823 = vpop.permute.xlu0 %1822
    %1824 = vrot.lane.b32.xlu0 %v632, 16
    %v1825 = vpop.permute.xlu0 %1824
    %1826 = vrot.lane.b32.xlu0 %v633, 16
    %v1827 = vpop.permute.xlu0 %1826
    %1828 = vrot.lane.b32.xlu0 %v634, 16
    %v1829 = vpop.permute.xlu0 %1828
    %1830 = vrot.lane.b32.xlu0 %v635, 16
    %v1831 = vpop.permute.xlu0 %1830
    %1832 = vrot.lane.b32.xlu0 %v636, 16
    %v1833 = vpop.permute.xlu0 %1832
    %1834 = vrot.lane.b32.xlu0 %v637, 16
    %v1835 = vpop.permute.xlu0 %1834
    %1836 = vrot.lane.b32.xlu0 %v638, 16
    %v1837 = vpop.permute.xlu0 %1836
    %1838 = vrot.lane.b32.xlu0 %v639, 16
    %v1839 = vpop.permute.xlu0 %1838
    %1840 = vrot.lane.b32.xlu0 %v640, 16
    %v1841 = vpop.permute.xlu0 %1840
    %1842 = vrot.lane.b32.xlu0 %v641, 16
    %v1843 = vpop.permute.xlu0 %1842
    %1844 = vrot.lane.b32.xlu0 %v642, 16
    %v1845 = vpop.permute.xlu0 %1844
    %1846 = vrot.lane.b32.xlu0 %v643, 16
    %v1847 = vpop.permute.xlu0 %1846
    %1848 = vrot.lane.b32.xlu0 %v644, 16
    %v1849 = vpop.permute.xlu0 %1848
    %1850 = vrot.lane.b32.xlu0 %v645, 16
    %v1851 = vpop.permute.xlu0 %1850
    %1852 = vrot.lane.b32.xlu0 %v646, 16
    %v1853 = vpop.permute.xlu0 %1852
    %1854 = vrot.lane.b32.xlu0 %v647, 16
    %v1855 = vpop.permute.xlu0 %1854
    %1856 = vrot.lane.b32.xlu0 %v648, 16
    %v1857 = vpop.permute.xlu0 %1856
    %1858 = vrot.lane.b32.xlu0 %v649, 16
    %v1859 = vpop.permute.xlu0 %1858
    %1860 = vrot.lane.b32.xlu0 %v650, 16
    %v1861 = vpop.permute.xlu0 %1860
    %1862 = vrot.lane.b32.xlu0 %v651, 16
    %v1863 = vpop.permute.xlu0 %1862
    %1864 = vrot.lane.b32.xlu0 %v652, 16
    %v1865 = vpop.permute.xlu0 %1864
    %1866 = vrot.lane.b32.xlu0 %v653, 16
    %v1867 = vpop.permute.xlu0 %1866
    %1868 = vrot.lane.b32.xlu0 %v654, 16
    %v1869 = vpop.permute.xlu0 %1868
    %1870 = vrot.lane.b32.xlu0 %v655, 16
    %v1871 = vpop.permute.xlu0 %1870
    %1872 = vrot.lane.b32.xlu0 %v656, 16
    %v1873 = vpop.permute.xlu0 %1872
    %2002 = vrot.lane.b32.xlu0 %v657, 20
    %v2003 = vpop.permute.xlu0 %2002
    %2004 = vrot.lane.b32.xlu0 %v658, 20
    %v2005 = vpop.permute.xlu0 %2004
    %2006 = vrot.lane.b32.xlu0 %v659, 20
    %v2007 = vpop.permute.xlu0 %2006
    %2008 = vrot.lane.b32.xlu0 %v660, 20
    %v2009 = vpop.permute.xlu0 %2008
    %2010 = vrot.lane.b32.xlu0 %v661, 20
    %v2011 = vpop.permute.xlu0 %2010
    %2012 = vrot.lane.b32.xlu0 %v662, 20
    %v2013 = vpop.permute.xlu0 %2012
    %2014 = vrot.lane.b32.xlu0 %v663, 20
    %v2015 = vpop.permute.xlu0 %2014
    %2016 = vrot.lane.b32.xlu0 %v664, 20
    %v2017 = vpop.permute.xlu0 %2016
    %2018 = vrot.lane.b32.xlu0 %v665, 20
    %v2019 = vpop.permute.xlu0 %2018
    %2020 = vrot.lane.b32.xlu0 %v666, 20
    %v2021 = vpop.permute.xlu0 %2020
    %2022 = vrot.lane.b32.xlu0 %v667, 20
    %v2023 = vpop.permute.xlu0 %2022
    %2024 = vrot.lane.b32.xlu0 %v668, 20
    %v2025 = vpop.permute.xlu0 %2024
    %2026 = vrot.lane.b32.xlu0 %v669, 20
    %v2027 = vpop.permute.xlu0 %2026
    %2028 = vrot.lane.b32.xlu0 %v670, 20
    %v2029 = vpop.permute.xlu0 %2028
    %2030 = vrot.lane.b32.xlu0 %v671, 20
    %v2031 = vpop.permute.xlu0 %2030
    %2032 = vrot.lane.b32.xlu0 %v672, 20
    %v2033 = vpop.permute.xlu0 %2032
    %2034 = vrot.lane.b32.xlu0 %v673, 20
    %v2035 = vpop.permute.xlu0 %2034
    %2036 = vrot.lane.b32.xlu0 %v674, 20
    %v2037 = vpop.permute.xlu0 %2036
    %2038 = vrot.lane.b32.xlu0 %v675, 20
    %v2039 = vpop.permute.xlu0 %2038
    %2040 = vrot.lane.b32.xlu0 %v676, 20
    %v2041 = vpop.permute.xlu0 %2040
    %2042 = vrot.lane.b32.xlu0 %v677, 20
    %v2043 = vpop.permute.xlu0 %2042
    %2044 = vrot.lane.b32.xlu0 %v678, 20
    %v2045 = vpop.permute.xlu0 %2044
    %2046 = vrot.lane.b32.xlu0 %v679, 20
    %v2047 = vpop.permute.xlu0 %2046
    %2048 = vrot.lane.b32.xlu0 %v680, 20
    %v2049 = vpop.permute.xlu0 %2048
    %2050 = vrot.lane.b32.xlu0 %v681, 20
    %v2051 = vpop.permute.xlu0 %2050
    %2052 = vrot.lane.b32.xlu0 %v682, 20
    %v2053 = vpop.permute.xlu0 %2052
    %2054 = vrot.lane.b32.xlu0 %v683, 20
    %v2055 = vpop.permute.xlu0 %2054
    %2056 = vrot.lane.b32.xlu0 %v684, 20
    %v2057 = vpop.permute.xlu0 %2056
    %2058 = vrot.lane.b32.xlu0 %v685, 20
    %v2059 = vpop.permute.xlu0 %2058
    %2060 = vrot.lane.b32.xlu0 %v686, 20
    %v2061 = vpop.permute.xlu0 %2060
    %2062 = vrot.lane.b32.xlu0 %v687, 20
    %v2063 = vpop.permute.xlu0 %2062
    %2064 = vrot.lane.b32.xlu0 %v688, 20
    %v2065 = vpop.permute.xlu0 %2064
    %2066 = vrot.lane.b32.xlu0 %v689, 20
    %v2067 = vpop.permute.xlu0 %2066
    %2068 = vrot.lane.b32.xlu0 %v690, 20
    %v2069 = vpop.permute.xlu0 %2068
    %2070 = vrot.lane.b32.xlu0 %v691, 20
    %v2071 = vpop.permute.xlu0 %2070
    %2072 = vrot.lane.b32.xlu0 %v692, 20
    %v2073 = vpop.permute.xlu0 %2072
    %2074 = vrot.lane.b32.xlu0 %v693, 20
    %v2075 = vpop.permute.xlu0 %2074
    %2076 = vrot.lane.b32.xlu0 %v694, 20
    %v2077 = vpop.permute.xlu0 %2076
    %2078 = vrot.lane.b32.xlu0 %v695, 20
    %v2079 = vpop.permute.xlu0 %2078
    %2080 = vrot.lane.b32.xlu0 %v696, 20
    %v2081 = vpop.permute.xlu0 %2080
    %2082 = vrot.lane.b32.xlu0 %v697, 20
    %v2083 = vpop.permute.xlu0 %2082
    %2084 = vrot.lane.b32.xlu0 %v698, 20
    %v2085 = vpop.permute.xlu0 %2084
    %2086 = vrot.lane.b32.xlu0 %v699, 20
    %v2087 = vpop.permute.xlu0 %2086
    %2088 = vrot.lane.b32.xlu0 %v700, 20
    %v2089 = vpop.permute.xlu0 %2088
    %2090 = vrot.lane.b32.xlu0 %v701, 20
    %v2091 = vpop.permute.xlu0 %2090
    %2092 = vrot.lane.b32.xlu0 %v702, 20
    %v2093 = vpop.permute.xlu0 %2092
    %2094 = vrot.lane.b32.xlu0 %v703, 20
    %v2095 = vpop.permute.xlu0 %2094
    %2096 = vrot.lane.b32.xlu0 %v704, 20
    %v2097 = vpop.permute.xlu0 %2096
    %2098 = vrot.lane.b32.xlu0 %v705, 20
    %v2099 = vpop.permute.xlu0 %2098
    %2100 = vrot.lane.b32.xlu0 %v706, 20
    %v2101 = vpop.permute.xlu0 %2100
    %2102 = vrot.lane.b32.xlu0 %v707, 20
    %v2103 = vpop.permute.xlu0 %2102
    %2104 = vrot.lane.b32.xlu0 %v708, 20
    %v2105 = vpop.permute.xlu0 %2104
    %2106 = vrot.lane.b32.xlu0 %v709, 20
    %v2107 = vpop.permute.xlu0 %2106
    %2108 = vrot.lane.b32.xlu0 %v710, 20
    %v2109 = vpop.permute.xlu0 %2108
    %2110 = vrot.lane.b32.xlu0 %v711, 20
    %v2111 = vpop.permute.xlu0 %2110
    %2112 = vrot.lane.b32.xlu0 %v712, 20
    %v2113 = vpop.permute.xlu0 %2112
    %2114 = vrot.lane.b32.xlu0 %v713, 20
    %v2115 = vpop.permute.xlu0 %2114
    %2116 = vrot.lane.b32.xlu0 %v714, 20
    %v2117 = vpop.permute.xlu0 %2116
    %2118 = vrot.lane.b32.xlu0 %v715, 20
    %v2119 = vpop.permute.xlu0 %2118
    %2120 = vrot.lane.b32.xlu0 %v716, 20
    %v2121 = vpop.permute.xlu0 %2120
    %2122 = vrot.lane.b32.xlu0 %v717, 20
    %v2123 = vpop.permute.xlu0 %2122
    %2124 = vrot.lane.b32.xlu0 %v718, 20
    %v2125 = vpop.permute.xlu0 %2124
    %2126 = vrot.lane.b32.xlu0 %v719, 20
    %v2127 = vpop.permute.xlu0 %2126
    %2128 = vrot.lane.b32.xlu0 %v720, 20
    %v2129 = vpop.permute.xlu0 %2128
    %2258 = vrot.lane.b32.xlu0 %v722, 24
    %v2259 = vpop.permute.xlu0 %2258
    %2260 = vrot.lane.b32.xlu0 %v723, 24
    %v2261 = vpop.permute.xlu0 %2260
    %2262 = vrot.lane.b32.xlu0 %v724, 24
    %v2263 = vpop.permute.xlu0 %2262
    %2264 = vrot.lane.b32.xlu0 %v725, 24
    %v2265 = vpop.permute.xlu0 %2264
    %2266 = vrot.lane.b32.xlu0 %v726, 24
    %v2267 = vpop.permute.xlu0 %2266
    %2268 = vrot.lane.b32.xlu0 %v727, 24
    %v2269 = vpop.permute.xlu0 %2268
    %2270 = vrot.lane.b32.xlu0 %v728, 24
    %v2271 = vpop.permute.xlu0 %2270
    %2272 = vrot.lane.b32.xlu0 %v729, 24
    %v2273 = vpop.permute.xlu0 %2272
    %2274 = vrot.lane.b32.xlu0 %v730, 24
    %v2275 = vpop.permute.xlu0 %2274
    %2276 = vrot.lane.b32.xlu0 %v731, 24
    %v2277 = vpop.permute.xlu0 %2276
    %2278 = vrot.lane.b32.xlu0 %v732, 24
    %v2279 = vpop.permute.xlu0 %2278
    %2280 = vrot.lane.b32.xlu0 %v733, 24
    %v2281 = vpop.permute.xlu0 %2280
    %2282 = vrot.lane.b32.xlu0 %v734, 24
    %v2283 = vpop.permute.xlu0 %2282
    %2284 = vrot.lane.b32.xlu0 %v735, 24
    %v2285 = vpop.permute.xlu0 %2284
    %2286 = vrot.lane.b32.xlu0 %v736, 24
    %v2287 = vpop.permute.xlu0 %2286
    %2288 = vrot.lane.b32.xlu0 %v737, 24
    %v2289 = vpop.permute.xlu0 %2288
    %2290 = vrot.lane.b32.xlu0 %v738, 24
    %v2291 = vpop.permute.xlu0 %2290
    %2292 = vrot.lane.b32.xlu0 %v739, 24
    %v2293 = vpop.permute.xlu0 %2292
    %2294 = vrot.lane.b32.xlu0 %v740, 24
    %v2295 = vpop.permute.xlu0 %2294
    %2296 = vrot.lane.b32.xlu0 %v741, 24
    %v2297 = vpop.permute.xlu0 %2296
    %2298 = vrot.lane.b32.xlu0 %v742, 24
    %v2299 = vpop.permute.xlu0 %2298
    %2300 = vrot.lane.b32.xlu0 %v743, 24
    %v2301 = vpop.permute.xlu0 %2300
    %2302 = vrot.lane.b32.xlu0 %v744, 24
    %v2303 = vpop.permute.xlu0 %2302
    %2304 = vrot.lane.b32.xlu0 %v745, 24
    %v2305 = vpop.permute.xlu0 %2304
    %2306 = vrot.lane.b32.xlu0 %v746, 24
    %v2307 = vpop.permute.xlu0 %2306
    %2308 = vrot.lane.b32.xlu0 %v747, 24
    %v2309 = vpop.permute.xlu0 %2308
    %2310 = vrot.lane.b32.xlu0 %v748, 24
    %v2311 = vpop.permute.xlu0 %2310
    %2312 = vrot.lane.b32.xlu0 %v749, 24
    %v2313 = vpop.permute.xlu0 %2312
    %2314 = vrot.lane.b32.xlu0 %v750, 24
    %v2315 = vpop.permute.xlu0 %2314
    %2316 = vrot.lane.b32.xlu0 %v751, 24
    %v2317 = vpop.permute.xlu0 %2316
    %2318 = vrot.lane.b32.xlu0 %v752, 24
    %v2319 = vpop.permute.xlu0 %2318
    %2320 = vrot.lane.b32.xlu0 %v753, 24
    %v2321 = vpop.permute.xlu0 %2320
    %2322 = vrot.lane.b32.xlu0 %v754, 24
    %v2323 = vpop.permute.xlu0 %2322
    %2324 = vrot.lane.b32.xlu0 %v755, 24
    %v2325 = vpop.permute.xlu0 %2324
    %2326 = vrot.lane.b32.xlu0 %v756, 24
    %v2327 = vpop.permute.xlu0 %2326
    %2328 = vrot.lane.b32.xlu0 %v757, 24
    %v2329 = vpop.permute.xlu0 %2328
    %2330 = vrot.lane.b32.xlu0 %v758, 24
    %v2331 = vpop.permute.xlu0 %2330
    %2332 = vrot.lane.b32.xlu0 %v759, 24
    %v2333 = vpop.permute.xlu0 %2332
    %2334 = vrot.lane.b32.xlu0 %v760, 24
    %v2335 = vpop.permute.xlu0 %2334
    %2336 = vrot.lane.b32.xlu0 %v761, 24
    %v2337 = vpop.permute.xlu0 %2336
    %2338 = vrot.lane.b32.xlu0 %v762, 24
    %v2339 = vpop.permute.xlu0 %2338
    %2340 = vrot.lane.b32.xlu0 %v763, 24
    %v2341 = vpop.permute.xlu0 %2340
    %2342 = vrot.lane.b32.xlu0 %v764, 24
    %v2343 = vpop.permute.xlu0 %2342
    %2344 = vrot.lane.b32.xlu0 %v765, 24
    %v2345 = vpop.permute.xlu0 %2344
    %2346 = vrot.lane.b32.xlu0 %v766, 24
    %v2347 = vpop.permute.xlu0 %2346
    %2348 = vrot.lane.b32.xlu0 %v767, 24
    %v2349 = vpop.permute.xlu0 %2348
    %2350 = vrot.lane.b32.xlu0 %v768, 24
    %v2351 = vpop.permute.xlu0 %2350
    %2352 = vrot.lane.b32.xlu0 %v769, 24
    %v2353 = vpop.permute.xlu0 %2352
    %2354 = vrot.lane.b32.xlu0 %v770, 24
    %v2355 = vpop.permute.xlu0 %2354
    %2356 = vrot.lane.b32.xlu0 %v771, 24
    %v2357 = vpop.permute.xlu0 %2356
    %2358 = vrot.lane.b32.xlu0 %v772, 24
    %v2359 = vpop.permute.xlu0 %2358
    %2360 = vrot.lane.b32.xlu0 %v773, 24
    %v2361 = vpop.permute.xlu0 %2360
    %2362 = vrot.lane.b32.xlu0 %v774, 24
    %v2363 = vpop.permute.xlu0 %2362
    %2364 = vrot.lane.b32.xlu0 %v775, 24
    %v2365 = vpop.permute.xlu0 %2364
    %2366 = vrot.lane.b32.xlu0 %v776, 24
    %v2367 = vpop.permute.xlu0 %2366
    %2368 = vrot.lane.b32.xlu0 %v777, 24
    %v2369 = vpop.permute.xlu0 %2368
    %2370 = vrot.lane.b32.xlu0 %v778, 24
    %v2371 = vpop.permute.xlu0 %2370
    %2372 = vrot.lane.b32.xlu0 %v779, 24
    %v2373 = vpop.permute.xlu0 %2372
    %2374 = vrot.lane.b32.xlu0 %v780, 24
    %v2375 = vpop.permute.xlu0 %2374
    %2376 = vrot.lane.b32.xlu0 %v781, 24
    %v2377 = vpop.permute.xlu0 %2376
    %2378 = vrot.lane.b32.xlu0 %v782, 24
    %v2379 = vpop.permute.xlu0 %2378
    %2380 = vrot.lane.b32.xlu0 %v783, 24
    %v2381 = vpop.permute.xlu0 %2380
    %2382 = vrot.lane.b32.xlu0 %v784, 24
    %v2383 = vpop.permute.xlu0 %2382
    %2384 = vrot.lane.b32.xlu0 %v785, 24
    %v2385 = vpop.permute.xlu0 %2384
    %2514 = vrot.lane.b32.xlu0 %v786, 28
    %v2515 = vpop.permute.xlu0 %2514
    %2516 = vrot.lane.b32.xlu0 %v787, 28
    %v2517 = vpop.permute.xlu0 %2516
    %2518 = vrot.lane.b32.xlu0 %v788, 28
    %v2519 = vpop.permute.xlu0 %2518
    %2520 = vrot.lane.b32.xlu0 %v789, 28
    %v2521 = vpop.permute.xlu0 %2520
    %2522 = vrot.lane.b32.xlu0 %v790, 28
    %v2523 = vpop.permute.xlu0 %2522
    %2524 = vrot.lane.b32.xlu0 %v791, 28
    %v2525 = vpop.permute.xlu0 %2524
    %2526 = vrot.lane.b32.xlu0 %v792, 28
    %v2527 = vpop.permute.xlu0 %2526
    %2528 = vrot.lane.b32.xlu0 %v793, 28
    %v2529 = vpop.permute.xlu0 %2528
    %2530 = vrot.lane.b32.xlu0 %v794, 28
    %v2531 = vpop.permute.xlu0 %2530
    %2532 = vrot.lane.b32.xlu0 %v795, 28
    %v2533 = vpop.permute.xlu0 %2532
    %2534 = vrot.lane.b32.xlu0 %v796, 28
    %v2535 = vpop.permute.xlu0 %2534
    %2536 = vrot.lane.b32.xlu0 %v797, 28
    %v2537 = vpop.permute.xlu0 %2536
    %2538 = vrot.lane.b32.xlu0 %v798, 28
    %v2539 = vpop.permute.xlu0 %2538
    %2540 = vrot.lane.b32.xlu0 %v799, 28
    %v2541 = vpop.permute.xlu0 %2540
    %2542 = vrot.lane.b32.xlu0 %v800, 28
    %v2543 = vpop.permute.xlu0 %2542
    %2544 = vrot.lane.b32.xlu0 %v801, 28
    %v2545 = vpop.permute.xlu0 %2544
    %2546 = vrot.lane.b32.xlu0 %v802, 28
    %v2547 = vpop.permute.xlu0 %2546
    %2548 = vrot.lane.b32.xlu0 %v803, 28
    %v2549 = vpop.permute.xlu0 %2548
    %2550 = vrot.lane.b32.xlu0 %v804, 28
    %v2551 = vpop.permute.xlu0 %2550
    %2552 = vrot.lane.b32.xlu0 %v805, 28
    %v2553 = vpop.permute.xlu0 %2552
    %2554 = vrot.lane.b32.xlu0 %v806, 28
    %v2555 = vpop.permute.xlu0 %2554
    %2556 = vrot.lane.b32.xlu0 %v807, 28
    %v2557 = vpop.permute.xlu0 %2556
    %2558 = vrot.lane.b32.xlu0 %v808, 28
    %v2559 = vpop.permute.xlu0 %2558
    %2560 = vrot.lane.b32.xlu0 %v809, 28
    %v2561 = vpop.permute.xlu0 %2560
    %2562 = vrot.lane.b32.xlu0 %v810, 28
    %v2563 = vpop.permute.xlu0 %2562
    %2564 = vrot.lane.b32.xlu0 %v811, 28
    %v2565 = vpop.permute.xlu0 %2564
    %2566 = vrot.lane.b32.xlu0 %v812, 28
    %v2567 = vpop.permute.xlu0 %2566
    %2568 = vrot.lane.b32.xlu0 %v813, 28
    %v2569 = vpop.permute.xlu0 %2568
    %2570 = vrot.lane.b32.xlu0 %v814, 28
    %v2571 = vpop.permute.xlu0 %2570
    %2572 = vrot.lane.b32.xlu0 %v815, 28
    %v2573 = vpop.permute.xlu0 %2572
    %2574 = vrot.lane.b32.xlu0 %v816, 28
    %v2575 = vpop.permute.xlu0 %2574
    %2576 = vrot.lane.b32.xlu0 %v817, 28
    %v2577 = vpop.permute.xlu0 %2576
    %2578 = vrot.lane.b32.xlu0 %v818, 28
    %v2579 = vpop.permute.xlu0 %2578
    %2580 = vrot.lane.b32.xlu0 %v819, 28
    %v2581 = vpop.permute.xlu0 %2580
    %2582 = vrot.lane.b32.xlu0 %v820, 28
    %v2583 = vpop.permute.xlu0 %2582
    %2584 = vrot.lane.b32.xlu0 %v821, 28
    %v2585 = vpop.permute.xlu0 %2584
    %2586 = vrot.lane.b32.xlu0 %v822, 28
    %v2587 = vpop.permute.xlu0 %2586
    %2588 = vrot.lane.b32.xlu0 %v823, 28
    %v2589 = vpop.permute.xlu0 %2588
    %2590 = vrot.lane.b32.xlu0 %v824, 28
    %v2591 = vpop.permute.xlu0 %2590
    %2592 = vrot.lane.b32.xlu0 %v825, 28
    %v2593 = vpop.permute.xlu0 %2592
    %2594 = vrot.lane.b32.xlu0 %v826, 28
    %v2595 = vpop.permute.xlu0 %2594
    %2596 = vrot.lane.b32.xlu0 %v827, 28
    %v2597 = vpop.permute.xlu0 %2596
    %2598 = vrot.lane.b32.xlu0 %v828, 28
    %v2599 = vpop.permute.xlu0 %2598
    %2600 = vrot.lane.b32.xlu0 %v829, 28
    %v2601 = vpop.permute.xlu0 %2600
    %2602 = vrot.lane.b32.xlu0 %v830, 28
    %v2603 = vpop.permute.xlu0 %2602
    %2604 = vrot.lane.b32.xlu0 %v831, 28
    %v2605 = vpop.permute.xlu0 %2604
    %2606 = vrot.lane.b32.xlu0 %v832, 28
    %v2607 = vpop.permute.xlu0 %2606
    %2608 = vrot.lane.b32.xlu0 %v833, 28
    %v2609 = vpop.permute.xlu0 %2608
    %2610 = vrot.lane.b32.xlu0 %v834, 28
    %v2611 = vpop.permute.xlu0 %2610
    %2612 = vrot.lane.b32.xlu0 %v835, 28
    %v2613 = vpop.permute.xlu0 %2612
    %2614 = vrot.lane.b32.xlu0 %v836, 28
    %v2615 = vpop.permute.xlu0 %2614
    %2616 = vrot.lane.b32.xlu0 %v837, 28
    %v2617 = vpop.permute.xlu0 %2616
    %2618 = vrot.lane.b32.xlu0 %v838, 28
    %v2619 = vpop.permute.xlu0 %2618
    %2620 = vrot.lane.b32.xlu0 %v839, 28
    %v2621 = vpop.permute.xlu0 %2620
    %2622 = vrot.lane.b32.xlu0 %v840, 28
    %v2623 = vpop.permute.xlu0 %2622
    %2624 = vrot.lane.b32.xlu0 %v841, 28
    %v2625 = vpop.permute.xlu0 %2624
    %2626 = vrot.lane.b32.xlu0 %v842, 28
    %v2627 = vpop.permute.xlu0 %2626
    %2628 = vrot.lane.b32.xlu0 %v843, 28
    %v2629 = vpop.permute.xlu0 %2628
    %2630 = vrot.lane.b32.xlu0 %v844, 28
    %v2631 = vpop.permute.xlu0 %2630
    %2632 = vrot.lane.b32.xlu0 %v845, 28
    %v2633 = vpop.permute.xlu0 %2632
    %2634 = vrot.lane.b32.xlu0 %v846, 28
    %v2635 = vpop.permute.xlu0 %2634
    %2636 = vrot.lane.b32.xlu0 %v847, 28
    %v2637 = vpop.permute.xlu0 %2636
    %2638 = vrot.lane.b32.xlu0 %v848, 28
    %v2639 = vpop.permute.xlu0 %2638
    %2640 = vrot.lane.b32.xlu0 %v849, 28
    %v2641 = vpop.permute.xlu0 %2640
    %2770 = vrot.lane.b32.xlu0 %v850, 32
    %v2771 = vpop.permute.xlu0 %2770
    %2772 = vrot.lane.b32.xlu0 %v851, 32
    %v2773 = vpop.permute.xlu0 %2772
    %2774 = vrot.lane.b32.xlu0 %v852, 32
    %v2775 = vpop.permute.xlu0 %2774
    %2776 = vrot.lane.b32.xlu0 %v853, 32
    %v2777 = vpop.permute.xlu0 %2776
    %2778 = vrot.lane.b32.xlu0 %v854, 32
    %v2779 = vpop.permute.xlu0 %2778
    %2780 = vrot.lane.b32.xlu0 %v855, 32
    %v2781 = vpop.permute.xlu0 %2780
    %2782 = vrot.lane.b32.xlu0 %v856, 32
    %v2783 = vpop.permute.xlu0 %2782
    %2784 = vrot.lane.b32.xlu0 %v857, 32
    %v2785 = vpop.permute.xlu0 %2784
    %2786 = vrot.lane.b32.xlu0 %v858, 32
    %v2787 = vpop.permute.xlu0 %2786
    %2788 = vrot.lane.b32.xlu0 %v859, 32
    %v2789 = vpop.permute.xlu0 %2788
    %2790 = vrot.lane.b32.xlu0 %v860, 32
    %v2791 = vpop.permute.xlu0 %2790
    %2792 = vrot.lane.b32.xlu0 %v861, 32
    %v2793 = vpop.permute.xlu0 %2792
    %2794 = vrot.lane.b32.xlu0 %v862, 32
    %v2795 = vpop.permute.xlu0 %2794
    %2796 = vrot.lane.b32.xlu0 %v863, 32
    %v2797 = vpop.permute.xlu0 %2796
    %2798 = vrot.lane.b32.xlu0 %v864, 32
    %v2799 = vpop.permute.xlu0 %2798
    %2800 = vrot.lane.b32.xlu0 %v865, 32
    %v2801 = vpop.permute.xlu0 %2800
    %2802 = vrot.lane.b32.xlu0 %v866, 32
    %v2803 = vpop.permute.xlu0 %2802
    %2804 = vrot.lane.b32.xlu0 %v867, 32
    %v2805 = vpop.permute.xlu0 %2804
    %2806 = vrot.lane.b32.xlu0 %v868, 32
    %v2807 = vpop.permute.xlu0 %2806
    %2808 = vrot.lane.b32.xlu0 %v869, 32
    %v2809 = vpop.permute.xlu0 %2808
    %2810 = vrot.lane.b32.xlu0 %v870, 32
    %v2811 = vpop.permute.xlu0 %2810
    %2812 = vrot.lane.b32.xlu0 %v871, 32
    %v2813 = vpop.permute.xlu0 %2812
    %2814 = vrot.lane.b32.xlu0 %v872, 32
    %v2815 = vpop.permute.xlu0 %2814
    %2816 = vrot.lane.b32.xlu0 %v873, 32
    %v2817 = vpop.permute.xlu0 %2816
    %2818 = vrot.lane.b32.xlu0 %v874, 32
    %v2819 = vpop.permute.xlu0 %2818
    %2820 = vrot.lane.b32.xlu0 %v875, 32
    %v2821 = vpop.permute.xlu0 %2820
    %2822 = vrot.lane.b32.xlu0 %v876, 32
    %v2823 = vpop.permute.xlu0 %2822
    %2824 = vrot.lane.b32.xlu0 %v877, 32
    %v2825 = vpop.permute.xlu0 %2824
    %2826 = vrot.lane.b32.xlu0 %v878, 32
    %v2827 = vpop.permute.xlu0 %2826
    %2828 = vrot.lane.b32.xlu0 %v879, 32
    %v2829 = vpop.permute.xlu0 %2828
    %2830 = vrot.lane.b32.xlu0 %v880, 32
    %v2831 = vpop.permute.xlu0 %2830
    %2832 = vrot.lane.b32.xlu0 %v881, 32
    %v2833 = vpop.permute.xlu0 %2832
    %2834 = vrot.lane.b32.xlu0 %v882, 32
    %v2835 = vpop.permute.xlu0 %2834
    %2836 = vrot.lane.b32.xlu0 %v883, 32
    %v2837 = vpop.permute.xlu0 %2836
    %2838 = vrot.lane.b32.xlu0 %v884, 32
    %v2839 = vpop.permute.xlu0 %2838
    %2840 = vrot.lane.b32.xlu0 %v885, 32
    %v2841 = vpop.permute.xlu0 %2840
    %2842 = vrot.lane.b32.xlu0 %v886, 32
    %v2843 = vpop.permute.xlu0 %2842
    %2844 = vrot.lane.b32.xlu0 %v887, 32
    %v2845 = vpop.permute.xlu0 %2844
    %2846 = vrot.lane.b32.xlu0 %v888, 32
    %v2847 = vpop.permute.xlu0 %2846
    %2848 = vrot.lane.b32.xlu0 %v889, 32
    %v2849 = vpop.permute.xlu0 %2848
    %2850 = vrot.lane.b32.xlu0 %v890, 32
    %v2851 = vpop.permute.xlu0 %2850
    %2852 = vrot.lane.b32.xlu0 %v891, 32
    %v2853 = vpop.permute.xlu0 %2852
    %2854 = vrot.lane.b32.xlu0 %v892, 32
    %v2855 = vpop.permute.xlu0 %2854
    %2856 = vrot.lane.b32.xlu0 %v893, 32
    %v2857 = vpop.permute.xlu0 %2856
    %2858 = vrot.lane.b32.xlu0 %v894, 32
    %v2859 = vpop.permute.xlu0 %2858
    %2860 = vrot.lane.b32.xlu0 %v895, 32
    %v2861 = vpop.permute.xlu0 %2860
    %2862 = vrot.lane.b32.xlu0 %v896, 32
    %v2863 = vpop.permute.xlu0 %2862
    %2864 = vrot.lane.b32.xlu0 %v897, 32
    %v2865 = vpop.permute.xlu0 %2864
    %2866 = vrot.lane.b32.xlu0 %v898, 32
    %v2867 = vpop.permute.xlu0 %2866
    %2868 = vrot.lane.b32.xlu0 %v899, 32
    %v2869 = vpop.permute.xlu0 %2868
    %2870 = vrot.lane.b32.xlu0 %v900, 32
    %v2871 = vpop.permute.xlu0 %2870
    %2872 = vrot.lane.b32.xlu0 %v901, 32
    %v2873 = vpop.permute.xlu0 %2872
    %2874 = vrot.lane.b32.xlu0 %v902, 32
    %v2875 = vpop.permute.xlu0 %2874
    %2876 = vrot.lane.b32.xlu0 %v903, 32
    %v2877 = vpop.permute.xlu0 %2876
    %2878 = vrot.lane.b32.xlu0 %v904, 32
    %v2879 = vpop.permute.xlu0 %2878
    %2880 = vrot.lane.b32.xlu0 %v905, 32
    %v2881 = vpop.permute.xlu0 %2880
    %2882 = vrot.lane.b32.xlu0 %v906, 32
    %v2883 = vpop.permute.xlu0 %2882
    %2884 = vrot.lane.b32.xlu0 %v907, 32
    %v2885 = vpop.permute.xlu0 %2884
    %2886 = vrot.lane.b32.xlu0 %v908, 32
    %v2887 = vpop.permute.xlu0 %2886
    %2888 = vrot.lane.b32.xlu0 %v909, 32
    %v2889 = vpop.permute.xlu0 %2888
    %2890 = vrot.lane.b32.xlu0 %v910, 32
    %v2891 = vpop.permute.xlu0 %2890
    %2892 = vrot.lane.b32.xlu0 %v911, 32
    %v2893 = vpop.permute.xlu0 %2892
    %2894 = vrot.lane.b32.xlu0 %v912, 32
    %v2895 = vpop.permute.xlu0 %2894
    %2896 = vrot.lane.b32.xlu0 %v913, 32
    %v2897 = vpop.permute.xlu0 %2896
    %v2962 = vsel %vm34, %v337, %v979
    %v2963 = vsel %vm34, %v338, %v981
    %v2964 = vsel %vm34, %v339, %v983
    %v2965 = vsel %vm34, %v340, %v985
    %v2966 = vsel %vm34, %v341, %v987
    %v2967 = vsel %vm34, %v342, %v989
    %v2968 = vsel %vm34, %v343, %v991
    %v2969 = vsel %vm34, %v344, %v993
    %v2970 = vsel %vm34, %v345, %v995
    %v2971 = vsel %vm34, %v346, %v997
    %v2972 = vsel %vm34, %v347, %v999
    %v2973 = vsel %vm34, %v348, %v1001
    %v2974 = vsel %vm34, %v349, %v1003
    %v2975 = vsel %vm34, %v350, %v1005
    %v2976 = vsel %vm34, %v351, %v1007
    %v2977 = vsel %vm34, %v352, %v1009
    %v2978 = vsel %vm34, %v353, %v1011
    %v2979 = vsel %vm34, %v354, %v1013
    %v2980 = vsel %vm34, %v355, %v1015
    %v2981 = vsel %vm34, %v356, %v1017
    %v2982 = vsel %vm34, %v357, %v1019
    %v2983 = vsel %vm34, %v358, %v1021
    %v2984 = vsel %vm34, %v359, %v1023
    %v2985 = vsel %vm34, %v360, %v1025
    %v2986 = vsel %vm34, %v361, %v1027
    %v2987 = vsel %vm34, %v362, %v1029
    %v2988 = vsel %vm34, %v363, %v1031
    %v2989 = vsel %vm34, %v364, %v1033
    %v2990 = vsel %vm34, %v365, %v1035
    %v2991 = vsel %vm34, %v366, %v1037
    %v2992 = vsel %vm34, %v367, %v1039
    %v2993 = vsel %vm34, %v368, %v1041
    %v2994 = vsel %vm34, %v369, %v1043
    %v2995 = vsel %vm34, %v370, %v1045
    %v2996 = vsel %vm34, %v371, %v1047
    %v2997 = vsel %vm34, %v372, %v1049
    %v2998 = vsel %vm34, %v373, %v1051
    %v2999 = vsel %vm34, %v374, %v1053
    %v3000 = vsel %vm34, %v375, %v1055
    %v3001 = vsel %vm34, %v376, %v1057
    %v3002 = vsel %vm34, %v377, %v1059
    %v3003 = vsel %vm34, %v378, %v1061
    %v3004 = vsel %vm34, %v379, %v1063
    %v3005 = vsel %vm34, %v380, %v1065
    %v3006 = vsel %vm34, %v381, %v1067
    %v3007 = vsel %vm34, %v382, %v1069
    %v3008 = vsel %vm34, %v383, %v1071
    %v3009 = vsel %vm34, %v384, %v1073
    %v3010 = vsel %vm34, %v385, %v1075
    %v3011 = vsel %vm34, %v386, %v1077
    %v3012 = vsel %vm34, %v387, %v1079
    %v3013 = vsel %vm34, %v388, %v1081
    %v3014 = vsel %vm34, %v389, %v1083
    %v3015 = vsel %vm34, %v390, %v1085
    %v3016 = vsel %vm34, %v391, %v1087
    %v3017 = vsel %vm34, %v392, %v1089
    %v3018 = vsel %vm34, %v393, %v1091
    %v3019 = vsel %vm34, %v394, %v1093
    %v3020 = vsel %vm34, %v395, %v1095
    %v3021 = vsel %vm34, %v396, %v1097
    %v3022 = vsel %vm34, %v397, %v1099
    %v3023 = vsel %vm34, %v398, %v1101
    %v3024 = vsel %vm34, %v399, %v1103
    %v3025 = vsel %vm34, %v400, %v1105
    %vm3026 = vcmask 64512
    %v3027 = vsel %vm3026, %v2962, %v1235
    %v3028 = vsel %vm3026, %v2963, %v1237
    %v3029 = vsel %vm3026, %v2964, %v1239
    %v3030 = vsel %vm3026, %v2965, %v1241
    %v3031 = vsel %vm3026, %v2966, %v1243
    %v3032 = vsel %vm3026, %v2967, %v1245
    %v3033 = vsel %vm3026, %v2968, %v1247
    %v3034 = vsel %vm3026, %v2969, %v1249
    %v3035 = vsel %vm3026, %v2970, %v1251
    %v3036 = vsel %vm3026, %v2971, %v1253
    %v3037 = vsel %vm3026, %v2972, %v1255
    %v3038 = vsel %vm3026, %v2973, %v1257
    %v3039 = vsel %vm3026, %v2974, %v1259
    %v3040 = vsel %vm3026, %v2975, %v1261
    %v3041 = vsel %vm3026, %v2976, %v1263
    %v3042 = vsel %vm3026, %v2977, %v1265
    %v3043 = vsel %vm3026, %v2978, %v1267
    %v3044 = vsel %vm3026, %v2979, %v1269
    %v3045 = vsel %vm3026, %v2980, %v1271
    %v3046 = vsel %vm3026, %v2981, %v1273
    %v3047 = vsel %vm3026, %v2982, %v1275
    %v3048 = vsel %vm3026, %v2983, %v1277
    %v3049 = vsel %vm3026, %v2984, %v1279
    %v3050 = vsel %vm3026, %v2985, %v1281
    %v3051 = vsel %vm3026, %v2986, %v1283
    %v3052 = vsel %vm3026, %v2987, %v1285
    %v3053 = vsel %vm3026, %v2988, %v1287
    %v3054 = vsel %vm3026, %v2989, %v1289
    %v3055 = vsel %vm3026, %v2990, %v1291
    %v3056 = vsel %vm3026, %v2991, %v1293
    %v3057 = vsel %vm3026, %v2992, %v1295
    %v3058 = vsel %vm3026, %v2993, %v1297
    %v3059 = vsel %vm3026, %v2994, %v1299
    %v3060 = vsel %vm3026, %v2995, %v1301
    %v3061 = vsel %vm3026, %v2996, %v1303
    %v3062 = vsel %vm3026, %v2997, %v1305
    %v3063 = vsel %vm3026, %v2998, %v1307
    %v3064 = vsel %vm3026, %v2999, %v1309
    %v3065 = vsel %vm3026, %v3000, %v1311
    %v3066 = vsel %vm3026, %v3001, %v1313
    %v3067 = vsel %vm3026, %v3002, %v1315
    %v3068 = vsel %vm3026, %v3003, %v1317
    %v3069 = vsel %vm3026, %v3004, %v1319
    %v3070 = vsel %vm3026, %v3005, %v1321
    %v3071 = vsel %vm3026, %v3006, %v1323
    %v3072 = vsel %vm3026, %v3007, %v1325
    %v3073 = vsel %vm3026, %v3008, %v1327
    %v3074 = vsel %vm3026, %v3009, %v1329
    %v3075 = vsel %vm3026, %v3010, %v1331
    %v3076 = vsel %vm3026, %v3011, %v1333
    %v3077 = vsel %vm3026, %v3012, %v1335
    %v3078 = vsel %vm3026, %v3013, %v1337
    %v3079 = vsel %vm3026, %v3014, %v1339
    %v3080 = vsel %vm3026, %v3015, %v1341
    %v3081 = vsel %vm3026, %v3016, %v1343
    %v3082 = vsel %vm3026, %v3017, %v1345
    %v3083 = vsel %vm3026, %v3018, %v1347
    %v3084 = vsel %vm3026, %v3019, %v1349
    %v3085 = vsel %vm3026, %v3020, %v1351
    %v3086 = vsel %vm3026, %v3021, %v1353
    %v3087 = vsel %vm3026, %v3022, %v1355
    %v3088 = vsel %vm3026, %v3023, %v1357
    %v3089 = vsel %vm3026, %v3024, %v1359
    %v3090 = vsel %vm3026, %v3025, %v1361
    %vm3091 = vcmask 97280
    %v3092 = vsel %vm3091, %v3027, %v1491
    %v3093 = vsel %vm3091, %v3028, %v1493
    %v3094 = vsel %vm3091, %v3029, %v1495
    %v3095 = vsel %vm3091, %v3030, %v1497
    %v3096 = vsel %vm3091, %v3031, %v1499
    %v3097 = vsel %vm3091, %v3032, %v1501
    %v3098 = vsel %vm3091, %v3033, %v1503
    %v3099 = vsel %vm3091, %v3034, %v1505
    %v3100 = vsel %vm3091, %v3035, %v1507
    %v3101 = vsel %vm3091, %v3036, %v1509
    %v3102 = vsel %vm3091, %v3037, %v1511
    %v3103 = vsel %vm3091, %v3038, %v1513
    %v3104 = vsel %vm3091, %v3039, %v1515
    %v3105 = vsel %vm3091, %v3040, %v1517
    %v3106 = vsel %vm3091, %v3041, %v1519
    %v3107 = vsel %vm3091, %v3042, %v1521
    %v3108 = vsel %vm3091, %v3043, %v1523
    %v3109 = vsel %vm3091, %v3044, %v1525
    %v3110 = vsel %vm3091, %v3045, %v1527
    %v3111 = vsel %vm3091, %v3046, %v1529
    %v3112 = vsel %vm3091, %v3047, %v1531
    %v3113 = vsel %vm3091, %v3048, %v1533
    %v3114 = vsel %vm3091, %v3049, %v1535
    %v3115 = vsel %vm3091, %v3050, %v1537
    %v3116 = vsel %vm3091, %v3051, %v1539
    %v3117 = vsel %vm3091, %v3052, %v1541
    %v3118 = vsel %vm3091, %v3053, %v1543
    %v3119 = vsel %vm3091, %v3054, %v1545
    %v3120 = vsel %vm3091, %v3055, %v1547
    %v3121 = vsel %vm3091, %v3056, %v1549
    %v3122 = vsel %vm3091, %v3057, %v1551
    %v3123 = vsel %vm3091, %v3058, %v1553
    %v3124 = vsel %vm3091, %v3059, %v1555
    %v3125 = vsel %vm3091, %v3060, %v1557
    %v3126 = vsel %vm3091, %v3061, %v1559
    %v3127 = vsel %vm3091, %v3062, %v1561
    %v3128 = vsel %vm3091, %v3063, %v1563
    %v3129 = vsel %vm3091, %v3064, %v1565
    %v3130 = vsel %vm3091, %v3065, %v1567
    %v3131 = vsel %vm3091, %v3066, %v1569
    %v3132 = vsel %vm3091, %v3067, %v1571
    %v3133 = vsel %vm3091, %v3068, %v1573
    %v3134 = vsel %vm3091, %v3069, %v1575
    %v3135 = vsel %vm3091, %v3070, %v1577
    %v3136 = vsel %vm3091, %v3071, %v1579
    %v3137 = vsel %vm3091, %v3072, %v1581
    %v3138 = vsel %vm3091, %v3073, %v1583
    %v3139 = vsel %vm3091, %v3074, %v1585
    %v3140 = vsel %vm3091, %v3075, %v1587
    %v3141 = vsel %vm3091, %v3076, %v1589
    %v3142 = vsel %vm3091, %v3077, %v1591
    %v3143 = vsel %vm3091, %v3078, %v1593
    %v3144 = vsel %vm3091, %v3079, %v1595
    %v3145 = vsel %vm3091, %v3080, %v1597
    %v3146 = vsel %vm3091, %v3081, %v1599
    %v3147 = vsel %vm3091, %v3082, %v1601
    %v3148 = vsel %vm3091, %v3083, %v1603
    %v3149 = vsel %vm3091, %v3084, %v1605
    %v3150 = vsel %vm3091, %v3085, %v1607
    %v3151 = vsel %vm3091, %v3086, %v1609
    %v3152 = vsel %vm3091, %v3087, %v1611
    %v3153 = vsel %vm3091, %v3088, %v1613
    %v3154 = vsel %vm3091, %v3089, %v1615
    %v3155 = vsel %vm3091, %v3090, %v1617
    %vm3156 = vcmask 130048
    %v3157 = vsel %vm3156, %v3092, %v1747
    %v3158 = vsel %vm3156, %v3093, %v1749
    %v3159 = vsel %vm3156, %v3094, %v1751
    %v3160 = vsel %vm3156, %v3095, %v1753
    %v3161 = vsel %vm3156, %v3096, %v1755
    %v3162 = vsel %vm3156, %v3097, %v1757
    %v3163 = vsel %vm3156, %v3098, %v1759
    %v3164 = vsel %vm3156, %v3099, %v1761
    %v3165 = vsel %vm3156, %v3100, %v1763
    %v3166 = vsel %vm3156, %v3101, %v1765
    %v3167 = vsel %vm3156, %v3102, %v1767
    %v3168 = vsel %vm3156, %v3103, %v1769
    %v3169 = vsel %vm3156, %v3104, %v1771
    %v3170 = vsel %vm3156, %v3105, %v1773
    %v3171 = vsel %vm3156, %v3106, %v1775
    %v3172 = vsel %vm3156, %v3107, %v1777
    %v3173 = vsel %vm3156, %v3108, %v1779
    %v3174 = vsel %vm3156, %v3109, %v1781
    %v3175 = vsel %vm3156, %v3110, %v1783
    %v3176 = vsel %vm3156, %v3111, %v1785
    %v3177 = vsel %vm3156, %v3112, %v1787
    %v3178 = vsel %vm3156, %v3113, %v1789
    %v3179 = vsel %vm3156, %v3114, %v1791
    %v3180 = vsel %vm3156, %v3115, %v1793
    %v3181 = vsel %vm3156, %v3116, %v1795
    %v3182 = vsel %vm3156, %v3117, %v1797
    %v3183 = vsel %vm3156, %v3118, %v1799
    %v3184 = vsel %vm3156, %v3119, %v1801
    %v3185 = vsel %vm3156, %v3120, %v1803
    %v3186 = vsel %vm3156, %v3121, %v1805
    %v3187 = vsel %vm3156, %v3122, %v1807
    %v3188 = vsel %vm3156, %v3123, %v1809
    %v3189 = vsel %vm3156, %v3124, %v1811
    %v3190 = vsel %vm3156, %v3125, %v1813
    %v3191 = vsel %vm3156, %v3126, %v1815
    %v3192 = vsel %vm3156, %v3127, %v1817
    %v3193 = vsel %vm3156, %v3128, %v1819
    %v3194 = vsel %vm3156, %v3129, %v1821
    %v3195 = vsel %vm3156, %v3130, %v1823
    %v3196 = vsel %vm3156, %v3131, %v1825
    %v3197 = vsel %vm3156, %v3132, %v1827
    %v3198 = vsel %vm3156, %v3133, %v1829
    %v3199 = vsel %vm3156, %v3134, %v1831
    %v3200 = vsel %vm3156, %v3135, %v1833
    %v3201 = vsel %vm3156, %v3136, %v1835
    %v3202 = vsel %vm3156, %v3137, %v1837
    %v3203 = vsel %vm3156, %v3138, %v1839
    %v3204 = vsel %vm3156, %v3139, %v1841
    %v3205 = vsel %vm3156, %v3140, %v1843
    %v3206 = vsel %vm3156, %v3141, %v1845
    %v3207 = vsel %vm3156, %v3142, %v1847
    %v3208 = vsel %vm3156, %v3143, %v1849
    %v3209 = vsel %vm3156, %v3144, %v1851
    %v3210 = vsel %vm3156, %v3145, %v1853
    %v3211 = vsel %vm3156, %v3146, %v1855
    %v3212 = vsel %vm3156, %v3147, %v1857
    %v3213 = vsel %vm3156, %v3148, %v1859
    %v3214 = vsel %vm3156, %v3149, %v1861
    %v3215 = vsel %vm3156, %v3150, %v1863
    %v3216 = vsel %vm3156, %v3151, %v1865
    %v3217 = vsel %vm3156, %v3152, %v1867
    %v3218 = vsel %vm3156, %v3153, %v1869
    %v3219 = vsel %vm3156, %v3154, %v1871
    %v3220 = vsel %vm3156, %v3155, %v1873
    %vm3221 = vcmask 162816
    %v3222 = vsel %vm3221, %v3157, %v2003
    %v3223 = vsel %vm3221, %v3158, %v2005
    %v3224 = vsel %vm3221, %v3159, %v2007
    %v3225 = vsel %vm3221, %v3160, %v2009
    %v3226 = vsel %vm3221, %v3161, %v2011
    %v3227 = vsel %vm3221, %v3162, %v2013
    %v3228 = vsel %vm3221, %v3163, %v2015
    %v3229 = vsel %vm3221, %v3164, %v2017
    %v3230 = vsel %vm3221, %v3165, %v2019
    %v3231 = vsel %vm3221, %v3166, %v2021
    %v3232 = vsel %vm3221, %v3167, %v2023
    %v3233 = vsel %vm3221, %v3168, %v2025
    %v3234 = vsel %vm3221, %v3169, %v2027
    %v3235 = vsel %vm3221, %v3170, %v2029
    %v3236 = vsel %vm3221, %v3171, %v2031
    %v3237 = vsel %vm3221, %v3172, %v2033
    %v3238 = vsel %vm3221, %v3173, %v2035
    %v3239 = vsel %vm3221, %v3174, %v2037
    %v3240 = vsel %vm3221, %v3175, %v2039
    %v3241 = vsel %vm3221, %v3176, %v2041
    %v3242 = vsel %vm3221, %v3177, %v2043
    %v3243 = vsel %vm3221, %v3178, %v2045
    %v3244 = vsel %vm3221, %v3179, %v2047
    %v3245 = vsel %vm3221, %v3180, %v2049
    %v3246 = vsel %vm3221, %v3181, %v2051
    %v3247 = vsel %vm3221, %v3182, %v2053
    %v3248 = vsel %vm3221, %v3183, %v2055
    %v3249 = vsel %vm3221, %v3184, %v2057
    %v3250 = vsel %vm3221, %v3185, %v2059
    %v3251 = vsel %vm3221, %v3186, %v2061
    %v3252 = vsel %vm3221, %v3187, %v2063
    %v3253 = vsel %vm3221, %v3188, %v2065
    %v3254 = vsel %vm3221, %v3189, %v2067
    %v3255 = vsel %vm3221, %v3190, %v2069
    %v3256 = vsel %vm3221, %v3191, %v2071
    %v3257 = vsel %vm3221, %v3192, %v2073
    %v3258 = vsel %vm3221, %v3193, %v2075
    %v3259 = vsel %vm3221, %v3194, %v2077
    %v3260 = vsel %vm3221, %v3195, %v2079
    %v3261 = vsel %vm3221, %v3196, %v2081
    %v3262 = vsel %vm3221, %v3197, %v2083
    %v3263 = vsel %vm3221, %v3198, %v2085
    %v3264 = vsel %vm3221, %v3199, %v2087
    %v3265 = vsel %vm3221, %v3200, %v2089
    %v3266 = vsel %vm3221, %v3201, %v2091
    %v3267 = vsel %vm3221, %v3202, %v2093
    %v3268 = vsel %vm3221, %v3203, %v2095
    %v3269 = vsel %vm3221, %v3204, %v2097
    %v3270 = vsel %vm3221, %v3205, %v2099
    %v3271 = vsel %vm3221, %v3206, %v2101
    %v3272 = vsel %vm3221, %v3207, %v2103
    %v3273 = vsel %vm3221, %v3208, %v2105
    %v3274 = vsel %vm3221, %v3209, %v2107
    %v3275 = vsel %vm3221, %v3210, %v2109
    %v3276 = vsel %vm3221, %v3211, %v2111
    %v3277 = vsel %vm3221, %v3212, %v2113
    %v3278 = vsel %vm3221, %v3213, %v2115
    %v3279 = vsel %vm3221, %v3214, %v2117
    %v3280 = vsel %vm3221, %v3215, %v2119
    %v3281 = vsel %vm3221, %v3216, %v2121
    %v3282 = vsel %vm3221, %v3217, %v2123
    %v3283 = vsel %vm3221, %v3218, %v2125
    %v3284 = vsel %vm3221, %v3219, %v2127
    %v3285 = vsel %vm3221, %v3220, %v2129
    %vm3286 = vcmask 195584
    %v3287 = vsel %vm3286, %v3222, %v2259
    %v3288 = vsel %vm3286, %v3223, %v2261
    %v3289 = vsel %vm3286, %v3224, %v2263
    %v3290 = vsel %vm3286, %v3225, %v2265
    %v3291 = vsel %vm3286, %v3226, %v2267
    %v3292 = vsel %vm3286, %v3227, %v2269
    %v3293 = vsel %vm3286, %v3228, %v2271
    %v3294 = vsel %vm3286, %v3229, %v2273
    %v3295 = vsel %vm3286, %v3230, %v2275
    %v3296 = vsel %vm3286, %v3231, %v2277
    %v3297 = vsel %vm3286, %v3232, %v2279
    %v3298 = vsel %vm3286, %v3233, %v2281
    %v3299 = vsel %vm3286, %v3234, %v2283
    %v3300 = vsel %vm3286, %v3235, %v2285
    %v3301 = vsel %vm3286, %v3236, %v2287
    %v3302 = vsel %vm3286, %v3237, %v2289
    %v3303 = vsel %vm3286, %v3238, %v2291
    %v3304 = vsel %vm3286, %v3239, %v2293
    %v3305 = vsel %vm3286, %v3240, %v2295
    %v3306 = vsel %vm3286, %v3241, %v2297
    %v3307 = vsel %vm3286, %v3242, %v2299
    %v3308 = vsel %vm3286, %v3243, %v2301
    %v3309 = vsel %vm3286, %v3244, %v2303
    %v3310 = vsel %vm3286, %v3245, %v2305
    %v3311 = vsel %vm3286, %v3246, %v2307
    %v3312 = vsel %vm3286, %v3247, %v2309
    %v3313 = vsel %vm3286, %v3248, %v2311
    %v3314 = vsel %vm3286, %v3249, %v2313
    %v3315 = vsel %vm3286, %v3250, %v2315
    %v3316 = vsel %vm3286, %v3251, %v2317
    %v3317 = vsel %vm3286, %v3252, %v2319
    %v3318 = vsel %vm3286, %v3253, %v2321
    %v3319 = vsel %vm3286, %v3254, %v2323
    %v3320 = vsel %vm3286, %v3255, %v2325
    %v3321 = vsel %vm3286, %v3256, %v2327
    %v3322 = vsel %vm3286, %v3257, %v2329
    %v3323 = vsel %vm3286, %v3258, %v2331
    %v3324 = vsel %vm3286, %v3259, %v2333
    %v3325 = vsel %vm3286, %v3260, %v2335
    %v3326 = vsel %vm3286, %v3261, %v2337
    %v3327 = vsel %vm3286, %v3262, %v2339
    %v3328 = vsel %vm3286, %v3263, %v2341
    %v3329 = vsel %vm3286, %v3264, %v2343
    %v3330 = vsel %vm3286, %v3265, %v2345
    %v3331 = vsel %vm3286, %v3266, %v2347
    %v3332 = vsel %vm3286, %v3267, %v2349
    %v3333 = vsel %vm3286, %v3268, %v2351
    %v3334 = vsel %vm3286, %v3269, %v2353
    %v3335 = vsel %vm3286, %v3270, %v2355
    %v3336 = vsel %vm3286, %v3271, %v2357
    %v3337 = vsel %vm3286, %v3272, %v2359
    %v3338 = vsel %vm3286, %v3273, %v2361
    %v3339 = vsel %vm3286, %v3274, %v2363
    %v3340 = vsel %vm3286, %v3275, %v2365
    %v3341 = vsel %vm3286, %v3276, %v2367
    %v3342 = vsel %vm3286, %v3277, %v2369
    %v3343 = vsel %vm3286, %v3278, %v2371
    %v3344 = vsel %vm3286, %v3279, %v2373
    %v3345 = vsel %vm3286, %v3280, %v2375
    %v3346 = vsel %vm3286, %v3281, %v2377
    %v3347 = vsel %vm3286, %v3282, %v2379
    %v3348 = vsel %vm3286, %v3283, %v2381
    %v3349 = vsel %vm3286, %v3284, %v2383
    %v3350 = vsel %vm3286, %v3285, %v2385
    %vm3351 = vcmask 228352
    %v3352 = vsel %vm3351, %v3287, %v2515
    %v3353 = vsel %vm3351, %v3288, %v2517
    %v3354 = vsel %vm3351, %v3289, %v2519
    %v3355 = vsel %vm3351, %v3290, %v2521
    %v3356 = vsel %vm3351, %v3291, %v2523
    %v3357 = vsel %vm3351, %v3292, %v2525
    %v3358 = vsel %vm3351, %v3293, %v2527
    %v3359 = vsel %vm3351, %v3294, %v2529
    %v3360 = vsel %vm3351, %v3295, %v2531
    %v3361 = vsel %vm3351, %v3296, %v2533
    %v3362 = vsel %vm3351, %v3297, %v2535
    %v3363 = vsel %vm3351, %v3298, %v2537
    %v3364 = vsel %vm3351, %v3299, %v2539
    %v3365 = vsel %vm3351, %v3300, %v2541
    %v3366 = vsel %vm3351, %v3301, %v2543
    %v3367 = vsel %vm3351, %v3302, %v2545
    %v3368 = vsel %vm3351, %v3303, %v2547
    %v3369 = vsel %vm3351, %v3304, %v2549
    %v3370 = vsel %vm3351, %v3305, %v2551
    %v3371 = vsel %vm3351, %v3306, %v2553
    %v3372 = vsel %vm3351, %v3307, %v2555
    %v3373 = vsel %vm3351, %v3308, %v2557
    %v3374 = vsel %vm3351, %v3309, %v2559
    %v3375 = vsel %vm3351, %v3310, %v2561
    %v3376 = vsel %vm3351, %v3311, %v2563
    %v3377 = vsel %vm3351, %v3312, %v2565
    %v3378 = vsel %vm3351, %v3313, %v2567
    %v3379 = vsel %vm3351, %v3314, %v2569
    %v3380 = vsel %vm3351, %v3315, %v2571
    %v3381 = vsel %vm3351, %v3316, %v2573
    %v3382 = vsel %vm3351, %v3317, %v2575
    %v3383 = vsel %vm3351, %v3318, %v2577
    %v3384 = vsel %vm3351, %v3319, %v2579
    %v3385 = vsel %vm3351, %v3320, %v2581
    %v3386 = vsel %vm3351, %v3321, %v2583
    %v3387 = vsel %vm3351, %v3322, %v2585
    %v3388 = vsel %vm3351, %v3323, %v2587
    %v3389 = vsel %vm3351, %v3324, %v2589
    %v3390 = vsel %vm3351, %v3325, %v2591
    %v3391 = vsel %vm3351, %v3326, %v2593
    %v3392 = vsel %vm3351, %v3327, %v2595
    %v3393 = vsel %vm3351, %v3328, %v2597
    %v3394 = vsel %vm3351, %v3329, %v2599
    %v3395 = vsel %vm3351, %v3330, %v2601
    %v3396 = vsel %vm3351, %v3331, %v2603
    %v3397 = vsel %vm3351, %v3332, %v2605
    %v3398 = vsel %vm3351, %v3333, %v2607
    %v3399 = vsel %vm3351, %v3334, %v2609
    %v3400 = vsel %vm3351, %v3335, %v2611
    %v3401 = vsel %vm3351, %v3336, %v2613
    %v3402 = vsel %vm3351, %v3337, %v2615
    %v3403 = vsel %vm3351, %v3338, %v2617
    %v3404 = vsel %vm3351, %v3339, %v2619
    %v3405 = vsel %vm3351, %v3340, %v2621
    %v3406 = vsel %vm3351, %v3341, %v2623
    %v3407 = vsel %vm3351, %v3342, %v2625
    %v3408 = vsel %vm3351, %v3343, %v2627
    %v3409 = vsel %vm3351, %v3344, %v2629
    %v3410 = vsel %vm3351, %v3345, %v2631
    %v3411 = vsel %vm3351, %v3346, %v2633
    %v3412 = vsel %vm3351, %v3347, %v2635
    %v3413 = vsel %vm3351, %v3348, %v2637
    %v3414 = vsel %vm3351, %v3349, %v2639
    %v3415 = vsel %vm3351, %v3350, %v2641
    %vm3416 = vcmask 261120
    %v3417 = vsel %vm3416, %v3352, %v2771
    %v3418 = vsel %vm3416, %v3353, %v2773
    %v3419 = vsel %vm3416, %v3354, %v2775
    %v3420 = vsel %vm3416, %v3355, %v2777
    %v3421 = vsel %vm3416, %v3356, %v2779
    %v3422 = vsel %vm3416, %v3357, %v2781
    %v3423 = vsel %vm3416, %v3358, %v2783
    %v3424 = vsel %vm3416, %v3359, %v2785
    %v3425 = vsel %vm3416, %v3360, %v2787
    %v3426 = vsel %vm3416, %v3361, %v2789
    %v3427 = vsel %vm3416, %v3362, %v2791
    %v3428 = vsel %vm3416, %v3363, %v2793
    %v3429 = vsel %vm3416, %v3364, %v2795
    %v3430 = vsel %vm3416, %v3365, %v2797
    %v3431 = vsel %vm3416, %v3366, %v2799
    %v3432 = vsel %vm3416, %v3367, %v2801
    %v3433 = vsel %vm3416, %v3368, %v2803
    %v3434 = vsel %vm3416, %v3369, %v2805
    %v3435 = vsel %vm3416, %v3370, %v2807
    %v3436 = vsel %vm3416, %v3371, %v2809
    %v3437 = vsel %vm3416, %v3372, %v2811
    %v3438 = vsel %vm3416, %v3373, %v2813
    %v3439 = vsel %vm3416, %v3374, %v2815
    %v3440 = vsel %vm3416, %v3375, %v2817
    %v3441 = vsel %vm3416, %v3376, %v2819
    %v3442 = vsel %vm3416, %v3377, %v2821
    %v3443 = vsel %vm3416, %v3378, %v2823
    %v3444 = vsel %vm3416, %v3379, %v2825
    %v3445 = vsel %vm3416, %v3380, %v2827
    %v3446 = vsel %vm3416, %v3381, %v2829
    %v3447 = vsel %vm3416, %v3382, %v2831
    %v3448 = vsel %vm3416, %v3383, %v2833
    %v3449 = vsel %vm3416, %v3384, %v2835
    %v3450 = vsel %vm3416, %v3385, %v2837
    %v3451 = vsel %vm3416, %v3386, %v2839
    %v3452 = vsel %vm3416, %v3387, %v2841
    %v3453 = vsel %vm3416, %v3388, %v2843
    %v3454 = vsel %vm3416, %v3389, %v2845
    %v3455 = vsel %vm3416, %v3390, %v2847
    %v3456 = vsel %vm3416, %v3391, %v2849
    %v3457 = vsel %vm3416, %v3392, %v2851
    %v3458 = vsel %vm3416, %v3393, %v2853
    %v3459 = vsel %vm3416, %v3394, %v2855
    %v3460 = vsel %vm3416, %v3395, %v2857
    %v3461 = vsel %vm3416, %v3396, %v2859
    %v3462 = vsel %vm3416, %v3397, %v2861
    %v3463 = vsel %vm3416, %v3398, %v2863
    %v3464 = vsel %vm3416, %v3399, %v2865
    %v3465 = vsel %vm3416, %v3400, %v2867
    %v3466 = vsel %vm3416, %v3401, %v2869
    %v3467 = vsel %vm3416, %v3402, %v2871
    %v3468 = vsel %vm3416, %v3403, %v2873
    %v3469 = vsel %vm3416, %v3404, %v2875
    %v3470 = vsel %vm3416, %v3405, %v2877
    %v3471 = vsel %vm3416, %v3406, %v2879
    %v3472 = vsel %vm3416, %v3407, %v2881
    %v3473 = vsel %vm3416, %v3408, %v2883
    %v3474 = vsel %vm3416, %v3409, %v2885
    %v3475 = vsel %vm3416, %v3410, %v2887
    %v3476 = vsel %vm3416, %v3411, %v2889
    %v3477 = vsel %vm3416, %v3412, %v2891
    %v3478 = vsel %vm3416, %v3413, %v2893
    %v3479 = vsel %vm3416, %v3414, %v2895
    %v3480 = vsel %vm3416, %v3415, %v2897
    %v3481 = vpack.c.bf16 %v3418, %v3417
    %v3482 = vpack.c.bf16 %v3420, %v3419
    %v3483 = vpack.c.bf16 %v3422, %v3421
    %v3484 = vpack.c.bf16 %v3424, %v3423
    %v3485 = vpack.c.bf16 %v3426, %v3425
    %v3486 = vpack.c.bf16 %v3428, %v3427
    %v3487 = vpack.c.bf16 %v3430, %v3429
    %v3488 = vpack.c.bf16 %v3432, %v3431
    %v3489 = vpack.c.bf16 %v3434, %v3433
    %v3490 = vpack.c.bf16 %v3436, %v3435
    %v3491 = vpack.c.bf16 %v3438, %v3437
    %v3492 = vpack.c.bf16 %v3440, %v3439
    %v3493 = vpack.c.bf16 %v3442, %v3441
    %v3494 = vpack.c.bf16 %v3444, %v3443
    %v3495 = vpack.c.bf16 %v3446, %v3445
    %v3496 = vpack.c.bf16 %v3448, %v3447
    %v3497 = vpack.c.bf16 %v3450, %v3449
    %v3498 = vpack.c.bf16 %v3452, %v3451
    %v3499 = vpack.c.bf16 %v3454, %v3453
    %v3500 = vpack.c.bf16 %v3456, %v3455
    %v3501 = vpack.c.bf16 %v3458, %v3457
    %v3502 = vpack.c.bf16 %v3460, %v3459
    %v3503 = vpack.c.bf16 %v3462, %v3461
    %v3504 = vpack.c.bf16 %v3464, %v3463
    %v3505 = vpack.c.bf16 %v3466, %v3465
    %v3506 = vpack.c.bf16 %v3468, %v3467
    %v3507 = vpack.c.bf16 %v3470, %v3469
    %v3508 = vpack.c.bf16 %v3472, %v3471
    %v3509 = vpack.c.bf16 %v3474, %v3473
    %v3510 = vpack.c.bf16 %v3476, %v3475
    %v3511 = vpack.c.bf16 %v3478, %v3477
    %v3512 = vpack.c.bf16 %v3480, %v3479
    %v3513 = vld [vmem:[%s1] sm:$0xf]
    %v3514 = vld [vmem:[%s1 + $0x4] sm:$0xf]
    %v3515 = vld [vmem:[%s1 + $0x8] sm:$0xf]
    %v3516 = vld [vmem:[%s1 + $0xc] sm:$0xf]
    %v3517 = vld [vmem:[%s1 + $0x10] sm:$0x3]
    %v3518 = vld [vmem:[%s2] sm:$0x1]
    %v3520 = vlaneseq
    %v3521 = vshrl.u32 %v3520, 7
    %v3522 = vsub.s32 0, %v3521
    %v3523 = vrot.slane %v3518, %v3522
    %v3530 = vunpack.c.l.b16 %v3513
    %v3531 = vunpack.c.l.b16 %v3514
    %v3532 = vunpack.c.l.b16 %v3515
    %v3533 = vunpack.c.l.b16 %v3516
    %v3534 = vunpack.c.l.b16 %v3517
    %v3535 = vpack.c.b16 %v3531, %v3530
    %v3536 = vpack.c.b16 %v3533, %v3532
    %v3537 = vpack.c.b16 %v3534, %v3534
    %vm3540 = vcmask 293888
    %v3542 = vsel %vm3540, %v3481, 0
    %v3545 = vsel %vm3540, %v3482, 0
    %v3548 = vsel %vm3540, %v3483, 0
    %v3551 = vsel %vm3540, %v3484, 0
    %v3554 = vsel %vm3540, %v3485, 0
    %v3557 = vsel %vm3540, %v3486, 0
    %v3560 = vsel %vm3540, %v3487, 0
    %v3563 = vsel %vm3540, %v3488, 0
    %v3566 = vsel %vm3540, %v3489, 0
    %v3569 = vsel %vm3540, %v3490, 0
    %v3572 = vsel %vm3540, %v3491, 0
    %v3575 = vsel %vm3540, %v3492, 0
    %v3578 = vsel %vm3540, %v3493, 0
    %v3581 = vsel %vm3540, %v3494, 0
    %v3584 = vsel %vm3540, %v3495, 0
    %v3587 = vsel %vm3540, %v3496, 0
    %v3590 = vsel %vm3540, %v3497, 0
    %v3593 = vsel %vm3540, %v3498, 0
    %v3596 = vsel %vm3540, %v3499, 0
    %v3599 = vsel %vm3540, %v3500, 0
    %v3602 = vsel %vm3540, %v3501, 0
    %v3605 = vsel %vm3540, %v3502, 0
    %v3608 = vsel %vm3540, %v3503, 0
    %v3611 = vsel %vm3540, %v3504, 0
    %v3614 = vsel %vm3540, %v3505, 0
    %v3617 = vsel %vm3540, %v3506, 0
    %v3620 = vsel %vm3540, %v3507, 0
    %v3623 = vsel %vm3540, %v3508, 0
    %v3626 = vsel %vm3540, %v3509, 0
    %v3629 = vsel %vm3540, %v3510, 0
    %v3632 = vsel %vm3540, %v3511, 0
    %v3635 = vsel %vm3540, %v3512, 0
    %vm3637 = vcmask 1041408
    %v3639 = vsel %vm3637, %v3537, 0
    %3641 = vmatprep.subr.bf16.mxu0 0
    %3642 = vmatpush1.bf16.msra.mxu0 %v3535
    %3643 = vmatprep.subr.bf16.mxu0 0
    %3644 = vmatpush1.bf16.msra.mxu0 %v3536
    %3645 = vmatprep.subr.bf16.mxu0 0
    %3646 = vmatpush1.bf16.msra.mxu0 %v3639
    %3647 = vmatprep.subr.bf16.mxu0 0
    %3648 = vmatpush1.bf16.msra.mxu0 0
    %3649 = vmatprep.subr.bf16.mxu0 0
    %3650 = vmatpush1.bf16.msra.mxu0 0
    %3651 = vmatprep.subr.bf16.mxu0 0
    %3652 = vmatpush1.bf16.msra.mxu0 0
    %3653 = vmatprep.subr.bf16.mxu0 0
    %3654 = vmatpush1.bf16.msra.mxu0 0
    %3655 = vmatprep.subr.bf16.mxu0 0
    %3656 = vmatpush1.bf16.msra.mxu0 0
    %3657 = vmatprep.subr.bf16.mxu0 0
    %3658 = vmatpush1.bf16.msra.mxu0 0
    %3659 = vmatprep.subr.bf16.mxu0 0
    %3660 = vmatpush1.bf16.msra.mxu0 0
    %3661 = vmatprep.subr.bf16.mxu0 0
    %3662 = vmatpush1.bf16.msra.mxu0 0
    %3663 = vmatprep.subr.bf16.mxu0 0
    %3664 = vmatpush1.bf16.msra.mxu0 0
    %3665 = vmatprep.subr.bf16.mxu0 0
    %3666 = vmatpush1.bf16.msra.mxu0 0
    %3667 = vmatprep.subr.bf16.mxu0 0
    %3668 = vmatpush1.bf16.msra.mxu0 0
    %3669 = vmatprep.subr.bf16.mxu0 0
    %3670 = vmatpush1.bf16.msra.mxu0 0
    %3671 = vmatprep.subr.bf16.mxu0 0
    %3672 = vmatpush1.bf16.msra.mxu0 0
    %3673 = vmatprep.mubr.bf16.mxu0 0
    %3674 = vmatmul.mubr.bf16.gmra.mrb[0].mxu0 %v3542
    %v3675 = vpop.f32.mrb[0].mxu0
    %v3676 = vadd.f32 %v3523, %v3675
    %v3677 = vpop.f32.mrb[0].mxu0
    %v3678 = vpop.f32.mrb[0].mxu0
    %v3679 = vadd.f32 %v3523, %v3678
    %v3680 = vpop.f32.mrb[0].mxu0
    %3681 = vmatprep.mubr.bf16.mxu0 0
    %3682 = vmatmul.mubr.bf16.gmra.mrb[0].mxu0 %v3545
    %v3683 = vpop.f32.mrb[0].mxu0
    %v3684 = vadd.f32 %v3523, %v3683
    %v3685 = vpop.f32.mrb[0].mxu0
    %v3686 = vpop.f32.mrb[0].mxu0
    %v3687 = vadd.f32 %v3523, %v3686
    %v3688 = vpop.f32.mrb[0].mxu0
    %3689 = vmatprep.mubr.bf16.mxu0 0
    %3690 = vmatmul.mubr.bf16.gmra.mrb[0].mxu0 %v3548
    %v3691 = vpop.f32.mrb[0].mxu0
    %v3692 = vadd.f32 %v3523, %v3691
    %v3693 = vpop.f32.mrb[0].mxu0
    %v3694 = vpop.f32.mrb[0].mxu0
    %v3695 = vadd.f32 %v3523, %v3694
    %v3696 = vpop.f32.mrb[0].mxu0
    %3697 = vmatprep.mubr.bf16.mxu0 0
    %3698 = vmatmul.mubr.bf16.gmra.mrb[0].mxu0 %v3551
    %v3699 = vpop.f32.mrb[0].mxu0
    %v3700 = vadd.f32 %v3523, %v3699
    %v3701 = vpop.f32.mrb[0].mxu0
    %v3702 = vpop.f32.mrb[0].mxu0
    %v3703 = vadd.f32 %v3523, %v3702
    %v3704 = vpop.f32.mrb[0].mxu0
    %3705 = vmatprep.mubr.bf16.mxu0 0
    %3706 = vmatmul.mubr.bf16.gmra.mrb[0].mxu0 %v3554
    %v3707 = vpop.f32.mrb[0].mxu0
    %v3708 = vadd.f32 %v3523, %v3707
    %v3709 = vpop.f32.mrb[0].mxu0
    %v3710 = vpop.f32.mrb[0].mxu0
    %v3711 = vadd.f32 %v3523, %v3710
    %v3712 = vpop.f32.mrb[0].mxu0
    %3713 = vmatprep.mubr.bf16.mxu0 0
    %3714 = vmatmul.mubr.bf16.gmra.mrb[0].mxu0 %v3557
    %v3715 = vpop.f32.mrb[0].mxu0
    %v3716 = vadd.f32 %v3523, %v3715
    %v3717 = vpop.f32.mrb[0].mxu0
    %v3718 = vpop.f32.mrb[0].mxu0
    %v3719 = vadd.f32 %v3523, %v3718
    %v3720 = vpop.f32.mrb[0].mxu0
    %3721 = vmatprep.mubr.bf16.mxu0 0
    %3722 = vmatmul.mubr.bf16.gmra.mrb[0].mxu0 %v3560
    %v3723 = vpop.f32.mrb[0].mxu0
    %v3724 = vadd.f32 %v3523, %v3723
    %v3725 = vpop.f32.mrb[0].mxu0
    %v3726 = vpop.f32.mrb[0].mxu0
    %v3727 = vadd.f32 %v3523, %v3726
    %v3728 = vpop.f32.mrb[0].mxu0
    %3729 = vmatprep.mubr.bf16.mxu0 0
    %3730 = vmatmul.mubr.bf16.gmra.mrb[0].mxu0 %v3563
    %v3731 = vpop.f32.mrb[0].mxu0
    %v3732 = vadd.f32 %v3523, %v3731
    %v3733 = vpop.f32.mrb[0].mxu0
    %v3734 = vpop.f32.mrb[0].mxu0
    %v3735 = vadd.f32 %v3523, %v3734
    %v3736 = vpop.f32.mrb[0].mxu0
    %3737 = vmatprep.mubr.bf16.mxu0 0
    %3738 = vmatmul.mubr.bf16.gmra.mrb[0].mxu0 %v3566
    %v3739 = vpop.f32.mrb[0].mxu0
    %v3740 = vadd.f32 %v3523, %v3739
    %v3741 = vpop.f32.mrb[0].mxu0
    %v3742 = vpop.f32.mrb[0].mxu0
    %v3743 = vadd.f32 %v3523, %v3742
    %v3744 = vpop.f32.mrb[0].mxu0
    %3745 = vmatprep.mubr.bf16.mxu0 0
    %3746 = vmatmul.mubr.bf16.gmra.mrb[0].mxu0 %v3569
    %v3747 = vpop.f32.mrb[0].mxu0
    %v3748 = vadd.f32 %v3523, %v3747
    %v3749 = vpop.f32.mrb[0].mxu0
    %v3750 = vpop.f32.mrb[0].mxu0
    %v3751 = vadd.f32 %v3523, %v3750
    %v3752 = vpop.f32.mrb[0].mxu0
    %3753 = vmatprep.mubr.bf16.mxu0 0
    %3754 = vmatmul.mubr.bf16.gmra.mrb[0].mxu0 %v3572
    %v3755 = vpop.f32.mrb[0].mxu0
    %v3756 = vadd.f32 %v3523, %v3755
    %v3757 = vpop.f32.mrb[0].mxu0
    %v3758 = vpop.f32.mrb[0].mxu0
    %v3759 = vadd.f32 %v3523, %v3758
    %v3760 = vpop.f32.mrb[0].mxu0
    %3761 = vmatprep.mubr.bf16.mxu0 0
    %3762 = vmatmul.mubr.bf16.gmra.mrb[0].mxu0 %v3575
    %v3763 = vpop.f32.mrb[0].mxu0
    %v3764 = vadd.f32 %v3523, %v3763
    %v3765 = vpop.f32.mrb[0].mxu0
    %v3766 = vpop.f32.mrb[0].mxu0
    %v3767 = vadd.f32 %v3523, %v3766
    %v3768 = vpop.f32.mrb[0].mxu0
    %3769 = vmatprep.mubr.bf16.mxu0 0
    %3770 = vmatmul.mubr.bf16.gmra.mrb[0].mxu0 %v3578
    %v3771 = vpop.f32.mrb[0].mxu0
    %v3772 = vadd.f32 %v3523, %v3771
    %v3773 = vpop.f32.mrb[0].mxu0
    %v3774 = vpop.f32.mrb[0].mxu0
    %v3775 = vadd.f32 %v3523, %v3774
    %v3776 = vpop.f32.mrb[0].mxu0
    %3777 = vmatprep.mubr.bf16.mxu0 0
    %3778 = vmatmul.mubr.bf16.gmra.mrb[0].mxu0 %v3581
    %v3779 = vpop.f32.mrb[0].mxu0
    %v3780 = vadd.f32 %v3523, %v3779
    %v3781 = vpop.f32.mrb[0].mxu0
    %v3782 = vpop.f32.mrb[0].mxu0
    %v3783 = vadd.f32 %v3523, %v3782
    %v3784 = vpop.f32.mrb[0].mxu0
    %3785 = vmatprep.mubr.bf16.mxu0 0
    %3786 = vmatmul.mubr.bf16.gmra.mrb[0].mxu0 %v3584
    %v3787 = vpop.f32.mrb[0].mxu0
    %v3788 = vadd.f32 %v3523, %v3787
    %v3789 = vpop.f32.mrb[0].mxu0
    %v3790 = vpop.f32.mrb[0].mxu0
    %v3791 = vadd.f32 %v3523, %v3790
    %v3792 = vpop.f32.mrb[0].mxu0
    %3793 = vmatprep.mubr.bf16.mxu0 0
    %3794 = vmatmul.mubr.bf16.gmra.mrb[0].mxu0 %v3587
    %v3795 = vpop.f32.mrb[0].mxu0
    %v3796 = vadd.f32 %v3523, %v3795
    %v3797 = vpop.f32.mrb[0].mxu0
    %v3798 = vpop.f32.mrb[0].mxu0
    %v3799 = vadd.f32 %v3523, %v3798
    %v3800 = vpop.f32.mrb[0].mxu0
    %3801 = vmatprep.mubr.bf16.mxu0 0
    %3802 = vmatmul.mubr.bf16.gmra.mrb[0].mxu0 %v3590
    %v3803 = vpop.f32.mrb[0].mxu0
    %v3804 = vadd.f32 %v3523, %v3803
    %v3805 = vpop.f32.mrb[0].mxu0
    %v3806 = vpop.f32.mrb[0].mxu0
    %v3807 = vadd.f32 %v3523, %v3806
    %v3808 = vpop.f32.mrb[0].mxu0
    %3809 = vmatprep.mubr.bf16.mxu0 0
    %3810 = vmatmul.mubr.bf16.gmra.mrb[0].mxu0 %v3593
    %v3811 = vpop.f32.mrb[0].mxu0
    %v3812 = vadd.f32 %v3523, %v3811
    %v3813 = vpop.f32.mrb[0].mxu0
    %v3814 = vpop.f32.mrb[0].mxu0
    %v3815 = vadd.f32 %v3523, %v3814
    %v3816 = vpop.f32.mrb[0].mxu0
    %3817 = vmatprep.mubr.bf16.mxu0 0
    %3818 = vmatmul.mubr.bf16.gmra.mrb[0].mxu0 %v3596
    %v3819 = vpop.f32.mrb[0].mxu0
    %v3820 = vadd.f32 %v3523, %v3819
    %v3821 = vpop.f32.mrb[0].mxu0
    %v3822 = vpop.f32.mrb[0].mxu0
    %v3823 = vadd.f32 %v3523, %v3822
    %v3824 = vpop.f32.mrb[0].mxu0
    %3825 = vmatprep.mubr.bf16.mxu0 0
    %3826 = vmatmul.mubr.bf16.gmra.mrb[0].mxu0 %v3599
    %v3827 = vpop.f32.mrb[0].mxu0
    %v3828 = vadd.f32 %v3523, %v3827
    %v3829 = vpop.f32.mrb[0].mxu0
    %v3830 = vpop.f32.mrb[0].mxu0
    %v3831 = vadd.f32 %v3523, %v3830
    %v3832 = vpop.f32.mrb[0].mxu0
    %3833 = vmatprep.mubr.bf16.mxu0 0
    %3834 = vmatmul.mubr.bf16.gmra.mrb[0].mxu0 %v3602
    %v3835 = vpop.f32.mrb[0].mxu0
    %v3836 = vadd.f32 %v3523, %v3835
    %v3837 = vpop.f32.mrb[0].mxu0
    %v3838 = vpop.f32.mrb[0].mxu0
    %v3839 = vadd.f32 %v3523, %v3838
    %v3840 = vpop.f32.mrb[0].mxu0
    %3841 = vmatprep.mubr.bf16.mxu0 0
    %3842 = vmatmul.mubr.bf16.gmra.mrb[0].mxu0 %v3605
    %v3843 = vpop.f32.mrb[0].mxu0
    %v3844 = vadd.f32 %v3523, %v3843
    %v3845 = vpop.f32.mrb[0].mxu0
    %v3846 = vpop.f32.mrb[0].mxu0
    %v3847 = vadd.f32 %v3523, %v3846
    %v3848 = vpop.f32.mrb[0].mxu0
    %3849 = vmatprep.mubr.bf16.mxu0 0
    %3850 = vmatmul.mubr.bf16.gmra.mrb[0].mxu0 %v3608
    %v3851 = vpop.f32.mrb[0].mxu0
    %v3852 = vadd.f32 %v3523, %v3851
    %v3853 = vpop.f32.mrb[0].mxu0
    %v3854 = vpop.f32.mrb[0].mxu0
    %v3855 = vadd.f32 %v3523, %v3854
    %v3856 = vpop.f32.mrb[0].mxu0
    %3857 = vmatprep.mubr.bf16.mxu0 0
    %3858 = vmatmul.mubr.bf16.gmra.mrb[0].mxu0 %v3611
    %v3859 = vpop.f32.mrb[0].mxu0
    %v3860 = vadd.f32 %v3523, %v3859
    %v3861 = vpop.f32.mrb[0].mxu0
    %v3862 = vpop.f32.mrb[0].mxu0
    %v3863 = vadd.f32 %v3523, %v3862
    %v3864 = vpop.f32.mrb[0].mxu0
    %3865 = vmatprep.mubr.bf16.mxu0 0
    %3866 = vmatmul.mubr.bf16.gmra.mrb[0].mxu0 %v3614
    %v3867 = vpop.f32.mrb[0].mxu0
    %v3868 = vadd.f32 %v3523, %v3867
    %v3869 = vpop.f32.mrb[0].mxu0
    %v3870 = vpop.f32.mrb[0].mxu0
    %v3871 = vadd.f32 %v3523, %v3870
    %v3872 = vpop.f32.mrb[0].mxu0
    %3873 = vmatprep.mubr.bf16.mxu0 0
    %3874 = vmatmul.mubr.bf16.gmra.mrb[0].mxu0 %v3617
    %v3875 = vpop.f32.mrb[0].mxu0
    %v3876 = vadd.f32 %v3523, %v3875
    %v3877 = vpop.f32.mrb[0].mxu0
    %v3878 = vpop.f32.mrb[0].mxu0
    %v3879 = vadd.f32 %v3523, %v3878
    %v3880 = vpop.f32.mrb[0].mxu0
    %3881 = vmatprep.mubr.bf16.mxu0 0
    %3882 = vmatmul.mubr.bf16.gmra.mrb[0].mxu0 %v3620
    %v3883 = vpop.f32.mrb[0].mxu0
    %v3884 = vadd.f32 %v3523, %v3883
    %v3885 = vpop.f32.mrb[0].mxu0
    %v3886 = vpop.f32.mrb[0].mxu0
    %v3887 = vadd.f32 %v3523, %v3886
    %v3888 = vpop.f32.mrb[0].mxu0
    %3889 = vmatprep.mubr.bf16.mxu0 0
    %3890 = vmatmul.mubr.bf16.gmra.mrb[0].mxu0 %v3623
    %v3891 = vpop.f32.mrb[0].mxu0
    %v3892 = vadd.f32 %v3523, %v3891
    %v3893 = vpop.f32.mrb[0].mxu0
    %v3894 = vpop.f32.mrb[0].mxu0
    %v3895 = vadd.f32 %v3523, %v3894
    %v3896 = vpop.f32.mrb[0].mxu0
    %3897 = vmatprep.mubr.bf16.mxu0 0
    %3898 = vmatmul.mubr.bf16.gmra.mrb[0].mxu0 %v3626
    %v3899 = vpop.f32.mrb[0].mxu0
    %v3900 = vadd.f32 %v3523, %v3899
    %v3901 = vpop.f32.mrb[0].mxu0
    %v3902 = vpop.f32.mrb[0].mxu0
    %v3903 = vadd.f32 %v3523, %v3902
    %v3904 = vpop.f32.mrb[0].mxu0
    %3905 = vmatprep.mubr.bf16.mxu0 0
    %3906 = vmatmul.mubr.bf16.gmra.mrb[0].mxu0 %v3629
    %v3907 = vpop.f32.mrb[0].mxu0
    %v3908 = vadd.f32 %v3523, %v3907
    %v3909 = vpop.f32.mrb[0].mxu0
    %v3910 = vpop.f32.mrb[0].mxu0
    %v3911 = vadd.f32 %v3523, %v3910
    %v3912 = vpop.f32.mrb[0].mxu0
    %3913 = vmatprep.mubr.bf16.mxu0 0
    %3914 = vmatmul.mubr.bf16.gmra.mrb[0].mxu0 %v3632
    %v3915 = vpop.f32.mrb[0].mxu0
    %v3916 = vadd.f32 %v3523, %v3915
    %v3917 = vpop.f32.mrb[0].mxu0
    %v3918 = vpop.f32.mrb[0].mxu0
    %v3919 = vadd.f32 %v3523, %v3918
    %v3920 = vpop.f32.mrb[0].mxu0
    %3921 = vmatprep.mubr.bf16.mxu0 0
    %3922 = vmatmul.mubr.bf16.gmra.mrb[0].mxu0 %v3635
    %v3923 = vpop.f32.mrb[0].mxu0
    %v3924 = vadd.f32 %v3523, %v3923
    %v3925 = vpop.f32.mrb[0].mxu0
    %v3926 = vpop.f32.mrb[0].mxu0
    %v3927 = vadd.f32 %v3523, %v3926
    %v3928 = vpop.f32.mrb[0].mxu0
    %3929 = vdwg.mxu0
    %v3930 = vsel %vm3156, %v3676, 0.0
    %v3931 = vsel %vm3156, %v3679, 0.0
    %v3932 = vadd.f32 %v3930, %v3931
    %v3933 = vsel %vm3156, %v3684, 0.0
    %v3934 = vadd.f32 %v3932, %v3933
    %v3935 = vsel %vm3156, %v3687, 0.0
    %v3936 = vadd.f32 %v3934, %v3935
    %v3937 = vsel %vm3156, %v3692, 0.0
    %v3938 = vadd.f32 %v3936, %v3937
    %v3939 = vsel %vm3156, %v3695, 0.0
    %v3940 = vadd.f32 %v3938, %v3939
    %v3941 = vsel %vm3156, %v3700, 0.0
    %v3942 = vadd.f32 %v3940, %v3941
    %v3943 = vsel %vm3156, %v3703, 0.0
    %v3944 = vadd.f32 %v3942, %v3943
    %v3945 = vsel %vm3156, %v3708, 0.0
    %v3946 = vadd.f32 %v3944, %v3945
    %v3947 = vsel %vm3156, %v3711, 0.0
    %v3948 = vadd.f32 %v3946, %v3947
    %v3949 = vsel %vm3156, %v3716, 0.0
    %v3950 = vadd.f32 %v3948, %v3949
    %v3951 = vsel %vm3156, %v3719, 0.0
    %v3952 = vadd.f32 %v3950, %v3951
    %v3953 = vsel %vm3156, %v3724, 0.0
    %v3954 = vadd.f32 %v3952, %v3953
    %v3955 = vsel %vm3156, %v3727, 0.0
    %v3956 = vadd.f32 %v3954, %v3955
    %v3957 = vsel %vm3156, %v3732, 0.0
    %v3958 = vadd.f32 %v3956, %v3957
    %v3959 = vsel %vm3156, %v3735, 0.0
    %v3960 = vadd.f32 %v3958, %v3959
    %v3961 = vsel %vm3156, %v3740, 0.0
    %v3962 = vadd.f32 %v3960, %v3961
    %v3963 = vsel %vm3156, %v3743, 0.0
    %v3964 = vadd.f32 %v3962, %v3963
    %v3965 = vsel %vm3156, %v3748, 0.0
    %v3966 = vadd.f32 %v3964, %v3965
    %v3967 = vsel %vm3156, %v3751, 0.0
    %v3968 = vadd.f32 %v3966, %v3967
    %v3969 = vsel %vm3156, %v3756, 0.0
    %v3970 = vadd.f32 %v3968, %v3969
    %v3971 = vsel %vm3156, %v3759, 0.0
    %v3972 = vadd.f32 %v3970, %v3971
    %v3973 = vsel %vm3156, %v3764, 0.0
    %v3974 = vadd.f32 %v3972, %v3973
    %v3975 = vsel %vm3156, %v3767, 0.0
    %v3976 = vadd.f32 %v3974, %v3975
    %v3977 = vsel %vm3156, %v3772, 0.0
    %v3978 = vadd.f32 %v3976, %v3977
    %v3979 = vsel %vm3156, %v3775, 0.0
    %v3980 = vadd.f32 %v3978, %v3979
    %v3981 = vsel %vm3156, %v3780, 0.0
    %v3982 = vadd.f32 %v3980, %v3981
    %v3983 = vsel %vm3156, %v3783, 0.0
    %v3984 = vadd.f32 %v3982, %v3983
    %v3985 = vsel %vm3156, %v3788, 0.0
    %v3986 = vadd.f32 %v3984, %v3985
    %v3987 = vsel %vm3156, %v3791, 0.0
    %v3988 = vadd.f32 %v3986, %v3987
    %v3989 = vsel %vm3156, %v3796, 0.0
    %v3990 = vadd.f32 %v3988, %v3989
    %v3991 = vsel %vm3156, %v3799, 0.0
    %v3992 = vadd.f32 %v3990, %v3991
    %v3993 = vsel %vm3156, %v3804, 0.0
    %v3994 = vadd.f32 %v3992, %v3993
    %v3995 = vsel %vm3156, %v3807, 0.0
    %v3996 = vadd.f32 %v3994, %v3995
    %v3997 = vsel %vm3156, %v3812, 0.0
    %v3998 = vadd.f32 %v3996, %v3997
    %v3999 = vsel %vm3156, %v3815, 0.0
    %v4000 = vadd.f32 %v3998, %v3999
    %v4001 = vsel %vm3156, %v3820, 0.0
    %v4002 = vadd.f32 %v4000, %v4001
    %v4003 = vsel %vm3156, %v3823, 0.0
    %v4004 = vadd.f32 %v4002, %v4003
    %v4005 = vsel %vm3156, %v3828, 0.0
    %v4006 = vadd.f32 %v4004, %v4005
    %v4007 = vsel %vm3156, %v3831, 0.0
    %v4008 = vadd.f32 %v4006, %v4007
    %v4009 = vsel %vm3156, %v3836, 0.0
    %v4010 = vadd.f32 %v4008, %v4009
    %v4011 = vsel %vm3156, %v3839, 0.0
    %v4012 = vadd.f32 %v4010, %v4011
    %v4013 = vsel %vm3156, %v3844, 0.0
    %v4014 = vadd.f32 %v4012, %v4013
    %v4015 = vsel %vm3156, %v3847, 0.0
    %v4016 = vadd.f32 %v4014, %v4015
    %v4017 = vsel %vm3156, %v3852, 0.0
    %v4018 = vadd.f32 %v4016, %v4017
    %v4019 = vsel %vm3156, %v3855, 0.0
    %v4020 = vadd.f32 %v4018, %v4019
    %v4021 = vsel %vm3156, %v3860, 0.0
    %v4022 = vadd.f32 %v4020, %v4021
    %v4023 = vsel %vm3156, %v3863, 0.0
    %v4024 = vadd.f32 %v4022, %v4023
    %v4025 = vsel %vm3156, %v3868, 0.0
    %v4026 = vadd.f32 %v4024, %v4025
    %v4027 = vsel %vm3156, %v3871, 0.0
    %v4028 = vadd.f32 %v4026, %v4027
    %v4029 = vsel %vm3156, %v3876, 0.0
    %v4030 = vadd.f32 %v4028, %v4029
    %v4031 = vsel %vm3156, %v3879, 0.0
    %v4032 = vadd.f32 %v4030, %v4031
    %v4033 = vsel %vm3156, %v3884, 0.0
    %v4034 = vadd.f32 %v4032, %v4033
    %v4035 = vsel %vm3156, %v3887, 0.0
    %v4036 = vadd.f32 %v4034, %v4035
    %v4037 = vsel %vm3156, %v3892, 0.0
    %v4038 = vadd.f32 %v4036, %v4037
    %v4039 = vsel %vm3156, %v3895, 0.0
    %v4040 = vadd.f32 %v4038, %v4039
    %v4041 = vsel %vm3156, %v3900, 0.0
    %v4042 = vadd.f32 %v4040, %v4041
    %v4043 = vsel %vm3156, %v3903, 0.0
    %v4044 = vadd.f32 %v4042, %v4043
    %v4045 = vsel %vm3156, %v3908, 0.0
    %v4046 = vadd.f32 %v4044, %v4045
    %v4047 = vsel %vm3156, %v3911, 0.0
    %v4048 = vadd.f32 %v4046, %v4047
    %v4049 = vsel %vm3156, %v3916, 0.0
    %v4050 = vadd.f32 %v4048, %v4049
    %v4051 = vsel %vm3156, %v3919, 0.0
    %v4052 = vadd.f32 %v4050, %v4051
    %v4053 = vsel %vm3156, %v3924, 0.0
    %v4054 = vadd.f32 %v4052, %v4053
    %v4055 = vsel %vm3156, %v3927, 0.0
    %v4056 = vadd.f32 %v4054, %v4055
    %v4057 = vrot.slane %v4056, 4
    %v4058 = vadd.f32 %v4056, %v4057
    %v4059 = vrot.slane %v4058, 2
    %v4060 = vadd.f32 %v4058, %v4059
    %v4061 = vrot.slane %v4060, 1
    %v4062 = vadd.f32 %v4060, %v4061
    %v4063 = vrcp.pop 512.0
    %v4064 = vmul.f32 %v4062, %v4063
    %v4065 = vsub.f32 %v3676, %v4064
    %v4066 = vsub.f32 %v3679, %v4064
    %v4067 = vsub.f32 %v3684, %v4064
    %v4068 = vsub.f32 %v3687, %v4064
    %v4069 = vsub.f32 %v3692, %v4064
    %v4070 = vsub.f32 %v3695, %v4064
    %v4071 = vsub.f32 %v3700, %v4064
    %v4072 = vsub.f32 %v3703, %v4064
    %v4073 = vsub.f32 %v3708, %v4064
    %v4074 = vsub.f32 %v3711, %v4064
    %v4075 = vsub.f32 %v3716, %v4064
    %v4076 = vsub.f32 %v3719, %v4064
    %v4077 = vsub.f32 %v3724, %v4064
    %v4078 = vsub.f32 %v3727, %v4064
    %v4079 = vsub.f32 %v3732, %v4064
    %v4080 = vsub.f32 %v3735, %v4064
    %v4081 = vsub.f32 %v3740, %v4064
    %v4082 = vsub.f32 %v3743, %v4064
    %v4083 = vsub.f32 %v3748, %v4064
    %v4084 = vsub.f32 %v3751, %v4064
    %v4085 = vsub.f32 %v3756, %v4064
    %v4086 = vsub.f32 %v3759, %v4064
    %v4087 = vsub.f32 %v3764, %v4064
    %v4088 = vsub.f32 %v3767, %v4064
    %v4089 = vsub.f32 %v3772, %v4064
    %v4090 = vsub.f32 %v3775, %v4064
    %v4091 = vsub.f32 %v3780, %v4064
    %v4092 = vsub.f32 %v3783, %v4064
    %v4093 = vsub.f32 %v3788, %v4064
    %v4094 = vsub.f32 %v3791, %v4064
    %v4095 = vsub.f32 %v3796, %v4064
    %v4096 = vsub.f32 %v3799, %v4064
    %v4097 = vsub.f32 %v3804, %v4064
    %v4098 = vsub.f32 %v3807, %v4064
    %v4099 = vsub.f32 %v3812, %v4064
    %v4100 = vsub.f32 %v3815, %v4064
    %v4101 = vsub.f32 %v3820, %v4064
    %v4102 = vsub.f32 %v3823, %v4064
    %v4103 = vsub.f32 %v3828, %v4064
    %v4104 = vsub.f32 %v3831, %v4064
    %v4105 = vsub.f32 %v3836, %v4064
    %v4106 = vsub.f32 %v3839, %v4064
    %v4107 = vsub.f32 %v3844, %v4064
    %v4108 = vsub.f32 %v3847, %v4064
    %v4109 = vsub.f32 %v3852, %v4064
    %v4110 = vsub.f32 %v3855, %v4064
    %v4111 = vsub.f32 %v3860, %v4064
    %v4112 = vsub.f32 %v3863, %v4064
    %v4113 = vsub.f32 %v3868, %v4064
    %v4114 = vsub.f32 %v3871, %v4064
    %v4115 = vsub.f32 %v3876, %v4064
    %v4116 = vsub.f32 %v3879, %v4064
    %v4117 = vsub.f32 %v3884, %v4064
    %v4118 = vsub.f32 %v3887, %v4064
    %v4119 = vsub.f32 %v3892, %v4064
    %v4120 = vsub.f32 %v3895, %v4064
    %v4121 = vsub.f32 %v3900, %v4064
    %v4122 = vsub.f32 %v3903, %v4064
    %v4123 = vsub.f32 %v3908, %v4064
    %v4124 = vsub.f32 %v3911, %v4064
    %v4125 = vsub.f32 %v3916, %v4064
    %v4126 = vsub.f32 %v3919, %v4064
    %v4127 = vsub.f32 %v3924, %v4064
    %v4128 = vsub.f32 %v3927, %v4064
    %v4129 = vmul.f32 %v4065, %v4065
    %v4130 = vmul.f32 %v4066, %v4066
    %v4131 = vmul.f32 %v4067, %v4067
    %v4132 = vmul.f32 %v4068, %v4068
    %v4133 = vmul.f32 %v4069, %v4069
    %v4134 = vmul.f32 %v4070, %v4070
    %v4135 = vmul.f32 %v4071, %v4071
    %v4136 = vmul.f32 %v4072, %v4072
    %v4137 = vmul.f32 %v4073, %v4073
    %v4138 = vmul.f32 %v4074, %v4074
    %v4139 = vmul.f32 %v4075, %v4075
    %v4140 = vmul.f32 %v4076, %v4076
    %v4141 = vmul.f32 %v4077, %v4077
    %v4142 = vmul.f32 %v4078, %v4078
    %v4143 = vmul.f32 %v4079, %v4079
    %v4144 = vmul.f32 %v4080, %v4080
    %v4145 = vmul.f32 %v4081, %v4081
    %v4146 = vmul.f32 %v4082, %v4082
    %v4147 = vmul.f32 %v4083, %v4083
    %v4148 = vmul.f32 %v4084, %v4084
    %v4149 = vmul.f32 %v4085, %v4085
    %v4150 = vmul.f32 %v4086, %v4086
    %v4151 = vmul.f32 %v4087, %v4087
    %v4152 = vmul.f32 %v4088, %v4088
    %v4153 = vmul.f32 %v4089, %v4089
    %v4154 = vmul.f32 %v4090, %v4090
    %v4155 = vmul.f32 %v4091, %v4091
    %v4156 = vmul.f32 %v4092, %v4092
    %v4157 = vmul.f32 %v4093, %v4093
    %v4158 = vmul.f32 %v4094, %v4094
    %v4159 = vmul.f32 %v4095, %v4095
    %v4160 = vmul.f32 %v4096, %v4096
    %v4161 = vmul.f32 %v4097, %v4097
    %v4162 = vmul.f32 %v4098, %v4098
    %v4163 = vmul.f32 %v4099, %v4099
    %v4164 = vmul.f32 %v4100, %v4100
    %v4165 = vmul.f32 %v4101, %v4101
    %v4166 = vmul.f32 %v4102, %v4102
    %v4167 = vmul.f32 %v4103, %v4103
    %v4168 = vmul.f32 %v4104, %v4104
    %v4169 = vmul.f32 %v4105, %v4105
    %v4170 = vmul.f32 %v4106, %v4106
    %v4171 = vmul.f32 %v4107, %v4107
    %v4172 = vmul.f32 %v4108, %v4108
    %v4173 = vmul.f32 %v4109, %v4109
    %v4174 = vmul.f32 %v4110, %v4110
    %v4175 = vmul.f32 %v4111, %v4111
    %v4176 = vmul.f32 %v4112, %v4112
    %v4177 = vmul.f32 %v4113, %v4113
    %v4178 = vmul.f32 %v4114, %v4114
    %v4179 = vmul.f32 %v4115, %v4115
    %v4180 = vmul.f32 %v4116, %v4116
    %v4181 = vmul.f32 %v4117, %v4117
    %v4182 = vmul.f32 %v4118, %v4118
    %v4183 = vmul.f32 %v4119, %v4119
    %v4184 = vmul.f32 %v4120, %v4120
    %v4185 = vmul.f32 %v4121, %v4121
    %v4186 = vmul.f32 %v4122, %v4122
    %v4187 = vmul.f32 %v4123, %v4123
    %v4188 = vmul.f32 %v4124, %v4124
    %v4189 = vmul.f32 %v4125, %v4125
    %v4190 = vmul.f32 %v4126, %v4126
    %v4191 = vmul.f32 %v4127, %v4127
    %v4192 = vmul.f32 %v4128, %v4128
    %v4193 = vsel %vm3156, %v4129, 0.0
    %v4194 = vsel %vm3156, %v4130, 0.0
    %v4195 = vadd.f32 %v4193, %v4194
    %v4196 = vsel %vm3156, %v4131, 0.0
    %v4197 = vadd.f32 %v4195, %v4196
    %v4198 = vsel %vm3156, %v4132, 0.0
    %v4199 = vadd.f32 %v4197, %v4198
    %v4200 = vsel %vm3156, %v4133, 0.0
    %v4201 = vadd.f32 %v4199, %v4200
    %v4202 = vsel %vm3156, %v4134, 0.0
    %v4203 = vadd.f32 %v4201, %v4202
    %v4204 = vsel %vm3156, %v4135, 0.0
    %v4205 = vadd.f32 %v4203, %v4204
    %v4206 = vsel %vm3156, %v4136, 0.0
    %v4207 = vadd.f32 %v4205, %v4206
    %v4208 = vsel %vm3156, %v4137, 0.0
    %v4209 = vadd.f32 %v4207, %v4208
    %v4210 = vsel %vm3156, %v4138, 0.0
    %v4211 = vadd.f32 %v4209, %v4210
    %v4212 = vsel %vm3156, %v4139, 0.0
    %v4213 = vadd.f32 %v4211, %v4212
    %v4214 = vsel %vm3156, %v4140, 0.0
    %v4215 = vadd.f32 %v4213, %v4214
    %v4216 = vsel %vm3156, %v4141, 0.0
    %v4217 = vadd.f32 %v4215, %v4216
    %v4218 = vsel %vm3156, %v4142, 0.0
    %v4219 = vadd.f32 %v4217, %v4218
    %v4220 = vsel %vm3156, %v4143, 0.0
    %v4221 = vadd.f32 %v4219, %v4220
    %v4222 = vsel %vm3156, %v4144, 0.0
    %v4223 = vadd.f32 %v4221, %v4222
    %v4224 = vsel %vm3156, %v4145, 0.0
    %v4225 = vadd.f32 %v4223, %v4224
    %v4226 = vsel %vm3156, %v4146, 0.0
    %v4227 = vadd.f32 %v4225, %v4226
    %v4228 = vsel %vm3156, %v4147, 0.0
    %v4229 = vadd.f32 %v4227, %v4228
    %v4230 = vsel %vm3156, %v4148, 0.0
    %v4231 = vadd.f32 %v4229, %v4230
    %v4232 = vsel %vm3156, %v4149, 0.0
    %v4233 = vadd.f32 %v4231, %v4232
    %v4234 = vsel %vm3156, %v4150, 0.0
    %v4235 = vadd.f32 %v4233, %v4234
    %v4236 = vsel %vm3156, %v4151, 0.0
    %v4237 = vadd.f32 %v4235, %v4236
    %v4238 = vsel %vm3156, %v4152, 0.0
    %v4239 = vadd.f32 %v4237, %v4238
    %v4240 = vsel %vm3156, %v4153, 0.0
    %v4241 = vadd.f32 %v4239, %v4240
    %v4242 = vsel %vm3156, %v4154, 0.0
    %v4243 = vadd.f32 %v4241, %v4242
    %v4244 = vsel %vm3156, %v4155, 0.0
    %v4245 = vadd.f32 %v4243, %v4244
    %v4246 = vsel %vm3156, %v4156, 0.0
    %v4247 = vadd.f32 %v4245, %v4246
    %v4248 = vsel %vm3156, %v4157, 0.0
    %v4249 = vadd.f32 %v4247, %v4248
    %v4250 = vsel %vm3156, %v4158, 0.0
    %v4251 = vadd.f32 %v4249, %v4250
    %v4252 = vsel %vm3156, %v4159, 0.0
    %v4253 = vadd.f32 %v4251, %v4252
    %v4254 = vsel %vm3156, %v4160, 0.0
    %v4255 = vadd.f32 %v4253, %v4254
    %v4256 = vsel %vm3156, %v4161, 0.0
    %v4257 = vadd.f32 %v4255, %v4256
    %v4258 = vsel %vm3156, %v4162, 0.0
    %v4259 = vadd.f32 %v4257, %v4258
    %v4260 = vsel %vm3156, %v4163, 0.0
    %v4261 = vadd.f32 %v4259, %v4260
    %v4262 = vsel %vm3156, %v4164, 0.0
    %v4263 = vadd.f32 %v4261, %v4262
    %v4264 = vsel %vm3156, %v4165, 0.0
    %v4265 = vadd.f32 %v4263, %v4264
    %v4266 = vsel %vm3156, %v4166, 0.0
    %v4267 = vadd.f32 %v4265, %v4266
    %v4268 = vsel %vm3156, %v4167, 0.0
    %v4269 = vadd.f32 %v4267, %v4268
    %v4270 = vsel %vm3156, %v4168, 0.0
    %v4271 = vadd.f32 %v4269, %v4270
    %v4272 = vsel %vm3156, %v4169, 0.0
    %v4273 = vadd.f32 %v4271, %v4272
    %v4274 = vsel %vm3156, %v4170, 0.0
    %v4275 = vadd.f32 %v4273, %v4274
    %v4276 = vsel %vm3156, %v4171, 0.0
    %v4277 = vadd.f32 %v4275, %v4276
    %v4278 = vsel %vm3156, %v4172, 0.0
    %v4279 = vadd.f32 %v4277, %v4278
    %v4280 = vsel %vm3156, %v4173, 0.0
    %v4281 = vadd.f32 %v4279, %v4280
    %v4282 = vsel %vm3156, %v4174, 0.0
    %v4283 = vadd.f32 %v4281, %v4282
    %v4284 = vsel %vm3156, %v4175, 0.0
    %v4285 = vadd.f32 %v4283, %v4284
    %v4286 = vsel %vm3156, %v4176, 0.0
    %v4287 = vadd.f32 %v4285, %v4286
    %v4288 = vsel %vm3156, %v4177, 0.0
    %v4289 = vadd.f32 %v4287, %v4288
    %v4290 = vsel %vm3156, %v4178, 0.0
    %v4291 = vadd.f32 %v4289, %v4290
    %v4292 = vsel %vm3156, %v4179, 0.0
    %v4293 = vadd.f32 %v4291, %v4292
    %v4294 = vsel %vm3156, %v4180, 0.0
    %v4295 = vadd.f32 %v4293, %v4294
    %v4296 = vsel %vm3156, %v4181, 0.0
    %v4297 = vadd.f32 %v4295, %v4296
    %v4298 = vsel %vm3156, %v4182, 0.0
    %v4299 = vadd.f32 %v4297, %v4298
    %v4300 = vsel %vm3156, %v4183, 0.0
    %v4301 = vadd.f32 %v4299, %v4300
    %v4302 = vsel %vm3156, %v4184, 0.0
    %v4303 = vadd.f32 %v4301, %v4302
    %v4304 = vsel %vm3156, %v4185, 0.0
    %v4305 = vadd.f32 %v4303, %v4304
    %v4306 = vsel %vm3156, %v4186, 0.0
    %v4307 = vadd.f32 %v4305, %v4306
    %v4308 = vsel %vm3156, %v4187, 0.0
    %v4309 = vadd.f32 %v4307, %v4308
    %v4310 = vsel %vm3156, %v4188, 0.0
    %v4311 = vadd.f32 %v4309, %v4310
    %v4312 = vsel %vm3156, %v4189, 0.0
    %v4313 = vadd.f32 %v4311, %v4312
    %v4314 = vsel %vm3156, %v4190, 0.0
    %v4315 = vadd.f32 %v4313, %v4314
    %v4316 = vsel %vm3156, %v4191, 0.0
    %v4317 = vadd.f32 %v4315, %v4316
    %v4318 = vsel %vm3156, %v4192, 0.0
    %v4319 = vadd.f32 %v4317, %v4318
    %v4320 = vrot.slane %v4319, 4
    %v4321 = vadd.f32 %v4319, %v4320
    %v4322 = vrot.slane %v4321, 2
    %v4323 = vadd.f32 %v4321, %v4322
    %v4324 = vrot.slane %v4323, 1
    %v4325 = vadd.f32 %v4323, %v4324
    %v4326 = vmul.f32 %v4325, %v4063
    %v4327 = vld [vmem:[%s3] sm:$0x1]
    %v4328 = vadd.f32 %v4326, 1e-05
    %v4329 = vrsqrt.pop %v4328
    %v4330 = vmul.f32 %v4327, %v4329
    %v4331 = vld [vmem:[%s4] sm:$0x1]
    %v4332 = vmul.f32 %v4064, %v4330
    %v4333 = vsub.f32 %v4331, %v4332
    %v4335 = vlaneseq
    %v4336 = vshrl.u32 %v4335, 7
    %v4337 = vsub.s32 0, %v4336
    %v4338 = vrot.slane %v4330, %v4337
    %v4340 = vmul.f32 %v3676, %v4338
    %v4341 = vmul.f32 %v3679, %v4338
    %v4342 = vmul.f32 %v3684, %v4338
    %v4343 = vmul.f32 %v3687, %v4338
    %v4344 = vmul.f32 %v3692, %v4338
    %v4345 = vmul.f32 %v3695, %v4338
    %v4346 = vmul.f32 %v3700, %v4338
    %v4347 = vmul.f32 %v3703, %v4338
    %v4348 = vmul.f32 %v3708, %v4338
    %v4349 = vmul.f32 %v3711, %v4338
    %v4350 = vmul.f32 %v3716, %v4338
    %v4351 = vmul.f32 %v3719, %v4338
    %v4352 = vmul.f32 %v3724, %v4338
    %v4353 = vmul.f32 %v3727, %v4338
    %v4354 = vmul.f32 %v3732, %v4338
    %v4355 = vmul.f32 %v3735, %v4338
    %v4356 = vmul.f32 %v3740, %v4338
    %v4357 = vmul.f32 %v3743, %v4338
    %v4358 = vmul.f32 %v3748, %v4338
    %v4359 = vmul.f32 %v3751, %v4338
    %v4360 = vmul.f32 %v3756, %v4338
    %v4361 = vmul.f32 %v3759, %v4338
    %v4362 = vmul.f32 %v3764, %v4338
    %v4363 = vmul.f32 %v3767, %v4338
    %v4364 = vmul.f32 %v3772, %v4338
    %v4365 = vmul.f32 %v3775, %v4338
    %v4366 = vmul.f32 %v3780, %v4338
    %v4367 = vmul.f32 %v3783, %v4338
    %v4368 = vmul.f32 %v3788, %v4338
    %v4369 = vmul.f32 %v3791, %v4338
    %v4370 = vmul.f32 %v3796, %v4338
    %v4371 = vmul.f32 %v3799, %v4338
    %v4372 = vmul.f32 %v3804, %v4338
    %v4373 = vmul.f32 %v3807, %v4338
    %v4374 = vmul.f32 %v3812, %v4338
    %v4375 = vmul.f32 %v3815, %v4338
    %v4376 = vmul.f32 %v3820, %v4338
    %v4377 = vmul.f32 %v3823, %v4338
    %v4378 = vmul.f32 %v3828, %v4338
    %v4379 = vmul.f32 %v3831, %v4338
    %v4380 = vmul.f32 %v3836, %v4338
    %v4381 = vmul.f32 %v3839, %v4338
    %v4382 = vmul.f32 %v3844, %v4338
    %v4383 = vmul.f32 %v3847, %v4338
    %v4384 = vmul.f32 %v3852, %v4338
    %v4385 = vmul.f32 %v3855, %v4338
    %v4386 = vmul.f32 %v3860, %v4338
    %v4387 = vmul.f32 %v3863, %v4338
    %v4388 = vmul.f32 %v3868, %v4338
    %v4389 = vmul.f32 %v3871, %v4338
    %v4390 = vmul.f32 %v3876, %v4338
    %v4391 = vmul.f32 %v3879, %v4338
    %v4392 = vmul.f32 %v3884, %v4338
    %v4393 = vmul.f32 %v3887, %v4338
    %v4394 = vmul.f32 %v3892, %v4338
    %v4395 = vmul.f32 %v3895, %v4338
    %v4396 = vmul.f32 %v3900, %v4338
    %v4397 = vmul.f32 %v3903, %v4338
    %v4398 = vmul.f32 %v3908, %v4338
    %v4399 = vmul.f32 %v3911, %v4338
    %v4400 = vmul.f32 %v3916, %v4338
    %v4401 = vmul.f32 %v3919, %v4338
    %v4402 = vmul.f32 %v3924, %v4338
    %v4403 = vmul.f32 %v3927, %v4338
    %v4405 = vlaneseq
    %v4406 = vshrl.u32 %v4405, 7
    %v4407 = vsub.s32 0, %v4406
    %v4408 = vrot.slane %v4333, %v4407
    %v4410 = vadd.f32 %v4340, %v4408
    %v4411 = vadd.f32 %v4341, %v4408
    %v4412 = vadd.f32 %v4342, %v4408
    %v4413 = vadd.f32 %v4343, %v4408
    %v4414 = vadd.f32 %v4344, %v4408
    %v4415 = vadd.f32 %v4345, %v4408
    %v4416 = vadd.f32 %v4346, %v4408
    %v4417 = vadd.f32 %v4347, %v4408
    %v4418 = vadd.f32 %v4348, %v4408
    %v4419 = vadd.f32 %v4349, %v4408
    %v4420 = vadd.f32 %v4350, %v4408
    %v4421 = vadd.f32 %v4351, %v4408
    %v4422 = vadd.f32 %v4352, %v4408
    %v4423 = vadd.f32 %v4353, %v4408
    %v4424 = vadd.f32 %v4354, %v4408
    %v4425 = vadd.f32 %v4355, %v4408
    %v4426 = vadd.f32 %v4356, %v4408
    %v4427 = vadd.f32 %v4357, %v4408
    %v4428 = vadd.f32 %v4358, %v4408
    %v4429 = vadd.f32 %v4359, %v4408
    %v4430 = vadd.f32 %v4360, %v4408
    %v4431 = vadd.f32 %v4361, %v4408
    %v4432 = vadd.f32 %v4362, %v4408
    %v4433 = vadd.f32 %v4363, %v4408
    %v4434 = vadd.f32 %v4364, %v4408
    %v4435 = vadd.f32 %v4365, %v4408
    %v4436 = vadd.f32 %v4366, %v4408
    %v4437 = vadd.f32 %v4367, %v4408
    %v4438 = vadd.f32 %v4368, %v4408
    %v4439 = vadd.f32 %v4369, %v4408
    %v4440 = vadd.f32 %v4370, %v4408
    %v4441 = vadd.f32 %v4371, %v4408
    %v4442 = vadd.f32 %v4372, %v4408
    %v4443 = vadd.f32 %v4373, %v4408
    %v4444 = vadd.f32 %v4374, %v4408
    %v4445 = vadd.f32 %v4375, %v4408
    %v4446 = vadd.f32 %v4376, %v4408
    %v4447 = vadd.f32 %v4377, %v4408
    %v4448 = vadd.f32 %v4378, %v4408
    %v4449 = vadd.f32 %v4379, %v4408
    %v4450 = vadd.f32 %v4380, %v4408
    %v4451 = vadd.f32 %v4381, %v4408
    %v4452 = vadd.f32 %v4382, %v4408
    %v4453 = vadd.f32 %v4383, %v4408
    %v4454 = vadd.f32 %v4384, %v4408
    %v4455 = vadd.f32 %v4385, %v4408
    %v4456 = vadd.f32 %v4386, %v4408
    %v4457 = vadd.f32 %v4387, %v4408
    %v4458 = vadd.f32 %v4388, %v4408
    %v4459 = vadd.f32 %v4389, %v4408
    %v4460 = vadd.f32 %v4390, %v4408
    %v4461 = vadd.f32 %v4391, %v4408
    %v4462 = vadd.f32 %v4392, %v4408
    %v4463 = vadd.f32 %v4393, %v4408
    %v4464 = vadd.f32 %v4394, %v4408
    %v4465 = vadd.f32 %v4395, %v4408
    %v4466 = vadd.f32 %v4396, %v4408
    %v4467 = vadd.f32 %v4397, %v4408
    %v4468 = vadd.f32 %v4398, %v4408
    %v4469 = vadd.f32 %v4399, %v4408
    %v4470 = vadd.f32 %v4400, %v4408
    %v4471 = vadd.f32 %v4401, %v4408
    %v4472 = vadd.f32 %v4402, %v4408
    %v4473 = vadd.f32 %v4403, %v4408
    %v4474 = vmax.f32 %v4410, %v4412
    %v4475 = vmax.f32 %v4411, %v4413
    %v4476 = vmax.f32 %v4414, %v4416
    %v4477 = vmax.f32 %v4415, %v4417
    %v4478 = vmax.f32 %v4418, %v4420
    %v4479 = vmax.f32 %v4419, %v4421
    %v4480 = vmax.f32 %v4422, %v4424
    %v4481 = vmax.f32 %v4423, %v4425
    %v4482 = vmax.f32 %v4426, %v4428
    %v4483 = vmax.f32 %v4427, %v4429
    %v4484 = vmax.f32 %v4430, %v4432
    %v4485 = vmax.f32 %v4431, %v4433
    %v4486 = vmax.f32 %v4434, %v4436
    %v4487 = vmax.f32 %v4435, %v4437
    %v4488 = vmax.f32 %v4438, %v4440
    %v4489 = vmax.f32 %v4439, %v4441
    %v4490 = vmax.f32 %v4442, %v4444
    %v4491 = vmax.f32 %v4443, %v4445
    %v4492 = vmax.f32 %v4446, %v4448
    %v4493 = vmax.f32 %v4447, %v4449
    %v4494 = vmax.f32 %v4450, %v4452
    %v4495 = vmax.f32 %v4451, %v4453
    %v4496 = vmax.f32 %v4454, %v4456
    %v4497 = vmax.f32 %v4455, %v4457
    %v4498 = vmax.f32 %v4458, %v4460
    %v4499 = vmax.f32 %v4459, %v4461
    %v4500 = vmax.f32 %v4462, %v4464
    %v4501 = vmax.f32 %v4463, %v4465
    %v4502 = vmax.f32 %v4466, %v4468
    %v4503 = vmax.f32 %v4467, %v4469
    %v4504 = vmax.f32 %v4470, %v4472
    %v4505 = vmax.f32 %v4471, %v4473
    %4506 = vst.msk [vmem:[#allocation4] sm:$0xff] %vm3156, %v4474
    %4507 = vst.msk [vmem:[#allocation4 + $0x8] sm:$0xff] %vm3156, %v4475
    %4508 = vst.msk [vmem:[#allocation4 + $0x10] sm:$0xff] %vm3156, %v4476
    %4509 = vst.msk [vmem:[#allocation4 + $0x18] sm:$0xff] %vm3156, %v4477
    %4510 = vst.msk [vmem:[#allocation4 + $0x20] sm:$0xff] %vm3156, %v4478
    %4511 = vst.msk [vmem:[#allocation4 + $0x28] sm:$0xff] %vm3156, %v4479
    %4512 = vst.msk [vmem:[#allocation4 + $0x30] sm:$0xff] %vm3156, %v4480
    %4513 = vst.msk [vmem:[#allocation4 + $0x38] sm:$0xff] %vm3156, %v4481
    %4514 = vst.msk [vmem:[#allocation4 + $0x40] sm:$0xff] %vm3156, %v4482
    %4515 = vst.msk [vmem:[#allocation4 + $0x48] sm:$0xff] %vm3156, %v4483
    %4516 = vst.msk [vmem:[#allocation4 + $0x50] sm:$0xff] %vm3156, %v4484
    %4517 = vst.msk [vmem:[#allocation4 + $0x58] sm:$0xff] %vm3156, %v4485
    %4518 = vst.msk [vmem:[#allocation4 + $0x60] sm:$0xff] %vm3156, %v4486
    %4519 = vst.msk [vmem:[#allocation4 + $0x68] sm:$0xff] %vm3156, %v4487
    %4520 = vst.msk [vmem:[#allocation4 + $0x70] sm:$0xff] %vm3156, %v4488
    %4521 = vst.msk [vmem:[#allocation4 + $0x78] sm:$0xff] %vm3156, %v4489
    %4522 = vst.msk [vmem:[#allocation4 + $0x80] sm:$0xff] %vm3156, %v4490
    %4523 = vst.msk [vmem:[#allocation4 + $0x88] sm:$0xff] %vm3156, %v4491
    %4524 = vst.msk [vmem:[#allocation4 + $0x90] sm:$0xff] %vm3156, %v4492
    %4525 = vst.msk [vmem:[#allocation4 + $0x98] sm:$0xff] %vm3156, %v4493
    %4526 = vst.msk [vmem:[#allocation4 + $0xa0] sm:$0xff] %vm3156, %v4494
    %4527 = vst.msk [vmem:[#allocation4 + $0xa8] sm:$0xff] %vm3156, %v4495
    %4528 = vst.msk [vmem:[#allocation4 + $0xb0] sm:$0xff] %vm3156, %v4496
    %4529 = vst.msk [vmem:[#allocation4 + $0xb8] sm:$0xff] %vm3156, %v4497
    %4530 = vst.msk [vmem:[#allocation4 + $0xc0] sm:$0xff] %vm3156, %v4498
    %4531 = vst.msk [vmem:[#allocation4 + $0xc8] sm:$0xff] %vm3156, %v4499
    %4532 = vst.msk [vmem:[#allocation4 + $0xd0] sm:$0xff] %vm3156, %v4500
    %4533 = vst.msk [vmem:[#allocation4 + $0xd8] sm:$0xff] %vm3156, %v4501
    %4534 = vst.msk [vmem:[#allocation4 + $0xe0] sm:$0xff] %vm3156, %v4502
    %4535 = vst.msk [vmem:[#allocation4 + $0xe8] sm:$0xff] %vm3156, %v4503
    %4536 = vst.msk [vmem:[#allocation4 + $0xf0] sm:$0xff] %vm3156, %v4504
    %4537 = vst.msk [vmem:[#allocation4 + $0xf8] sm:$0xff] %vm3156, %v4505
    %v4538 = vld [vmem:[#allocation4] ss:$2 sm:$0xff]
    %s4539 = scalar_lea.vmem [#allocation4], 16
    %v4540 = vld [vmem:[%s4539] ss:$2 sm:$0xff]
    %s4541 = scalar_lea.vmem [#allocation4], 32
    %v4542 = vld [vmem:[%s4541] ss:$2 sm:$0xff]
    %s4543 = scalar_lea.vmem [#allocation4], 48
    %v4544 = vld [vmem:[%s4543] ss:$2 sm:$0xff]
    %s4545 = scalar_lea.vmem [#allocation4], 64
    %v4546 = vld [vmem:[%s4545] ss:$2 sm:$0xff]
    %s4547 = scalar_lea.vmem [#allocation4], 80
    %v4548 = vld [vmem:[%s4547] ss:$2 sm:$0xff]
    %s4549 = scalar_lea.vmem [#allocation4], 96
    %v4550 = vld [vmem:[%s4549] ss:$2 sm:$0xff]
    %s4551 = scalar_lea.vmem [#allocation4], 112
    %v4552 = vld [vmem:[%s4551] ss:$2 sm:$0xff]
    %s4553 = scalar_lea.vmem [#allocation4], 128
    %v4554 = vld [vmem:[%s4553] ss:$2 sm:$0xff]
    %s4555 = scalar_lea.vmem [#allocation4], 144
    %v4556 = vld [vmem:[%s4555] ss:$2 sm:$0xff]
    %s4557 = scalar_lea.vmem [#allocation4], 160
    %v4558 = vld [vmem:[%s4557] ss:$2 sm:$0xff]
    %s4559 = scalar_lea.vmem [#allocation4], 176
    %v4560 = vld [vmem:[%s4559] ss:$2 sm:$0xff]
    %s4561 = scalar_lea.vmem [#allocation4], 192
    %v4562 = vld [vmem:[%s4561] ss:$2 sm:$0xff]
    %s4563 = scalar_lea.vmem [#allocation4], 208
    %v4564 = vld [vmem:[%s4563] ss:$2 sm:$0xff]
    %s4565 = scalar_lea.vmem [#allocation4], 224
    %v4566 = vld [vmem:[%s4565] ss:$2 sm:$0xff]
    %s4567 = scalar_lea.vmem [#allocation4], 240
    %v4568 = vld [vmem:[%s4567] ss:$2 sm:$0xff]
    %s4569 = scalar_lea.vmem [#allocation4], 1
    %v4570 = vld [vmem:[%s4569] ss:$2 sm:$0xff]
    %s4571 = scalar_lea.vmem [#allocation4], 17
    %v4572 = vld [vmem:[%s4571] ss:$2 sm:$0xff]
    %s4573 = scalar_lea.vmem [#allocation4], 33
    %v4574 = vld [vmem:[%s4573] ss:$2 sm:$0xff]
    %s4575 = scalar_lea.vmem [#allocation4], 49
    %v4576 = vld [vmem:[%s4575] ss:$2 sm:$0xff]
    %s4577 = scalar_lea.vmem [#allocation4], 65
    %v4578 = vld [vmem:[%s4577] ss:$2 sm:$0xff]
    %s4579 = scalar_lea.vmem [#allocation4], 81
    %v4580 = vld [vmem:[%s4579] ss:$2 sm:$0xff]
    %s4581 = scalar_lea.vmem [#allocation4], 97
    %v4582 = vld [vmem:[%s4581] ss:$2 sm:$0xff]
    %s4583 = scalar_lea.vmem [#allocation4], 113
    %v4584 = vld [vmem:[%s4583] ss:$2 sm:$0xff]
    %s4585 = scalar_lea.vmem [#allocation4], 129
    %v4586 = vld [vmem:[%s4585] ss:$2 sm:$0xff]
    %s4587 = scalar_lea.vmem [#allocation4], 145
    %v4588 = vld [vmem:[%s4587] ss:$2 sm:$0xff]
    %s4589 = scalar_lea.vmem [#allocation4], 161
    %v4590 = vld [vmem:[%s4589] ss:$2 sm:$0xff]
    %s4591 = scalar_lea.vmem [#allocation4], 177
    %v4592 = vld [vmem:[%s4591] ss:$2 sm:$0xff]
    %s4593 = scalar_lea.vmem [#allocation4], 193
    %v4594 = vld [vmem:[%s4593] ss:$2 sm:$0xff]
    %s4595 = scalar_lea.vmem [#allocation4], 209
    %v4596 = vld [vmem:[%s4595] ss:$2 sm:$0xff]
    %s4597 = scalar_lea.vmem [#allocation4], 225
    %v4598 = vld [vmem:[%s4597] ss:$2 sm:$0xff]
    %s4599 = scalar_lea.vmem [#allocation4], 241
    %v4600 = vld [vmem:[%s4599] ss:$2 sm:$0xff]
    %v4601 = vmax.f32 %v4538, %v4570
    %v4602 = vmax.f32 %v4540, %v4572
    %v4603 = vmax.f32 %v4542, %v4574
    %v4604 = vmax.f32 %v4544, %v4576
    %v4605 = vmax.f32 %v4546, %v4578
    %v4606 = vmax.f32 %v4548, %v4580
    %v4607 = vmax.f32 %v4550, %v4582
    %v4608 = vmax.f32 %v4552, %v4584
    %v4609 = vmax.f32 %v4554, %v4586
    %v4610 = vmax.f32 %v4556, %v4588
    %v4611 = vmax.f32 %v4558, %v4590
    %v4612 = vmax.f32 %v4560, %v4592
    %v4613 = vmax.f32 %v4562, %v4594
    %v4614 = vmax.f32 %v4564, %v4596
    %v4615 = vmax.f32 %v4566, %v4598
    %v4616 = vmax.f32 %v4568, %v4600
    %4617 = vst.msk [vmem:[#allocation3] sm:$0xff] %vm3156, 0.0
    %vm4618 = vcmask 123904
    %4619 = vst.msk [vmem:[#allocation3 + $0x8] sm:$0x3] %vm4618, 0.0
    %4620 = vst.msk [vmem:[#allocation3 + $0x10] sm:$0xff] %vm3156, 0.0
    %4621 = vst.msk [vmem:[#allocation3 + $0x18] sm:$0x3] %vm4618, 0.0
    %4622 = vst.msk [vmem:[#allocation3 + $0x20] sm:$0xff] %vm3156, 0.0
    %4623 = vst.msk [vmem:[#allocation3 + $0x28] sm:$0x3] %vm4618, 0.0
    %4624 = vst.msk [vmem:[#allocation3 + $0x30] sm:$0xff] %vm3156, 0.0
    %4625 = vst.msk [vmem:[#allocation3 + $0x38] sm:$0x3] %vm4618, 0.0
    %4626 = vst.msk [vmem:[#allocation3 + $0x40] sm:$0xff] %vm3156, 0.0
    %4627 = vst.msk [vmem:[#allocation3 + $0x48] sm:$0x3] %vm4618, 0.0
    %4628 = vst.msk [vmem:[#allocation3 + $0x50] sm:$0xff] %vm3156, 0.0
    %4629 = vst.msk [vmem:[#allocation3 + $0x58] sm:$0x3] %vm4618, 0.0
    %4630 = vst.msk [vmem:[#allocation3 + $0x60] sm:$0xff] %vm3156, 0.0
    %4631 = vst.msk [vmem:[#allocation3 + $0x68] sm:$0x3] %vm4618, 0.0
    %4632 = vst.msk [vmem:[#allocation3 + $0x70] sm:$0xff] %vm3156, 0.0
    %4633 = vst.msk [vmem:[#allocation3 + $0x78] sm:$0x3] %vm4618, 0.0
    %4634 = vst.msk [vmem:[#allocation3 + $0x80] sm:$0xff] %vm3156, 0.0
    %4635 = vst.msk [vmem:[#allocation3 + $0x88] sm:$0x3] %vm4618, 0.0
    %4636 = vst.msk [vmem:[#allocation3 + $0x90] sm:$0xff] %vm3156, 0.0
    %4637 = vst.msk [vmem:[#allocation3 + $0x98] sm:$0x3] %vm4618, 0.0
    %4638 = vst.msk [vmem:[#allocation3 + $0xa0] sm:$0xff] %vm3156, 0.0
    %4639 = vst.msk [vmem:[#allocation3 + $0xa8] sm:$0x3] %vm4618, 0.0
    %4640 = vst.msk [vmem:[#allocation3 + $0xb0] sm:$0xff] %vm3156, 0.0
    %4641 = vst.msk [vmem:[#allocation3 + $0xb8] sm:$0x3] %vm4618, 0.0
    %4642 = vst.msk [vmem:[#allocation3 + $0xc0] sm:$0xff] %vm3156, 0.0
    %4643 = vst.msk [vmem:[#allocation3 + $0xc8] sm:$0x3] %vm4618, 0.0
    %4644 = vst.msk [vmem:[#allocation3 + $0xd0] sm:$0xff] %vm3156, 0.0
    %4645 = vst.msk [vmem:[#allocation3 + $0xd8] sm:$0x3] %vm4618, 0.0
    %4646 = vst.msk [vmem:[#allocation3 + $0xe0] sm:$0xff] %vm3156, 0.0
    %4647 = vst.msk [vmem:[#allocation3 + $0xe8] sm:$0x3] %vm4618, 0.0
    %4648 = vst.msk [vmem:[#allocation3 + $0xf0] sm:$0xff] %vm3156, 0.0
    %4649 = vst.msk [vmem:[#allocation3 + $0xf8] sm:$0x3] %vm4618, 0.0
    %4650 = vst.msk [vmem:[#allocation3 + $0x100] sm:$0xff] %vm3156, 0.0
    %4651 = vst.msk [vmem:[#allocation3 + $0x108] sm:$0x3] %vm4618, 0.0
    %4652 = vst.msk [vmem:[#allocation3 + $0x110] sm:$0xff] %vm3156, 0.0
    %4653 = vst.msk [vmem:[#allocation3 + $0x118] sm:$0x3] %vm4618, 0.0
    %4654 = vst.msk [vmem:[#allocation3 + $0x120] sm:$0xff] %vm3156, 0.0
    %4655 = vst.msk [vmem:[#allocation3 + $0x128] sm:$0x3] %vm4618, 0.0
    %4656 = vst.msk [vmem:[#allocation3 + $0x130] sm:$0xff] %vm3156, 0.0
    %4657 = vst.msk [vmem:[#allocation3 + $0x138] sm:$0x3] %vm4618, 0.0
    %s4658 = scalar_lea.vmem [#allocation3], 16
    %4659 = vst.msk [vmem:[%s4658 + $0x1] sm:$0xff] %vm3156, %v4601
    %4660 = vst.msk [vmem:[%s4658 + $0x11] sm:$0xff] %vm3156, %v4602
    %4661 = vst.msk [vmem:[%s4658 + $0x21] sm:$0xff] %vm3156, %v4603
    %4662 = vst.msk [vmem:[%s4658 + $0x31] sm:$0xff] %vm3156, %v4604
    %4663 = vst.msk [vmem:[%s4658 + $0x41] sm:$0xff] %vm3156, %v4605
    %4664 = vst.msk [vmem:[%s4658 + $0x51] sm:$0xff] %vm3156, %v4606
    %4665 = vst.msk [vmem:[%s4658 + $0x61] sm:$0xff] %vm3156, %v4607
    %4666 = vst.msk [vmem:[%s4658 + $0x71] sm:$0xff] %vm3156, %v4608
    %4667 = vst.msk [vmem:[%s4658 + $0xa1] sm:$0xff] %vm3156, %v4609
    %4668 = vst.msk [vmem:[%s4658 + $0xb1] sm:$0xff] %vm3156, %v4610
    %4669 = vst.msk [vmem:[%s4658 + $0xc1] sm:$0xff] %vm3156, %v4611
    %4670 = vst.msk [vmem:[%s4658 + $0xd1] sm:$0xff] %vm3156, %v4612
    %4671 = vst.msk [vmem:[%s4658 + $0xe1] sm:$0xff] %vm3156, %v4613
    %4672 = vst.msk [vmem:[%s4658 + $0xf1] sm:$0xff] %vm3156, %v4614
    %4673 = vst.msk [vmem:[%s4658 + $0x101] sm:$0xff] %vm3156, %v4615
    %4674 = vst.msk [vmem:[%s4658 + $0x111] sm:$0xff] %vm3156, %v4616
    %v4675 = vld [vmem:[#allocation3] sm:$0xff]
    %v4676 = vld [vmem:[#allocation3 + $0x10] sm:$0xff]
    %v4677 = vld [vmem:[#allocation3 + $0x20] sm:$0xff]
    %v4678 = vld [vmem:[#allocation3 + $0x30] sm:$0xff]
    %v4679 = vld [vmem:[#allocation3 + $0x40] sm:$0xff]
    %v4680 = vld [vmem:[#allocation3 + $0x50] sm:$0xff]
    %v4681 = vld [vmem:[#allocation3 + $0x60] sm:$0xff]
    %v4682 = vld [vmem:[#allocation3 + $0x70] sm:$0xff]
    %v4683 = vld [vmem:[#allocation3 + $0xa0] sm:$0xff]
    %v4684 = vld [vmem:[#allocation3 + $0xb0] sm:$0xff]
    %v4685 = vld [vmem:[#allocation3 + $0xc0] sm:$0xff]
    %v4686 = vld [vmem:[#allocation3 + $0xd0] sm:$0xff]
    %v4687 = vld [vmem:[#allocation3 + $0xe0] sm:$0xff]
    %v4688 = vld [vmem:[#allocation3 + $0xf0] sm:$0xff]
    %v4689 = vld [vmem:[#allocation3 + $0x100] sm:$0xff]
    %v4690 = vld [vmem:[#allocation3 + $0x110] sm:$0xff]
    %v4691 = vld [vmem:[#allocation3 + $0x1] sm:$0xff]
    %v4692 = vld [vmem:[#allocation3 + $0x11] sm:$0xff]
    %v4693 = vld [vmem:[#allocation3 + $0x21] sm:$0xff]
    %v4694 = vld [vmem:[#allocation3 + $0x31] sm:$0xff]
    %v4695 = vld [vmem:[#allocation3 + $0x41] sm:$0xff]
    %v4696 = vld [vmem:[#allocation3 + $0x51] sm:$0xff]
    %v4697 = vld [vmem:[#allocation3 + $0x61] sm:$0xff]
    %v4698 = vld [vmem:[#allocation3 + $0x71] sm:$0xff]
    %v4699 = vld [vmem:[#allocation3 + $0xa1] sm:$0xff]
    %v4700 = vld [vmem:[#allocation3 + $0xb1] sm:$0xff]
    %v4701 = vld [vmem:[#allocation3 + $0xc1] sm:$0xff]
    %v4702 = vld [vmem:[#allocation3 + $0xd1] sm:$0xff]
    %v4703 = vld [vmem:[#allocation3 + $0xe1] sm:$0xff]
    %v4704 = vld [vmem:[#allocation3 + $0xf1] sm:$0xff]
    %v4705 = vld [vmem:[#allocation3 + $0x101] sm:$0xff]
    %v4706 = vld [vmem:[#allocation3 + $0x111] sm:$0xff]
    %v4707 = vld [vmem:[#allocation3 + $0x2] sm:$0xff]
    %v4708 = vld [vmem:[#allocation3 + $0x12] sm:$0xff]
    %v4709 = vld [vmem:[#allocation3 + $0x22] sm:$0xff]
    %v4710 = vld [vmem:[#allocation3 + $0x32] sm:$0xff]
    %v4711 = vld [vmem:[#allocation3 + $0x42] sm:$0xff]
    %v4712 = vld [vmem:[#allocation3 + $0x52] sm:$0xff]
    %v4713 = vld [vmem:[#allocation3 + $0x62] sm:$0xff]
    %v4714 = vld [vmem:[#allocation3 + $0x72] sm:$0xff]
    %v4715 = vld [vmem:[#allocation3 + $0xa2] sm:$0xff]
    %v4716 = vld [vmem:[#allocation3 + $0xb2] sm:$0xff]
    %v4717 = vld [vmem:[#allocation3 + $0xc2] sm:$0xff]
    %v4718 = vld [vmem:[#allocation3 + $0xd2] sm:$0xff]
    %v4719 = vld [vmem:[#allocation3 + $0xe2] sm:$0xff]
    %v4720 = vld [vmem:[#allocation3 + $0xf2] sm:$0xff]
    %v4721 = vld [vmem:[#allocation3 + $0x102] sm:$0xff]
    %v4722 = vld [vmem:[#allocation3 + $0x112] sm:$0xff]
    %v4723 = vld [vmem:[%s4658] sm:$0xff]
    %v4724 = vld [vmem:[%s4658 + $0x10] sm:$0xff]
    %v4725 = vld [vmem:[%s4658 + $0x20] sm:$0xff]
    %v4726 = vld [vmem:[%s4658 + $0x30] sm:$0xff]
    %v4727 = vld [vmem:[%s4658 + $0x40] sm:$0xff]
    %v4728 = vld [vmem:[%s4658 + $0x50] sm:$0xff]
    %v4729 = vld [vmem:[%s4658 + $0x60] sm:$0xff]
    %v4730 = vld [vmem:[%s4658 + $0x70] sm:$0xff]
    %v4731 = vld [vmem:[%s4658 + $0xa0] sm:$0xff]
    %v4732 = vld [vmem:[%s4658 + $0xb0] sm:$0xff]
    %v4733 = vld [vmem:[%s4658 + $0xc0] sm:$0xff]
    %v4734 = vld [vmem:[%s4658 + $0xd0] sm:$0xff]
    %v4735 = vld [vmem:[%s4658 + $0xe0] sm:$0xff]
    %v4736 = vld [vmem:[%s4658 + $0xf0] sm:$0xff]
    %v4737 = vld [vmem:[%s4658 + $0x100] sm:$0xff]
    %v4738 = vld [vmem:[%s4658 + $0x110] sm:$0xff]
    %v4739 = vld [vmem:[%s4658 + $0x1] sm:$0xff]
    %v4740 = vld [vmem:[%s4658 + $0x11] sm:$0xff]
    %v4741 = vld [vmem:[%s4658 + $0x21] sm:$0xff]
    %v4742 = vld [vmem:[%s4658 + $0x31] sm:$0xff]
    %v4743 = vld [vmem:[%s4658 + $0x41] sm:$0xff]
    %v4744 = vld [vmem:[%s4658 + $0x51] sm:$0xff]
    %v4745 = vld [vmem:[%s4658 + $0x61] sm:$0xff]
    %v4746 = vld [vmem:[%s4658 + $0x71] sm:$0xff]
    %v4747 = vld [vmem:[%s4658 + $0xa1] sm:$0xff]
    %v4748 = vld [vmem:[%s4658 + $0xb1] sm:$0xff]
    %v4749 = vld [vmem:[%s4658 + $0xc1] sm:$0xff]
    %v4750 = vld [vmem:[%s4658 + $0xd1] sm:$0xff]
    %v4751 = vld [vmem:[%s4658 + $0xe1] sm:$0xff]
    %v4752 = vld [vmem:[%s4658 + $0xf1] sm:$0xff]
    %v4753 = vld [vmem:[%s4658 + $0x101] sm:$0xff]
    %v4754 = vld [vmem:[%s4658 + $0x111] sm:$0xff]
    %v4755 = vld [vmem:[%s4658 + $0x2] sm:$0xff]
    %v4756 = vld [vmem:[%s4658 + $0x12] sm:$0xff]
    %v4757 = vld [vmem:[%s4658 + $0x22] sm:$0xff]
    %v4758 = vld [vmem:[%s4658 + $0x32] sm:$0xff]
    %v4759 = vld [vmem:[%s4658 + $0x42] sm:$0xff]
    %v4760 = vld [vmem:[%s4658 + $0x52] sm:$0xff]
    %v4761 = vld [vmem:[%s4658 + $0x62] sm:$0xff]
    %v4762 = vld [vmem:[%s4658 + $0x72] sm:$0xff]
    %v4763 = vld [vmem:[%s4658 + $0xa2] sm:$0xff]
    %v4764 = vld [vmem:[%s4658 + $0xb2] sm:$0xff]
    %v4765 = vld [vmem:[%s4658 + $0xc2] sm:$0xff]
    %v4766 = vld [vmem:[%s4658 + $0xd2] sm:$0xff]
    %v4767 = vld [vmem:[%s4658 + $0xe2] sm:$0xff]
    %v4768 = vld [vmem:[%s4658 + $0xf2] sm:$0xff]
    %v4769 = vld [vmem:[%s4658 + $0x102] sm:$0xff]
    %v4770 = vld [vmem:[%s4658 + $0x112] sm:$0xff]
    %s4771 = scalar_lea.vmem [#allocation3], 32
    %v4772 = vld [vmem:[%s4771] sm:$0xff]
    %v4773 = vld [vmem:[%s4771 + $0x10] sm:$0xff]
    %v4774 = vld [vmem:[%s4771 + $0x20] sm:$0xff]
    %v4775 = vld [vmem:[%s4771 + $0x30] sm:$0xff]
    %v4776 = vld [vmem:[%s4771 + $0x40] sm:$0xff]
    %v4777 = vld [vmem:[%s4771 + $0x50] sm:$0xff]
    %v4778 = vld [vmem:[%s4771 + $0x60] sm:$0xff]
    %v4779 = vld [vmem:[%s4771 + $0x70] sm:$0xff]
    %v4780 = vld [vmem:[%s4771 + $0xa0] sm:$0xff]
    %v4781 = vld [vmem:[%s4771 + $0xb0] sm:$0xff]
    %v4782 = vld [vmem:[%s4771 + $0xc0] sm:$0xff]
    %v4783 = vld [vmem:[%s4771 + $0xd0] sm:$0xff]
    %v4784 = vld [vmem:[%s4771 + $0xe0] sm:$0xff]
    %v4785 = vld [vmem:[%s4771 + $0xf0] sm:$0xff]
    %v4786 = vld [vmem:[%s4771 + $0x100] sm:$0xff]
    %v4787 = vld [vmem:[%s4771 + $0x110] sm:$0xff]
    %v4788 = vld [vmem:[%s4771 + $0x1] sm:$0xff]
    %v4789 = vld [vmem:[%s4771 + $0x11] sm:$0xff]
    %v4790 = vld [vmem:[%s4771 + $0x21] sm:$0xff]
    %v4791 = vld [vmem:[%s4771 + $0x31] sm:$0xff]
    %v4792 = vld [vmem:[%s4771 + $0x41] sm:$0xff]
    %v4793 = vld [vmem:[%s4771 + $0x51] sm:$0xff]
    %v4794 = vld [vmem:[%s4771 + $0x61] sm:$0xff]
    %v4795 = vld [vmem:[%s4771 + $0x71] sm:$0xff]
    %v4796 = vld [vmem:[%s4771 + $0xa1] sm:$0xff]
    %v4797 = vld [vmem:[%s4771 + $0xb1] sm:$0xff]
    %v4798 = vld [vmem:[%s4771 + $0xc1] sm:$0xff]
    %v4799 = vld [vmem:[%s4771 + $0xd1] sm:$0xff]
    %v4800 = vld [vmem:[%s4771 + $0xe1] sm:$0xff]
    %v4801 = vld [vmem:[%s4771 + $0xf1] sm:$0xff]
    %v4802 = vld [vmem:[%s4771 + $0x101] sm:$0xff]
    %v4803 = vld [vmem:[%s4771 + $0x111] sm:$0xff]
    %v4804 = vld [vmem:[%s4771 + $0x2] sm:$0xff]
    %v4805 = vld [vmem:[%s4771 + $0x12] sm:$0xff]
    %v4806 = vld [vmem:[%s4771 + $0x22] sm:$0xff]
    %v4807 = vld [vmem:[%s4771 + $0x32] sm:$0xff]
    %v4808 = vld [vmem:[%s4771 + $0x42] sm:$0xff]
    %v4809 = vld [vmem:[%s4771 + $0x52] sm:$0xff]
    %v4810 = vld [vmem:[%s4771 + $0x62] sm:$0xff]
    %v4811 = vld [vmem:[%s4771 + $0x72] sm:$0xff]
    %v4812 = vld [vmem:[%s4771 + $0xa2] sm:$0xff]
    %v4813 = vld [vmem:[%s4771 + $0xb2] sm:$0xff]
    %v4814 = vld [vmem:[%s4771 + $0xc2] sm:$0xff]
    %v4815 = vld [vmem:[%s4771 + $0xd2] sm:$0xff]
    %v4816 = vld [vmem:[%s4771 + $0xe2] sm:$0xff]
    %v4817 = vld [vmem:[%s4771 + $0xf2] sm:$0xff]
    %v4818 = vld [vmem:[%s4771 + $0x102] sm:$0xff]
    %v4819 = vld [vmem:[%s4771 + $0x112] sm:$0xff]
    %4836 = vrot.lane.b32.xlu0 %v4691, 16
    %v4837 = vpop.permute.xlu0 %4836
    %4838 = vrot.lane.b32.xlu0 %v4692, 16
    %v4839 = vpop.permute.xlu0 %4838
    %4840 = vrot.lane.b32.xlu0 %v4693, 16
    %v4841 = vpop.permute.xlu0 %4840
    %4842 = vrot.lane.b32.xlu0 %v4694, 16
    %v4843 = vpop.permute.xlu0 %4842
    %4844 = vrot.lane.b32.xlu0 %v4695, 16
    %v4845 = vpop.permute.xlu0 %4844
    %4846 = vrot.lane.b32.xlu0 %v4696, 16
    %v4847 = vpop.permute.xlu0 %4846
    %4848 = vrot.lane.b32.xlu0 %v4697, 16
    %v4849 = vpop.permute.xlu0 %4848
    %4850 = vrot.lane.b32.xlu0 %v4698, 16
    %v4851 = vpop.permute.xlu0 %4850
    %4852 = vrot.lane.b32.xlu0 %v4699, 16
    %v4853 = vpop.permute.xlu0 %4852
    %4854 = vrot.lane.b32.xlu0 %v4700, 16
    %v4855 = vpop.permute.xlu0 %4854
    %4856 = vrot.lane.b32.xlu0 %v4701, 16
    %v4857 = vpop.permute.xlu0 %4856
    %4858 = vrot.lane.b32.xlu0 %v4702, 16
    %v4859 = vpop.permute.xlu0 %4858
    %4860 = vrot.lane.b32.xlu0 %v4703, 16
    %v4861 = vpop.permute.xlu0 %4860
    %4862 = vrot.lane.b32.xlu0 %v4704, 16
    %v4863 = vpop.permute.xlu0 %4862
    %4864 = vrot.lane.b32.xlu0 %v4705, 16
    %v4865 = vpop.permute.xlu0 %4864
    %4866 = vrot.lane.b32.xlu0 %v4706, 16
    %v4867 = vpop.permute.xlu0 %4866
    %4900 = vrot.lane.b32.xlu0 %v4707, 32
    %v4901 = vpop.permute.xlu0 %4900
    %4902 = vrot.lane.b32.xlu0 %v4708, 32
    %v4903 = vpop.permute.xlu0 %4902
    %4904 = vrot.lane.b32.xlu0 %v4709, 32
    %v4905 = vpop.permute.xlu0 %4904
    %4906 = vrot.lane.b32.xlu0 %v4710, 32
    %v4907 = vpop.permute.xlu0 %4906
    %4908 = vrot.lane.b32.xlu0 %v4711, 32
    %v4909 = vpop.permute.xlu0 %4908
    %4910 = vrot.lane.b32.xlu0 %v4712, 32
    %v4911 = vpop.permute.xlu0 %4910
    %4912 = vrot.lane.b32.xlu0 %v4713, 32
    %v4913 = vpop.permute.xlu0 %4912
    %4914 = vrot.lane.b32.xlu0 %v4714, 32
    %v4915 = vpop.permute.xlu0 %4914
    %4916 = vrot.lane.b32.xlu0 %v4715, 32
    %v4917 = vpop.permute.xlu0 %4916
    %4918 = vrot.lane.b32.xlu0 %v4716, 32
    %v4919 = vpop.permute.xlu0 %4918
    %4920 = vrot.lane.b32.xlu0 %v4717, 32
    %v4921 = vpop.permute.xlu0 %4920
    %4922 = vrot.lane.b32.xlu0 %v4718, 32
    %v4923 = vpop.permute.xlu0 %4922
    %4924 = vrot.lane.b32.xlu0 %v4719, 32
    %v4925 = vpop.permute.xlu0 %4924
    %4926 = vrot.lane.b32.xlu0 %v4720, 32
    %v4927 = vpop.permute.xlu0 %4926
    %4928 = vrot.lane.b32.xlu0 %v4721, 32
    %v4929 = vpop.permute.xlu0 %4928
    %4930 = vrot.lane.b32.xlu0 %v4722, 32
    %v4931 = vpop.permute.xlu0 %4930
    %4964 = vrot.lane.b32.xlu0 %v4723, 48
    %v4965 = vpop.permute.xlu0 %4964
    %4966 = vrot.lane.b32.xlu0 %v4724, 48
    %v4967 = vpop.permute.xlu0 %4966
    %4968 = vrot.lane.b32.xlu0 %v4725, 48
    %v4969 = vpop.permute.xlu0 %4968
    %4970 = vrot.lane.b32.xlu0 %v4726, 48
    %v4971 = vpop.permute.xlu0 %4970
    %4972 = vrot.lane.b32.xlu0 %v4727, 48
    %v4973 = vpop.permute.xlu0 %4972
    %4974 = vrot.lane.b32.xlu0 %v4728, 48
    %v4975 = vpop.permute.xlu0 %4974
    %4976 = vrot.lane.b32.xlu0 %v4729, 48
    %v4977 = vpop.permute.xlu0 %4976
    %4978 = vrot.lane.b32.xlu0 %v4730, 48
    %v4979 = vpop.permute.xlu0 %4978
    %4980 = vrot.lane.b32.xlu0 %v4731, 48
    %v4981 = vpop.permute.xlu0 %4980
    %4982 = vrot.lane.b32.xlu0 %v4732, 48
    %v4983 = vpop.permute.xlu0 %4982
    %4984 = vrot.lane.b32.xlu0 %v4733, 48
    %v4985 = vpop.permute.xlu0 %4984
    %4986 = vrot.lane.b32.xlu0 %v4734, 48
    %v4987 = vpop.permute.xlu0 %4986
    %4988 = vrot.lane.b32.xlu0 %v4735, 48
    %v4989 = vpop.permute.xlu0 %4988
    %4990 = vrot.lane.b32.xlu0 %v4736, 48
    %v4991 = vpop.permute.xlu0 %4990
    %4992 = vrot.lane.b32.xlu0 %v4737, 48
    %v4993 = vpop.permute.xlu0 %4992
    %4994 = vrot.lane.b32.xlu0 %v4738, 48
    %v4995 = vpop.permute.xlu0 %4994
    %5028 = vrot.lane.b32.xlu0 %v4739, 64
    %v5029 = vpop.permute.xlu0 %5028
    %5030 = vrot.lane.b32.xlu0 %v4740, 64
    %v5031 = vpop.permute.xlu0 %5030
    %5032 = vrot.lane.b32.xlu0 %v4741, 64
    %v5033 = vpop.permute.xlu0 %5032
    %5034 = vrot.lane.b32.xlu0 %v4742, 64
    %v5035 = vpop.permute.xlu0 %5034
    %5036 = vrot.lane.b32.xlu0 %v4743, 64
    %v5037 = vpop.permute.xlu0 %5036
    %5038 = vrot.lane.b32.xlu0 %v4744, 64
    %v5039 = vpop.permute.xlu0 %5038
    %5040 = vrot.lane.b32.xlu0 %v4745, 64
    %v5041 = vpop.permute.xlu0 %5040
    %5042 = vrot.lane.b32.xlu0 %v4746, 64
    %v5043 = vpop.permute.xlu0 %5042
    %5044 = vrot.lane.b32.xlu0 %v4747, 64
    %v5045 = vpop.permute.xlu0 %5044
    %5046 = vrot.lane.b32.xlu0 %v4748, 64
    %v5047 = vpop.permute.xlu0 %5046
    %5048 = vrot.lane.b32.xlu0 %v4749, 64
    %v5049 = vpop.permute.xlu0 %5048
    %5050 = vrot.lane.b32.xlu0 %v4750, 64
    %v5051 = vpop.permute.xlu0 %5050
    %5052 = vrot.lane.b32.xlu0 %v4751, 64
    %v5053 = vpop.permute.xlu0 %5052
    %5054 = vrot.lane.b32.xlu0 %v4752, 64
    %v5055 = vpop.permute.xlu0 %5054
    %5056 = vrot.lane.b32.xlu0 %v4753, 64
    %v5057 = vpop.permute.xlu0 %5056
    %5058 = vrot.lane.b32.xlu0 %v4754, 64
    %v5059 = vpop.permute.xlu0 %5058
    %5092 = vrot.lane.b32.xlu0 %v4755, 80
    %v5093 = vpop.permute.xlu0 %5092
    %5094 = vrot.lane.b32.xlu0 %v4756, 80
    %v5095 = vpop.permute.xlu0 %5094
    %5096 = vrot.lane.b32.xlu0 %v4757, 80
    %v5097 = vpop.permute.xlu0 %5096
    %5098 = vrot.lane.b32.xlu0 %v4758, 80
    %v5099 = vpop.permute.xlu0 %5098
    %5100 = vrot.lane.b32.xlu0 %v4759, 80
    %v5101 = vpop.permute.xlu0 %5100
    %5102 = vrot.lane.b32.xlu0 %v4760, 80
    %v5103 = vpop.permute.xlu0 %5102
    %5104 = vrot.lane.b32.xlu0 %v4761, 80
    %v5105 = vpop.permute.xlu0 %5104
    %5106 = vrot.lane.b32.xlu0 %v4762, 80
    %v5107 = vpop.permute.xlu0 %5106
    %5108 = vrot.lane.b32.xlu0 %v4763, 80
    %v5109 = vpop.permute.xlu0 %5108
    %5110 = vrot.lane.b32.xlu0 %v4764, 80
    %v5111 = vpop.permute.xlu0 %5110
    %5112 = vrot.lane.b32.xlu0 %v4765, 80
    %v5113 = vpop.permute.xlu0 %5112
    %5114 = vrot.lane.b32.xlu0 %v4766, 80
    %v5115 = vpop.permute.xlu0 %5114
    %5116 = vrot.lane.b32.xlu0 %v4767, 80
    %v5117 = vpop.permute.xlu0 %5116
    %5118 = vrot.lane.b32.xlu0 %v4768, 80
    %v5119 = vpop.permute.xlu0 %5118
    %5120 = vrot.lane.b32.xlu0 %v4769, 80
    %v5121 = vpop.permute.xlu0 %5120
    %5122 = vrot.lane.b32.xlu0 %v4770, 80
    %v5123 = vpop.permute.xlu0 %5122
    %5156 = vrot.lane.b32.xlu0 %v4772, 96
    %v5157 = vpop.permute.xlu0 %5156
    %5158 = vrot.lane.b32.xlu0 %v4773, 96
    %v5159 = vpop.permute.xlu0 %5158
    %5160 = vrot.lane.b32.xlu0 %v4774, 96
    %v5161 = vpop.permute.xlu0 %5160
    %5162 = vrot.lane.b32.xlu0 %v4775, 96
    %v5163 = vpop.permute.xlu0 %5162
    %5164 = vrot.lane.b32.xlu0 %v4776, 96
    %v5165 = vpop.permute.xlu0 %5164
    %5166 = vrot.lane.b32.xlu0 %v4777, 96
    %v5167 = vpop.permute.xlu0 %5166
    %5168 = vrot.lane.b32.xlu0 %v4778, 96
    %v5169 = vpop.permute.xlu0 %5168
    %5170 = vrot.lane.b32.xlu0 %v4779, 96
    %v5171 = vpop.permute.xlu0 %5170
    %5172 = vrot.lane.b32.xlu0 %v4780, 96
    %v5173 = vpop.permute.xlu0 %5172
    %5174 = vrot.lane.b32.xlu0 %v4781, 96
    %v5175 = vpop.permute.xlu0 %5174
    %5176 = vrot.lane.b32.xlu0 %v4782, 96
    %v5177 = vpop.permute.xlu0 %5176
    %5178 = vrot.lane.b32.xlu0 %v4783, 96
    %v5179 = vpop.permute.xlu0 %5178
    %5180 = vrot.lane.b32.xlu0 %v4784, 96
    %v5181 = vpop.permute.xlu0 %5180
    %5182 = vrot.lane.b32.xlu0 %v4785, 96
    %v5183 = vpop.permute.xlu0 %5182
    %5184 = vrot.lane.b32.xlu0 %v4786, 96
    %v5185 = vpop.permute.xlu0 %5184
    %5186 = vrot.lane.b32.xlu0 %v4787, 96
    %v5187 = vpop.permute.xlu0 %5186
    %5220 = vrot.lane.b32.xlu0 %v4788, 112
    %v5221 = vpop.permute.xlu0 %5220
    %5222 = vrot.lane.b32.xlu0 %v4789, 112
    %v5223 = vpop.permute.xlu0 %5222
    %5224 = vrot.lane.b32.xlu0 %v4790, 112
    %v5225 = vpop.permute.xlu0 %5224
    %5226 = vrot.lane.b32.xlu0 %v4791, 112
    %v5227 = vpop.permute.xlu0 %5226
    %5228 = vrot.lane.b32.xlu0 %v4792, 112
    %v5229 = vpop.permute.xlu0 %5228
    %5230 = vrot.lane.b32.xlu0 %v4793, 112
    %v5231 = vpop.permute.xlu0 %5230
    %5232 = vrot.lane.b32.xlu0 %v4794, 112
    %v5233 = vpop.permute.xlu0 %5232
    %5234 = vrot.lane.b32.xlu0 %v4795, 112
    %v5235 = vpop.permute.xlu0 %5234
    %5236 = vrot.lane.b32.xlu0 %v4796, 112
    %v5237 = vpop.permute.xlu0 %5236
    %5238 = vrot.lane.b32.xlu0 %v4797, 112
    %v5239 = vpop.permute.xlu0 %5238
    %5240 = vrot.lane.b32.xlu0 %v4798, 112
    %v5241 = vpop.permute.xlu0 %5240
    %5242 = vrot.lane.b32.xlu0 %v4799, 112
    %v5243 = vpop.permute.xlu0 %5242
    %5244 = vrot.lane.b32.xlu0 %v4800, 112
    %v5245 = vpop.permute.xlu0 %5244
    %5246 = vrot.lane.b32.xlu0 %v4801, 112
    %v5247 = vpop.permute.xlu0 %5246
    %5248 = vrot.lane.b32.xlu0 %v4802, 112
    %v5249 = vpop.permute.xlu0 %5248
    %5250 = vrot.lane.b32.xlu0 %v4803, 112
    %v5251 = vpop.permute.xlu0 %5250
    %v5268 = vsel %vm3156, %v4675, %v4837
    %v5269 = vsel %vm3156, %v4676, %v4839
    %v5270 = vsel %vm3156, %v4677, %v4841
    %v5271 = vsel %vm3156, %v4678, %v4843
    %v5272 = vsel %vm3156, %v4679, %v4845
    %v5273 = vsel %vm3156, %v4680, %v4847
    %v5274 = vsel %vm3156, %v4681, %v4849
    %v5275 = vsel %vm3156, %v4682, %v4851
    %v5276 = vsel %vm3156, %v4683, %v4853
    %v5277 = vsel %vm3156, %v4684, %v4855
    %v5278 = vsel %vm3156, %v4685, %v4857
    %v5279 = vsel %vm3156, %v4686, %v4859
    %v5280 = vsel %vm3156, %v4687, %v4861
    %v5281 = vsel %vm3156, %v4688, %v4863
    %v5282 = vsel %vm3156, %v4689, %v4865
    %v5283 = vsel %vm3156, %v4690, %v4867
    %v5284 = vsel %vm3416, %v5268, %v4901
    %v5285 = vsel %vm3416, %v5269, %v4903
    %v5286 = vsel %vm3416, %v5270, %v4905
    %v5287 = vsel %vm3416, %v5271, %v4907
    %v5288 = vsel %vm3416, %v5272, %v4909
    %v5289 = vsel %vm3416, %v5273, %v4911
    %v5290 = vsel %vm3416, %v5274, %v4913
    %v5291 = vsel %vm3416, %v5275, %v4915
    %v5292 = vsel %vm3416, %v5276, %v4917
    %v5293 = vsel %vm3416, %v5277, %v4919
    %v5294 = vsel %vm3416, %v5278, %v4921
    %v5295 = vsel %vm3416, %v5279, %v4923
    %v5296 = vsel %vm3416, %v5280, %v4925
    %v5297 = vsel %vm3416, %v5281, %v4927
    %v5298 = vsel %vm3416, %v5282, %v4929
    %v5299 = vsel %vm3416, %v5283, %v4931
    %vm5300 = vcmask 392192
    %v5301 = vsel %vm5300, %v5284, %v4965
    %v5302 = vsel %vm5300, %v5285, %v4967
    %v5303 = vsel %vm5300, %v5286, %v4969
    %v5304 = vsel %vm5300, %v5287, %v4971
    %v5305 = vsel %vm5300, %v5288, %v4973
    %v5306 = vsel %vm5300, %v5289, %v4975
    %v5307 = vsel %vm5300, %v5290, %v4977
    %v5308 = vsel %vm5300, %v5291, %v4979
    %v5309 = vsel %vm5300, %v5292, %v4981
    %v5310 = vsel %vm5300, %v5293, %v4983
    %v5311 = vsel %vm5300, %v5294, %v4985
    %v5312 = vsel %vm5300, %v5295, %v4987
    %v5313 = vsel %vm5300, %v5296, %v4989
    %v5314 = vsel %vm5300, %v5297, %v4991
    %v5315 = vsel %vm5300, %v5298, %v4993
    %v5316 = vsel %vm5300, %v5299, %v4995
    %vm5317 = vcmask 523264
    %v5318 = vsel %vm5317, %v5301, %v5029
    %v5319 = vsel %vm5317, %v5302, %v5031
    %v5320 = vsel %vm5317, %v5303, %v5033
    %v5321 = vsel %vm5317, %v5304, %v5035
    %v5322 = vsel %vm5317, %v5305, %v5037
    %v5323 = vsel %vm5317, %v5306, %v5039
    %v5324 = vsel %vm5317, %v5307, %v5041
    %v5325 = vsel %vm5317, %v5308, %v5043
    %v5326 = vsel %vm5317, %v5309, %v5045
    %v5327 = vsel %vm5317, %v5310, %v5047
    %v5328 = vsel %vm5317, %v5311, %v5049
    %v5329 = vsel %vm5317, %v5312, %v5051
    %v5330 = vsel %vm5317, %v5313, %v5053
    %v5331 = vsel %vm5317, %v5314, %v5055
    %v5332 = vsel %vm5317, %v5315, %v5057
    %v5333 = vsel %vm5317, %v5316, %v5059
    %vm5334 = vcmask 654336
    %v5335 = vsel %vm5334, %v5318, %v5093
    %v5336 = vsel %vm5334, %v5319, %v5095
    %v5337 = vsel %vm5334, %v5320, %v5097
    %v5338 = vsel %vm5334, %v5321, %v5099
    %v5339 = vsel %vm5334, %v5322, %v5101
    %v5340 = vsel %vm5334, %v5323, %v5103
    %v5341 = vsel %vm5334, %v5324, %v5105
    %v5342 = vsel %vm5334, %v5325, %v5107
    %v5343 = vsel %vm5334, %v5326, %v5109
    %v5344 = vsel %vm5334, %v5327, %v5111
    %v5345 = vsel %vm5334, %v5328, %v5113
    %v5346 = vsel %vm5334, %v5329, %v5115
    %v5347 = vsel %vm5334, %v5330, %v5117
    %v5348 = vsel %vm5334, %v5331, %v5119
    %v5349 = vsel %vm5334, %v5332, %v5121
    %v5350 = vsel %vm5334, %v5333, %v5123
    %vm5351 = vcmask 785408
    %v5352 = vsel %vm5351, %v5335, %v5157
    %v5353 = vsel %vm5351, %v5336, %v5159
    %v5354 = vsel %vm5351, %v5337, %v5161
    %v5355 = vsel %vm5351, %v5338, %v5163
    %v5356 = vsel %vm5351, %v5339, %v5165
    %v5357 = vsel %vm5351, %v5340, %v5167
    %v5358 = vsel %vm5351, %v5341, %v5169
    %v5359 = vsel %vm5351, %v5342, %v5171
    %v5360 = vsel %vm5351, %v5343, %v5173
    %v5361 = vsel %vm5351, %v5344, %v5175
    %v5362 = vsel %vm5351, %v5345, %v5177
    %v5363 = vsel %vm5351, %v5346, %v5179
    %v5364 = vsel %vm5351, %v5347, %v5181
    %v5365 = vsel %vm5351, %v5348, %v5183
    %v5366 = vsel %vm5351, %v5349, %v5185
    %v5367 = vsel %vm5351, %v5350, %v5187
    %vm5368 = vcmask 916480
    %v5369 = vsel %vm5368, %v5352, %v5221
    %v5370 = vsel %vm5368, %v5353, %v5223
    %v5371 = vsel %vm5368, %v5354, %v5225
    %v5372 = vsel %vm5368, %v5355, %v5227
    %v5373 = vsel %vm5368, %v5356, %v5229
    %v5374 = vsel %vm5368, %v5357, %v5231
    %v5375 = vsel %vm5368, %v5358, %v5233
    %v5376 = vsel %vm5368, %v5359, %v5235
    %v5377 = vsel %vm5368, %v5360, %v5237
    %v5378 = vsel %vm5368, %v5361, %v5239
    %v5379 = vsel %vm5368, %v5362, %v5241
    %v5380 = vsel %vm5368, %v5363, %v5243
    %v5381 = vsel %vm5368, %v5364, %v5245
    %v5382 = vsel %vm5368, %v5365, %v5247
    %v5383 = vsel %vm5368, %v5366, %v5249
    %v5384 = vsel %vm5368, %v5367, %v5251
    %v5385 = vpack.c.bf16 %v5370, %v5369
    %v5386 = vpack.c.bf16 %v4805, %v4804
    %v5387 = vpack.c.bf16 %v5372, %v5371
    %v5388 = vpack.c.bf16 %v4807, %v4806
    %v5389 = vpack.c.bf16 %v5374, %v5373
    %v5390 = vpack.c.bf16 %v4809, %v4808
    %v5391 = vpack.c.bf16 %v5376, %v5375
    %v5392 = vpack.c.bf16 %v4811, %v4810
    %v5393 = vpack.c.bf16 %v5378, %v5377
    %v5394 = vpack.c.bf16 %v4813, %v4812
    %v5395 = vpack.c.bf16 %v5380, %v5379
    %v5396 = vpack.c.bf16 %v4815, %v4814
    %v5397 = vpack.c.bf16 %v5382, %v5381
    %v5398 = vpack.c.bf16 %v4817, %v4816
    %v5399 = vpack.c.bf16 %v5384, %v5383
    %v5400 = vpack.c.bf16 %v4819, %v4818
    %v5401 = vld [vmem:[%s5] sm:$0xf]
    %v5402 = vld [vmem:[%s5 + $0x4] sm:$0xf]
    %v5403 = vld [vmem:[%s5 + $0x8] sm:$0xf]
    %v5404 = vld [vmem:[%s5 + $0xc] sm:$0xf]
    %v5405 = vld [vmem:[%s5 + $0x10] sm:$0xf]
    %v5406 = vld [vmem:[%s5 + $0x14] sm:$0xf]
    %v5407 = vld [vmem:[%s5 + $0x18] sm:$0xf]
    %v5408 = vld [vmem:[%s5 + $0x1c] sm:$0xf]
    %v5409 = vld [vmem:[%s5 + $0x20] sm:$0xf]
    %v5410 = vld [vmem:[%s5 + $0x24] sm:$0xf]
    %v5411 = vld [vmem:[%s5 + $0x28] sm:$0xf]
    %v5412 = vld [vmem:[%s5 + $0x2c] sm:$0xf]
    %v5413 = vld [vmem:[%s5 + $0x30] sm:$0xf]
    %v5414 = vld [vmem:[%s5 + $0x34] sm:$0xf]
    %v5415 = vld [vmem:[%s5 + $0x38] sm:$0xf]
    %v5416 = vld [vmem:[%s5 + $0x3c] sm:$0xf]
    %v5417 = vld [vmem:[%s5 + $0x40] sm:$0xf]
    %v5418 = vld [vmem:[%s5 + $0x44] sm:$0xf]
    %v5419 = vld [vmem:[%s6] sm:$0x1]
    %v5421 = vlaneseq
    %v5422 = vshrl.u32 %v5421, 7
    %v5423 = vsub.s32 0, %v5422
    %v5424 = vrot.slane %v5419, %v5423
    %v5444 = vunpack.c.l.b16 %v5401
    %v5445 = vunpack.c.l.b16 %v5402
    %v5446 = vunpack.c.l.b16 %v5403
    %v5447 = vunpack.c.l.b16 %v5404
    %v5448 = vunpack.c.l.b16 %v5405
    %v5449 = vunpack.c.l.b16 %v5406
    %v5450 = vunpack.c.l.b16 %v5407
    %v5451 = vunpack.c.l.b16 %v5408
    %v5452 = vunpack.c.l.b16 %v5409
    %v5453 = vunpack.c.l.b16 %v5410
    %v5454 = vunpack.c.l.b16 %v5411
    %v5455 = vunpack.c.l.b16 %v5412
    %v5456 = vunpack.c.l.b16 %v5413
    %v5457 = vunpack.c.l.b16 %v5414
    %v5458 = vunpack.c.l.b16 %v5415
    %v5459 = vunpack.c.l.b16 %v5416
    %v5460 = vunpack.c.l.b16 %v5417
    %v5461 = vunpack.c.l.b16 %v5418
    %v5462 = vpack.c.b16 %v5445, %v5444
    %v5463 = vpack.c.b16 %v5447, %v5446
    %v5464 = vpack.c.b16 %v5449, %v5448
    %v5465 = vpack.c.b16 %v5451, %v5450
    %v5466 = vpack.c.b16 %v5453, %v5452
    %v5467 = vpack.c.b16 %v5455, %v5454
    %v5468 = vpack.c.b16 %v5457, %v5456
    %v5469 = vpack.c.b16 %v5459, %v5458
    %v5470 = vpack.c.b16 %v5461, %v5460
    %v5481 = vsel %vm3156, %v5386, 0
    %v5484 = vsel %vm3156, %v5388, 0
    %v5487 = vsel %vm3156, %v5390, 0
    %v5490 = vsel %vm3156, %v5392, 0
    %v5493 = vsel %vm3156, %v5394, 0
    %v5496 = vsel %vm3156, %v5396, 0
    %v5499 = vsel %vm3156, %v5398, 0
    %v5502 = vsel %vm3156, %v5400, 0
    %5504 = vmatprep.subr.bf16.mxu0 0
    %5505 = vmatpush1.bf16.msra.mxu0 %v5462
    %5506 = vmatprep.subr.bf16.mxu0 0
    %5507 = vmatpush1.bf16.msra.mxu0 %v5463
    %5508 = vmatprep.subr.bf16.mxu0 0
    %5509 = vmatpush1.bf16.msra.mxu0 %v5464
    %5510 = vmatprep.subr.bf16.mxu0 0
    %5511 = vmatpush1.bf16.msra.mxu0 %v5465
    %5512 = vmatprep.subr.bf16.mxu0 0
    %5513 = vmatpush1.bf16.msra.mxu0 %v5466
    %5514 = vmatprep.subr.bf16.mxu0 0
    %5515 = vmatpush1.bf16.msra.mxu0 %v5467
    %5516 = vmatprep.subr.bf16.mxu0 0
    %5517 = vmatpush1.bf16.msra.mxu0 %v5468
    %5518 = vmatprep.subr.bf16.mxu0 0
    %5519 = vmatpush1.bf16.msra.mxu0 %v5469
    %5520 = vmatprep.subr.bf16.mxu0 0
    %5521 = vmatpush1.bf16.msra.mxu0 %v5470
    %5522 = vmatprep.subr.bf16.mxu0 0
    %5523 = vmatpush1.bf16.msra.mxu0 0
    %5524 = vmatprep.subr.bf16.mxu0 0
    %5525 = vmatpush1.bf16.msra.mxu0 0
    %5526 = vmatprep.subr.bf16.mxu0 0
    %5527 = vmatpush1.bf16.msra.mxu0 0
    %5528 = vmatprep.subr.bf16.mxu0 0
    %5529 = vmatpush1.bf16.msra.mxu0 0
    %5530 = vmatprep.subr.bf16.mxu0 0
    %5531 = vmatpush1.bf16.msra.mxu0 0
    %5532 = vmatprep.subr.bf16.mxu0 0
    %5533 = vmatpush1.bf16.msra.mxu0 0
    %5534 = vmatprep.subr.bf16.mxu0 0
    %5535 = vmatpush1.bf16.msra.mxu0 0
    %5536 = vmatprep.mubr.bf16.mxu0 %v5481
    %5537 = vmatmul.mubr.bf16.gmra.mrb[0].mxu0 %v5385
    %v5538 = vpop.f32.mrb[0].mxu0
    %v5539 = vadd.f32 %v5424, %v5538
    %v5540 = vpop.f32.mrb[0].mxu0
    %v5541 = vpop.f32.mrb[0].mxu0
    %v5542 = vadd.f32 %v5424, %v5541
    %v5543 = vpop.f32.mrb[0].mxu0
    %5544 = vmatprep.mubr.bf16.mxu0 %v5484
    %5545 = vmatmul.mubr.bf16.gmra.mrb[0].mxu0 %v5387
    %v5546 = vpop.f32.mrb[0].mxu0
    %v5547 = vadd.f32 %v5424, %v5546
    %v5548 = vpop.f32.mrb[0].mxu0
    %v5549 = vpop.f32.mrb[0].mxu0
    %v5550 = vadd.f32 %v5424, %v5549
    %v5551 = vpop.f32.mrb[0].mxu0
    %5552 = vmatprep.mubr.bf16.mxu0 %v5487
    %5553 = vmatmul.mubr.bf16.gmra.mrb[0].mxu0 %v5389
    %v5554 = vpop.f32.mrb[0].mxu0
    %v5555 = vadd.f32 %v5424, %v5554
    %v5556 = vpop.f32.mrb[0].mxu0
    %v5557 = vpop.f32.mrb[0].mxu0
    %v5558 = vadd.f32 %v5424, %v5557
    %v5559 = vpop.f32.mrb[0].mxu0
    %5560 = vmatprep.mubr.bf16.mxu0 %v5490
    %5561 = vmatmul.mubr.bf16.gmra.mrb[0].mxu0 %v5391
    %v5562 = vpop.f32.mrb[0].mxu0
    %v5563 = vadd.f32 %v5424, %v5562
    %v5564 = vpop.f32.mrb[0].mxu0
    %v5565 = vpop.f32.mrb[0].mxu0
    %v5566 = vadd.f32 %v5424, %v5565
    %v5567 = vpop.f32.mrb[0].mxu0
    %5568 = vmatprep.mubr.bf16.mxu0 %v5493
    %5569 = vmatmul.mubr.bf16.gmra.mrb[0].mxu0 %v5393
    %v5570 = vpop.f32.mrb[0].mxu0
    %v5571 = vadd.f32 %v5424, %v5570
    %v5572 = vpop.f32.mrb[0].mxu0
    %v5573 = vpop.f32.mrb[0].mxu0
    %v5574 = vadd.f32 %v5424, %v5573
    %v5575 = vpop.f32.mrb[0].mxu0
    %5576 = vmatprep.mubr.bf16.mxu0 %v5496
    %5577 = vmatmul.mubr.bf16.gmra.mrb[0].mxu0 %v5395
    %v5578 = vpop.f32.mrb[0].mxu0
    %v5579 = vadd.f32 %v5424, %v5578
    %v5580 = vpop.f32.mrb[0].mxu0
    %v5581 = vpop.f32.mrb[0].mxu0
    %v5582 = vadd.f32 %v5424, %v5581
    %v5583 = vpop.f32.mrb[0].mxu0
    %5584 = vmatprep.mubr.bf16.mxu0 %v5499
    %5585 = vmatmul.mubr.bf16.gmra.mrb[0].mxu0 %v5397
    %v5586 = vpop.f32.mrb[0].mxu0
    %v5587 = vadd.f32 %v5424, %v5586
    %v5588 = vpop.f32.mrb[0].mxu0
    %v5589 = vpop.f32.mrb[0].mxu0
    %v5590 = vadd.f32 %v5424, %v5589
    %v5591 = vpop.f32.mrb[0].mxu0
    %5592 = vmatprep.mubr.bf16.mxu0 %v5502
    %5593 = vmatmul.mubr.bf16.gmra.mrb[0].mxu0 %v5399
    %v5594 = vpop.f32.mrb[0].mxu0
    %v5595 = vadd.f32 %v5424, %v5594
    %v5596 = vpop.f32.mrb[0].mxu0
    %v5597 = vpop.f32.mrb[0].mxu0
    %v5598 = vadd.f32 %v5424, %v5597
    %v5599 = vpop.f32.mrb[0].mxu0
    %5600 = vdwg.mxu0
    %v5601 = vsel %vm3416, %v5539, 0.0
    %v5602 = vsel %vm3416, %v5542, 0.0
    %v5603 = vadd.f32 %v5601, %v5602
    %v5604 = vsel %vm3416, %v5547, 0.0
    %v5605 = vadd.f32 %v5603, %v5604
    %v5606 = vsel %vm3416, %v5550, 0.0
    %v5607 = vadd.f32 %v5605, %v5606
    %v5608 = vsel %vm3416, %v5555, 0.0
    %v5609 = vadd.f32 %v5607, %v5608
    %v5610 = vsel %vm3416, %v5558, 0.0
    %v5611 = vadd.f32 %v5609, %v5610
    %v5612 = vsel %vm3416, %v5563, 0.0
    %v5613 = vadd.f32 %v5611, %v5612
    %v5614 = vsel %vm3416, %v5566, 0.0
    %v5615 = vadd.f32 %v5613, %v5614
    %v5616 = vsel %vm3416, %v5571, 0.0
    %v5617 = vadd.f32 %v5615, %v5616
    %v5618 = vsel %vm3416, %v5574, 0.0
    %v5619 = vadd.f32 %v5617, %v5618
    %v5620 = vsel %vm3416, %v5579, 0.0
    %v5621 = vadd.f32 %v5619, %v5620
    %v5622 = vsel %vm3416, %v5582, 0.0
    %v5623 = vadd.f32 %v5621, %v5622
    %v5624 = vsel %vm3416, %v5587, 0.0
    %v5625 = vadd.f32 %v5623, %v5624
    %v5626 = vsel %vm3416, %v5590, 0.0
    %v5627 = vadd.f32 %v5625, %v5626
    %v5628 = vsel %vm3416, %v5595, 0.0
    %v5629 = vadd.f32 %v5627, %v5628
    %v5630 = vsel %vm3416, %v5598, 0.0
    %v5631 = vadd.f32 %v5629, %v5630
    %v5632 = vrot.slane %v5631, 4
    %v5633 = vadd.f32 %v5631, %v5632
    %v5634 = vrot.slane %v5633, 2
    %v5635 = vadd.f32 %v5633, %v5634
    %v5636 = vrot.slane %v5635, 1
    %v5637 = vadd.f32 %v5635, %v5636
    %v5638 = vrcp.pop 128.0
    %v5639 = vmul.f32 %v5637, %v5638
    %v5640 = vsub.f32 %v5539, %v5639
    %v5641 = vsub.f32 %v5542, %v5639
    %v5642 = vsub.f32 %v5547, %v5639
    %v5643 = vsub.f32 %v5550, %v5639
    %v5644 = vsub.f32 %v5555, %v5639
    %v5645 = vsub.f32 %v5558, %v5639
    %v5646 = vsub.f32 %v5563, %v5639
    %v5647 = vsub.f32 %v5566, %v5639
    %v5648 = vsub.f32 %v5571, %v5639
    %v5649 = vsub.f32 %v5574, %v5639
    %v5650 = vsub.f32 %v5579, %v5639
    %v5651 = vsub.f32 %v5582, %v5639
    %v5652 = vsub.f32 %v5587, %v5639
    %v5653 = vsub.f32 %v5590, %v5639
    %v5654 = vsub.f32 %v5595, %v5639
    %v5655 = vsub.f32 %v5598, %v5639
    %v5656 = vmul.f32 %v5640, %v5640
    %v5657 = vmul.f32 %v5641, %v5641
    %v5658 = vmul.f32 %v5642, %v5642
    %v5659 = vmul.f32 %v5643, %v5643
    %v5660 = vmul.f32 %v5644, %v5644
    %v5661 = vmul.f32 %v5645, %v5645
    %v5662 = vmul.f32 %v5646, %v5646
    %v5663 = vmul.f32 %v5647, %v5647
    %v5664 = vmul.f32 %v5648, %v5648
    %v5665 = vmul.f32 %v5649, %v5649
    %v5666 = vmul.f32 %v5650, %v5650
    %v5667 = vmul.f32 %v5651, %v5651
    %v5668 = vmul.f32 %v5652, %v5652
    %v5669 = vmul.f32 %v5653, %v5653
    %v5670 = vmul.f32 %v5654, %v5654
    %v5671 = vmul.f32 %v5655, %v5655
    %v5672 = vsel %vm3416, %v5656, 0.0
    %v5673 = vsel %vm3416, %v5657, 0.0
    %v5674 = vadd.f32 %v5672, %v5673
    %v5675 = vsel %vm3416, %v5658, 0.0
    %v5676 = vadd.f32 %v5674, %v5675
    %v5677 = vsel %vm3416, %v5659, 0.0
    %v5678 = vadd.f32 %v5676, %v5677
    %v5679 = vsel %vm3416, %v5660, 0.0
    %v5680 = vadd.f32 %v5678, %v5679
    %v5681 = vsel %vm3416, %v5661, 0.0
    %v5682 = vadd.f32 %v5680, %v5681
    %v5683 = vsel %vm3416, %v5662, 0.0
    %v5684 = vadd.f32 %v5682, %v5683
    %v5685 = vsel %vm3416, %v5663, 0.0
    %v5686 = vadd.f32 %v5684, %v5685
    %v5687 = vsel %vm3416, %v5664, 0.0
    %v5688 = vadd.f32 %v5686, %v5687
    %v5689 = vsel %vm3416, %v5665, 0.0
    %v5690 = vadd.f32 %v5688, %v5689
    %v5691 = vsel %vm3416, %v5666, 0.0
    %v5692 = vadd.f32 %v5690, %v5691
    %v5693 = vsel %vm3416, %v5667, 0.0
    %v5694 = vadd.f32 %v5692, %v5693
    %v5695 = vsel %vm3416, %v5668, 0.0
    %v5696 = vadd.f32 %v5694, %v5695
    %v5697 = vsel %vm3416, %v5669, 0.0
    %v5698 = vadd.f32 %v5696, %v5697
    %v5699 = vsel %vm3416, %v5670, 0.0
    %v5700 = vadd.f32 %v5698, %v5699
    %v5701 = vsel %vm3416, %v5671, 0.0
    %v5702 = vadd.f32 %v5700, %v5701
    %v5703 = vrot.slane %v5702, 4
    %v5704 = vadd.f32 %v5702, %v5703
    %v5705 = vrot.slane %v5704, 2
    %v5706 = vadd.f32 %v5704, %v5705
    %v5707 = vrot.slane %v5706, 1
    %v5708 = vadd.f32 %v5706, %v5707
    %v5709 = vmul.f32 %v5708, %v5638
    %v5710 = vld [vmem:[%s7] sm:$0x1]
    %v5711 = vadd.f32 %v5709, 1e-05
    %v5712 = vrsqrt.pop %v5711
    %v5713 = vmul.f32 %v5710, %v5712
    %v5714 = vld [vmem:[%s8] sm:$0x1]
    %v5715 = vmul.f32 %v5639, %v5713
    %v5716 = vsub.f32 %v5714, %v5715
    %v5718 = vlaneseq
    %v5719 = vshrl.u32 %v5718, 7
    %v5720 = vsub.s32 0, %v5719
    %v5721 = vrot.slane %v5713, %v5720
    %v5723 = vmul.f32 %v5539, %v5721
    %v5724 = vmul.f32 %v5542, %v5721
    %v5725 = vmul.f32 %v5547, %v5721
    %v5726 = vmul.f32 %v5550, %v5721
    %v5727 = vmul.f32 %v5555, %v5721
    %v5728 = vmul.f32 %v5558, %v5721
    %v5729 = vmul.f32 %v5563, %v5721
    %v5730 = vmul.f32 %v5566, %v5721
    %v5731 = vmul.f32 %v5571, %v5721
    %v5732 = vmul.f32 %v5574, %v5721
    %v5733 = vmul.f32 %v5579, %v5721
    %v5734 = vmul.f32 %v5582, %v5721
    %v5735 = vmul.f32 %v5587, %v5721
    %v5736 = vmul.f32 %v5590, %v5721
    %v5737 = vmul.f32 %v5595, %v5721
    %v5738 = vmul.f32 %v5598, %v5721
    %v5740 = vlaneseq
    %v5741 = vshrl.u32 %v5740, 7
    %v5742 = vsub.s32 0, %v5741
    %v5743 = vrot.slane %v5716, %v5742
    %v5745 = vadd.f32 %v5723, %v5743
    %v5746 = vadd.f32 %v5724, %v5743
    %v5747 = vadd.f32 %v5725, %v5743
    %v5748 = vadd.f32 %v5726, %v5743
    %v5749 = vadd.f32 %v5727, %v5743
    %v5750 = vadd.f32 %v5728, %v5743
    %v5751 = vadd.f32 %v5729, %v5743
    %v5752 = vadd.f32 %v5730, %v5743
    %v5753 = vadd.f32 %v5731, %v5743
    %v5754 = vadd.f32 %v5732, %v5743
    %v5755 = vadd.f32 %v5733, %v5743
    %v5756 = vadd.f32 %v5734, %v5743
    %v5757 = vadd.f32 %v5735, %v5743
    %v5758 = vadd.f32 %v5736, %v5743
    %v5759 = vadd.f32 %v5737, %v5743
    %v5760 = vadd.f32 %v5738, %v5743
    %v5761 = vmax.f32 %v5745, %v5746
    %v5762 = vmax.f32 %v5747, %v5748
    %v5763 = vmax.f32 %v5749, %v5750
    %v5764 = vmax.f32 %v5751, %v5752
    %v5765 = vmax.f32 %v5753, %v5754
    %v5766 = vmax.f32 %v5755, %v5756
    %v5767 = vmax.f32 %v5757, %v5758
    %v5768 = vmax.f32 %v5759, %v5760
    %5769 = vst.msk [vmem:[#allocation5] sm:$0xff] %vm3416, %v5761
    %5770 = vst.msk [vmem:[#allocation5 + $0x8] sm:$0xff] %vm3416, %v5762
    %5771 = vst.msk [vmem:[#allocation5 + $0x10] sm:$0xff] %vm3416, %v5763
    %5772 = vst.msk [vmem:[#allocation5 + $0x18] sm:$0xff] %vm3416, %v5764
    %5773 = vst.msk [vmem:[#allocation5 + $0x20] sm:$0xff] %vm3416, %v5765
    %5774 = vst.msk [vmem:[#allocation5 + $0x28] sm:$0xff] %vm3416, %v5766
    %5775 = vst.msk [vmem:[#allocation5 + $0x30] sm:$0xff] %vm3416, %v5767
    %5776 = vst.msk [vmem:[#allocation5 + $0x38] sm:$0xff] %vm3416, %v5768
    %v5777 = vld [vmem:[#allocation5] ss:$2 sm:$0xff]
    %s5778 = scalar_lea.vmem [#allocation5], 16
    %v5779 = vld [vmem:[%s5778] ss:$2 sm:$0xff]
    %s5780 = scalar_lea.vmem [#allocation5], 32
    %v5781 = vld [vmem:[%s5780] ss:$2 sm:$0xff]
    %s5782 = scalar_lea.vmem [#allocation5], 48
    %v5783 = vld [vmem:[%s5782] ss:$2 sm:$0xff]
    %s5784 = scalar_lea.vmem [#allocation5], 1
    %v5785 = vld [vmem:[%s5784] ss:$2 sm:$0xff]
    %s5786 = scalar_lea.vmem [#allocation5], 17
    %v5787 = vld [vmem:[%s5786] ss:$2 sm:$0xff]
    %s5788 = scalar_lea.vmem [#allocation5], 33
    %v5789 = vld [vmem:[%s5788] ss:$2 sm:$0xff]
    %s5790 = scalar_lea.vmem [#allocation5], 49
    %v5791 = vld [vmem:[%s5790] ss:$2 sm:$0xff]
    %v5792 = vmax.f32 %v5777, %v5785
    %v5793 = vmax.f32 %v5779, %v5787
    %v5794 = vmax.f32 %v5781, %v5789
    %v5795 = vmax.f32 %v5783, %v5791
    %5796 = vst.msk [vmem:[#allocation6] sm:$0xff] %vm3416, %v5792
    %5797 = vst.msk [vmem:[#allocation6 + $0x8] sm:$0xff] %vm3416, %v5793
    %5798 = vst.msk [vmem:[#allocation6 + $0x10] sm:$0xff] %vm3416, %v5794
    %5799 = vst.msk [vmem:[#allocation6 + $0x18] sm:$0xff] %vm3416, %v5795
    // Predicated region
    $region38: #{shallow_cnn_forward.1} parent=1 // pred_check
      _
    $region39: #{shallow_cnn_forward.1} parent=1 // pred_check_branch
      %5801 = sbr.rel (0) target = $region41
    $region40: #{shallow_cnn_forward.1} parent=1 // pred_region
      %s5803 = ssub.s32 512, 512
      %5804 = vsyncadd [#allocation7], %s5803
      %s5805 = sshll.u32 [#allocation6], 4
      %s5806 = int_to_ptr.vmem [resolvable:$true] %s5805
      %5811 = dma.vmem_to_hbm [thread:$0]  %s5806, 512, %s9, [#allocation7], 128, 128, 8
    $region41: #{shallow_cnn_forward.1} parent=1 // pred_fallthru
      _
    // Predicated region
    $region42: #{shallow_cnn_forward.1} parent=1 // pred_check
      _
    $region43: #{shallow_cnn_forward.1} parent=1 // pred_check_branch
      %5813 = sbr.rel (0) target = $region45
    $region44: #{shallow_cnn_forward.1} parent=1 // pred_region
      %5814 = dma.done [#allocation7], 512
    $region45: #{shallow_cnn_forward.1} parent=1 // pred_fallthru
      _
    %5815 = vsyncpa [#allocation7], 1

</llo_original>
